<compile_context>
chip_gen: v5e
topology: v5e:2x2
jax: 0.10.0
libtpu: 0.0.40
codegen_flags: <defaults>
</compile_context>

<pallas_src>
import functools
import math

import jax
import jax.numpy as jnp
from jax.experimental import pallas as pl
from jax.experimental.pallas import tpu as pltpu

NUM_BITS = 8
NUM_BITS_WEIGHT = 8
NUM_BITS_GRAD = 8  # TODO(synk): gradient quantization is backward-only; not modeled.

_LANE = 128
_SUBLANE = 16                      # bf16 sublane packing
_VMEM_BUDGET = 20 * 1024 * 1024    # resident working-set target for single-K path
_VMEM_LIMIT = 32 * 1024 * 1024     # scoped VMEM limit (safe on v5e/v6e/v7x)


def _round_up(x, m):
    return (x + m - 1) // m * m


# ----------------------------------------------------------------------------
# Pallas kernels
# ----------------------------------------------------------------------------
def _mm_kernel_single_k(p_ref, w_ref, b_ref, *rest, relu, residual):
    """Whole-K matmul (bf16 MXU, f32 acc in regs) + bias (+res) (+ReLU)."""
    if residual:
        r_ref, o_ref = rest
    else:
        (o_ref,) = rest
    out = jnp.dot(p_ref[...], w_ref[...], preferred_element_type=jnp.float32)
    out = out + b_ref[...]
    if residual:
        out = out + r_ref[...].astype(jnp.float32)
    if relu:
        out = jnp.maximum(out, 0.0)
    o_ref[...] = out.astype(o_ref.dtype)


def _mm_kernel_k_tiled(p_ref, w_ref, b_ref, *rest, relu, residual):
    """K-tiled fallback: f32 VMEM accumulator, epilogue on the last K step."""
    if residual:
        r_ref, o_ref, acc_ref = rest
    else:
        o_ref, acc_ref = rest

    @pl.when(pl.program_id(2) == 0)
    def _init():
        acc_ref[...] = jnp.zeros_like(acc_ref)

    acc_ref[...] += jnp.dot(p_ref[...], w_ref[...],
                            preferred_element_type=jnp.float32)

    @pl.when(pl.program_id(2) == pl.num_programs(2) - 1)
    def _epilogue():
        out = acc_ref[...] + b_ref[...]
        if residual:
            out = out + r_ref[...].astype(jnp.float32)
        if relu:
            out = jnp.maximum(out, 0.0)
        o_ref[...] = out.astype(o_ref.dtype)


# ----------------------------------------------------------------------------
# Fused matmul wrapper
# ----------------------------------------------------------------------------
def fused_matmul(patches, w_mat, bias, residual=None, relu=False,
                 out_dtype=jnp.bfloat16):
    """out = maybe_relu(patches @ w_mat + bias [+ residual]).

    `w_mat` (Kp, Np) bf16 and `bias` (1, Np) f32 are already lane-dense padded
    (multiples of 128) by prepare_params.  `patches` (M, K), K <= Kp, is padded
    here.  Returns the padded (Mp, Np') result; callers slice lazily.
    """
    M, K = patches.shape
    Kp, Np = w_mat.shape
    assert K <= Kp and Kp % _LANE == 0 and Np % _LANE == 0

    # ---- tile selection: pick tiles first, THEN pad dims to tile multiples ----
    tn = Np if Np <= 512 else 512
    Npp = _round_up(Np, tn)
    gn = Npp // tn

    tm = min(512, _round_up(M, _SUBLANE))
    Mp = _round_up(M, tm)
    gm = Mp // tm
    # v7x megacore: ensure a parallel axis has >= 2 tiles when M allows,
    # so both TensorCores get work.
    if gm == 1 and gn == 1 and Mp >= 2 * _SUBLANE:
        tm = _round_up(Mp // 2, _SUBLANE)
        Mp = _round_up(M, tm)
        gm = Mp // tm

    n_res = 1 if residual is not None else 0
    # Estimated resident working set of the single-K layout (bytes):
    working_set = (4 * tm * Kp                 # patches block (double-buffered bf16)
                   + 2 * Kp * tn               # resident weight block (bf16)
                   + 4 * tn                    # bias (f32)
                   + (1 + n_res) * 4 * tm * tn)  # out (+residual), dbuf bf16
    single_k = working_set <= _VMEM_BUDGET

    # ---- pad operands ----
    p = patches.astype(jnp.bfloat16)
    if (Mp, Kp) != (M, K):
        p = jnp.pad(p, ((0, Mp - M), (0, Kp - K)))
    w, b = w_mat, bias
    if Npp != Np:
        w = jnp.pad(w, ((0, 0), (0, Npp - Np)))
        b = jnp.pad(b, ((0, 0), (0, Npp - Np)))
    r = None
    if residual is not None:
        Mr, Nr = residual.shape
        r = jnp.pad(residual.astype(jnp.bfloat16),
                    ((0, Mp - Mr), (0, Npp - Nr)))

    if single_k:
        # Single K step: no scratch; M is the innermost grid axis so the
        # weight block (index depends only on j) stays resident.
        kernel = functools.partial(_mm_kernel_single_k, relu=relu,
                                   residual=residual is not None)
        grid = (gn, gm)
        in_specs = [
            pl.BlockSpec((tm, Kp), lambda j, i: (i, 0)),
            pl.BlockSpec((Kp, tn), lambda j, i: (0, j)),
            pl.BlockSpec((1, tn), lambda j, i: (0, j)),
        ]
        inputs = [p, w, b]
        if r is not None:
            in_specs.append(pl.BlockSpec((tm, tn), lambda j, i: (i, j)))
            inputs.append(r)
        out_specs = pl.BlockSpec((tm, tn), lambda j, i: (i, j))
        scratch = []
        dims = ("parallel", "parallel")
        Kp_used = Kp
    else:
        # Large-K fallback: K-tiled with an f32 VMEM accumulator (k innermost).
        tk = min(512, Kp)
        Kpp = _round_up(Kp, tk)
        if Kpp != Kp:
            p = jnp.pad(p, ((0, 0), (0, Kpp - Kp)))
            w = jnp.pad(w, ((0, Kpp - Kp), (0, 0)))
        kernel = functools.partial(_mm_kernel_k_tiled, relu=relu,
                                   residual=residual is not None)
        grid = (gm, gn, Kpp // tk)
        in_specs = [
            pl.BlockSpec((tm, tk), lambda i, j, k: (i, k)),
            pl.BlockSpec((tk, tn), lambda i, j, k: (k, j)),
            pl.BlockSpec((1, tn), lambda i, j, k: (0, j)),
        ]
        inputs = [p, w, b]
        if r is not None:
            # Residual block index independent of k -> fetched once per (i,j),
            # consumed only in the last-K epilogue.
            in_specs.append(pl.BlockSpec((tm, tn), lambda i, j, k: (i, j)))
            inputs.append(r)
        out_specs = pl.BlockSpec((tm, tn), lambda i, j, k: (i, j))
        scratch = [pltpu.VMEM((tm, tn), jnp.float32)]
        dims = ("parallel", "parallel", "arbitrary")
        Kp_used = Kpp

    flops = 2 * Mp * Npp * Kp_used
    bytes_accessed = (Mp * Kp_used + Kp_used * Npp
                      + (1 + n_res) * Mp * Npp) * 2 + Npp * 4

    out = pl.pallas_call(
        kernel,
        grid=grid,
        in_specs=in_specs,
        out_specs=out_specs,
        out_shape=jax.ShapeDtypeStruct((Mp, Npp), out_dtype),
        scratch_shapes=scratch,
        compiler_params=pltpu.CompilerParams(
            dimension_semantics=dims,
            vmem_limit_bytes=_VMEM_LIMIT),
        cost_estimate=pl.CostEstimate(flops=flops, transcendentals=0,
                                      bytes_accessed=bytes_accessed),
    )(*inputs)
    return out


# ----------------------------------------------------------------------------
# JAX glue: fake quantization, im2col, maxpool
# ----------------------------------------------------------------------------
def fake_quant(x, num_bits):
    """Per-tensor asymmetric min/max uniform fake-quantization (QConv2d model)."""
    # TODO(synk): could be fused into the matmul prologue via SMEM scalars, but
    # that would quantize the conv's spatial zero-padding too (fq(0) != 0 for
    # asymmetric quant); kept in glue to preserve exact reference semantics.
    xf = x.astype(jnp.float32)
    qmax = 2.0 ** num_bits - 1.0
    xmin = jnp.min(xf)
    xmax = jnp.max(xf)
    scale = jnp.maximum((xmax - xmin) / qmax, 1e-8)
    q = jnp.clip(jnp.round((xf - xmin) / scale), 0.0, qmax)
    return (q * scale + xmin).astype(x.dtype)


def im2col(x, kh, kw, stride, pad):
    """x: NHWC -> patches [B*Ho*Wo, kh*kw*C] (patch order: dy, dx, c)."""
    # TODO(synk): 3x3/7x7 convs could avoid the kh*kw x HBM blow-up by folding
    # the taps into the K axis with shifted-window reads (needs a halo-aware
    # manual-DMA conv kernel); kept as XLA glue here.
    B, H, W, C = x.shape
    Ho = (H + 2 * pad - kh) // stride + 1
    Wo = (W + 2 * pad - kw) // stride + 1
    if kh == 1 and kw == 1 and pad == 0:
        patches = x[:, ::stride, ::stride, :]
        return patches.reshape(B * Ho * Wo, C), (B, Ho, Wo)
    xp = jnp.pad(x, ((0, 0), (pad, pad), (pad, pad), (0, 0)))
    cols = [xp[:, dy:dy + stride * Ho:stride, dx:dx + stride * Wo:stride, :]
            for dy in range(kh) for dx in range(kw)]
    patches = jnp.stack(cols, axis=3)  # [B, Ho, Wo, kh*kw, C]
    return patches.reshape(B * Ho * Wo, kh * kw * C), (B, Ho, Wo)


def maxpool2d(x, k=3, stride=2, pad=1):
    """NHWC max pool (small one-shot op; kept as JAX glue)."""
    B, H, W, C = x.shape
    xp = jnp.pad(x, ((0, 0), (pad, pad), (pad, pad), (0, 0)),
                 constant_values=-jnp.inf)
    Ho = (H + 2 * pad - k) // stride + 1
    Wo = (W + 2 * pad - k) // stride + 1
    out = jnp.full((B, Ho, Wo, C), -jnp.inf, dtype=x.dtype)
    for dy in range(k):
        for dx in range(k):
            out = jnp.maximum(
                out, xp[:, dy:dy + stride * Ho:stride, dx:dx + stride * Wo:stride, :]
            )
    return out


# ----------------------------------------------------------------------------
# Layers built on the fused Pallas kernel (prepared weights)
# ----------------------------------------------------------------------------
def qconv_bn(x, lp, stride, pad, relu, residual=None):
    """Prepared QConv2d (fake-quant act) + folded BN (+residual, +ReLU)."""
    kh, kw, cout = lp["kh"], lp["kw"], lp["cout"]
    xq = fake_quant(x, NUM_BITS)
    patches, (B, Ho, Wo) = im2col(xq, kh, kw, stride, pad)
    res_flat = None
    if residual is not None:
        res_flat = residual.reshape(B * Ho * Wo, residual.shape[-1])
    out = fused_matmul(patches, lp["w_mat"], lp["bias"],
                       residual=res_flat, relu=relu)
    M = B * Ho * Wo
    # Lazy slice of the lane-dense kernel output; fuses into the next consumer.
    return out[:M, :cout].reshape(B, Ho, Wo, cout)


def basic_block(x, bp, stride):
    if "down" in bp:
        identity = qconv_bn(x, bp["down"], stride=stride, pad=0, relu=False)
    else:
        identity = x
    out = qconv_bn(x, bp["conv1"], stride=stride, pad=1, relu=True)
    # second conv: bn, +identity, relu all fused in the kernel epilogue
    out = qconv_bn(out, bp["conv2"], stride=1, pad=1, relu=True,
                   residual=identity)
    return out


def resnet_forward(x_nchw, pp):
    x = jnp.transpose(x_nchw, (0, 2, 3, 1)).astype(jnp.bfloat16)  # NCHW -> NHWC
    x = qconv_bn(x, pp["stem"], stride=2, pad=3, relu=True)       # conv1/bn1/relu
    x = maxpool2d(x, 3, 2, 1)                                     # maxpool
    for name in ("layer1", "layer2", "layer3", "layer4"):
        for bp, stride in pp[name]:
            x = basic_block(x, bp, stride)
    x = jnp.mean(x.astype(jnp.float32), axis=(1, 2))              # global avgpool
    # Final FC is tiny (M=2, K=64, N=10): a pallas_call would be pure overhead.
    return jnp.dot(x, pp["fc_w"].T) + pp["fc_b"]


# ----------------------------------------------------------------------------
# One-time weight preparation (hoisted out of the per-forward path)
# ----------------------------------------------------------------------------
def prepare_conv_bn(p):
    """Fake-quant weight, fold BN scale, transpose + lane-dense pad to bf16."""
    w = p["w"]                                    # PyTorch layout [Cout, Cin, kh, kw]
    cout, cin, kh, kw = w.shape
    wq = fake_quant(w, NUM_BITS_WEIGHT)
    scale = p["gamma"] / jnp.sqrt(p["var"] + 1e-5)
    bias = p["beta"] - p["mean"] * scale
    w_mat = jnp.transpose(wq, (2, 3, 1, 0)).reshape(kh * kw * cin, cout)
    w_mat = w_mat * scale[None, :]                # fold BN scale into weight columns
    K, N = kh * kw * cin, cout
    Kp, Np = _round_up(K, _LANE), _round_up(N, _LANE)
    w_mat = jnp.pad(w_mat, ((0, Kp - K), (0, Np - N))).astype(jnp.bfloat16)
    bias = jnp.pad(bias.reshape(1, N).astype(jnp.float32), ((0, 0), (0, Np - N)))
    return dict(w_mat=w_mat, bias=bias, kh=kh, kw=kw, cout=cout)


def prepare_params(params):
    pp = {"stem": prepare_conv_bn(params["stem"]),
          "fc_w": params["fc_w"], "fc_b": params["fc_b"]}
    for name in ("layer1", "layer2", "layer3", "layer4"):
        layer = []
        for bp, stride in params[name]:
            nbp = {"conv1": prepare_conv_bn(bp["conv1"]),
                   "conv2": prepare_conv_bn(bp["conv2"])}
            if "down" in bp:
                nbp["down"] = prepare_conv_bn(bp["down"])
            layer.append((nbp, stride))
        pp[name] = layer
    return pp


# ----------------------------------------------------------------------------
# Deterministic parameter construction
# ----------------------------------------------------------------------------
def init_conv_bn(key, cin, cout, k):
    k1, k2, k3, k4, k5 = jax.random.split(key, 5)
    fan = cin * k * k
    return dict(
        w=jax.random.normal(k1, (cout, cin, k, k), jnp.float32) * math.sqrt(2.0 / fan),
        gamma=1.0 + 0.1 * jax.random.normal(k2, (cout,), jnp.float32),
        beta=0.1 * jax.random.normal(k3, (cout,), jnp.float32),
        mean=0.1 * jax.random.normal(k4, (cout,), jnp.float32),
        var=1.0 + 0.1 * jnp.abs(jax.random.normal(k5, (cout,), jnp.float32)),
    )


def init_params(key, in_ch=3, base=8, num_classes=10):
    keys = iter(jax.random.split(key, 64))
    params = {"stem": init_conv_bn(next(keys), in_ch, base, 7)}
    inplanes = base
    plan = [("layer1", base, 1, 1), ("layer2", base * 2, 1, 2),
            ("layer3", base * 4, 1, 2), ("layer4", base * 8, 1, 2)]
    for name, planes, blocks, stride in plan:
        layer = []
        for b in range(blocks):
            s = stride if b == 0 else 1
            bp = {
                "conv1": init_conv_bn(next(keys), inplanes, planes, 3),
                "conv2": init_conv_bn(next(keys), planes, planes, 3),
            }
            if s != 1 or inplanes != planes:
                bp["down"] = init_conv_bn(next(keys), inplanes, planes, 1)
            layer.append((bp, s))
            inplanes = planes
        params[name] = layer
    kf1, kf2 = jax.random.split(next(keys))
    params["fc_w"] = jax.random.normal(kf1, (num_classes, inplanes), jnp.float32) \
        * math.sqrt(1.0 / inplanes)
    params["fc_b"] = 0.01 * jax.random.normal(kf2, (num_classes,), jnp.float32)
    return params
# TODO(synk): weight-pruning masks from the original "pruning" variant are not modeled.
# TODO(synk): true int8 MXU path (v5e/v6e) not enabled; asymmetric zero-point
#             correction terms and v7x's int-less MXU make bf16 the safe default.


if __name__ == "__main__":
    key = jax.random.PRNGKey(0)
    kx, kp = jax.random.split(key)
    x = jax.random.normal(kx, (2, 3, 32, 32), jnp.float32)   # NCHW like PyTorch
    params = init_params(kp)
    prepared = prepare_params(params)       # weight prep hoisted out of forward
    fwd = jax.jit(lambda inp: resnet_forward(inp, prepared))
    logits = fwd(x)
    jax.block_until_ready(logits)
    assert logits.shape == (2, 10)
    print("KERNEL_OK")
</pallas_src>

<mosaic_0001>
module attributes {stable_mosaic.version = 11 : i64} {
  func.func @_mm_kernel_single_k(%arg0: i32, %arg1: i32, %arg2: memref<256x256xbf16, #tpu.memory_space<vmem>>, %arg3: memref<256x128xbf16, #tpu.memory_space<vmem>>, %arg4: memref<1x128xf32, #tpu.memory_space<vmem>>, %arg5: memref<256x128xbf16, #tpu.memory_space<vmem>>) attributes {dimension_semantics = [#tpu.dimension_semantics<parallel>, #tpu.dimension_semantics<parallel>], iteration_bounds = array<i64: 1, 2>, scalar_prefetch = 0 : i64, scratch_operands = 0 : i64, tpu.core_type = #tpu.core_type<tc>, window_params = [{transform_indices = @transform_0, window_bounds = array<i64: 256, 256>}, {transform_indices = @transform_1, window_bounds = array<i64: 256, 128>}, {transform_indices = @transform_2, window_bounds = array<i64: 1, 128>}, {transform_indices = @transform_3, window_bounds = array<i64: 256, 128>}]} {
    %c0 = arith.constant 0 : index
    %c0_0 = arith.constant 0 : index
    %0 = vector.load %arg2[%c0, %c0_0] : memref<256x256xbf16, #tpu.memory_space<vmem>>, vector<256x256xbf16>
    %c0_1 = arith.constant 0 : index
    %c0_2 = arith.constant 0 : index
    %1 = vector.load %arg3[%c0_1, %c0_2] : memref<256x128xbf16, #tpu.memory_space<vmem>>, vector<256x128xbf16>
    %cst = arith.constant dense<0.000000e+00> : vector<256x128xf32>
    %2 = tpu.matmul %0, %1, %cst {dimension_numbers = #tpu.dot_dimension_numbers<[1], [0], [0], [1], [0, 0, 1, 1], [], []>} : vector<256x256xbf16>, vector<256x128xbf16>, vector<256x128xf32> -> vector<256x128xf32>
    %c0_3 = arith.constant 0 : index
    %c0_4 = arith.constant 0 : index
    %3 = vector.load %arg4[%c0_3, %c0_4] : memref<1x128xf32, #tpu.memory_space<vmem>>, vector<1x128xf32>
    %4 = vector.broadcast %3 : vector<1x128xf32> to vector<256x128xf32>
    %5 = arith.addf %2, %4 : vector<256x128xf32>
    %cst_5 = arith.constant 0.000000e+00 : f32
    %6 = vector.broadcast %cst_5 : f32 to vector<256x128xf32>
    %7 = arith.maximumf %5, %6 : vector<256x128xf32>
    %8 = arith.truncf %7 : vector<256x128xf32> to vector<256x128xbf16>
    %c0_6 = arith.constant 0 : index
    %c0_7 = arith.constant 0 : index
    %9 = vector.load %arg5[%c0_6, %c0_7] : memref<256x128xbf16, #tpu.memory_space<vmem>>, vector<256x128xbf16>
    tpu.vector_store %arg5[%c0_6, %c0_7], %8 {strides = array<i32>} : memref<256x128xbf16, #tpu.memory_space<vmem>>, vector<256x128xbf16>,
    return
  }
  func.func @transform_0(%arg0: i32, %arg1: i32) -> (i32, i32) {
    %c0_i32 = arith.constant 0 : i32
    %c0_i32_0 = arith.constant 0 : i32
    return %arg1, %c0_i32 : i32, i32
  }
  func.func @transform_1(%arg0: i32, %arg1: i32) -> (i32, i32) {
    %c0_i32 = arith.constant 0 : i32
    %c0_i32_0 = arith.constant 0 : i32
    return %c0_i32, %arg0 : i32, i32
  }
  func.func @transform_2(%arg0: i32, %arg1: i32) -> (i32, i32) {
    %c0_i32 = arith.constant 0 : i32
    %c0_i32_0 = arith.constant 0 : i32
    return %c0_i32, %arg0 : i32, i32
  }
  func.func @transform_3(%arg0: i32, %arg1: i32) -> (i32, i32) {
    %c0_i32 = arith.constant 0 : i32
    return %arg1, %arg0 : i32, i32
  }
}

module attributes {stable_mosaic.version = 11 : i64} {
  func.func @_mm_kernel_single_k(%arg0: i32, %arg1: i32, %arg2: memref<64x128xbf16, #tpu.memory_space<vmem>>, %arg3: memref<128x128xbf16, #tpu.memory_space<vmem>>, %arg4: memref<1x128xf32, #tpu.memory_space<vmem>>, %arg5: memref<64x128xbf16, #tpu.memory_space<vmem>>) attributes {dimension_semantics = [#tpu.dimension_semantics<parallel>, #tpu.dimension_semantics<parallel>], iteration_bounds = array<i64: 1, 2>, scalar_prefetch = 0 : i64, scratch_operands = 0 : i64, tpu.core_type = #tpu.core_type<tc>, window_params = [{transform_indices = @transform_0, window_bounds = array<i64: 64, 128>}, {transform_indices = @transform_1, window_bounds = array<i64: 128, 128>}, {transform_indices = @transform_2, window_bounds = array<i64: 1, 128>}, {transform_indices = @transform_3, window_bounds = array<i64: 64, 128>}]} {
    %c0 = arith.constant 0 : index
    %c0_0 = arith.constant 0 : index
    %0 = vector.load %arg2[%c0, %c0_0] : memref<64x128xbf16, #tpu.memory_space<vmem>>, vector<64x128xbf16>
    %c0_1 = arith.constant 0 : index
    %c0_2 = arith.constant 0 : index
    %1 = vector.load %arg3[%c0_1, %c0_2] : memref<128x128xbf16, #tpu.memory_space<vmem>>, vector<128x128xbf16>
    %cst = arith.constant dense<0.000000e+00> : vector<64x128xf32>
    %2 = tpu.matmul %0, %1, %cst {dimension_numbers = #tpu.dot_dimension_numbers<[1], [0], [0], [1], [0, 0, 1, 1], [], []>} : vector<64x128xbf16>, vector<128x128xbf16>, vector<64x128xf32> -> vector<64x128xf32>
    %c0_3 = arith.constant 0 : index
    %c0_4 = arith.constant 0 : index
    %3 = vector.load %arg4[%c0_3, %c0_4] : memref<1x128xf32, #tpu.memory_space<vmem>>, vector<1x128xf32>
    %4 = vector.broadcast %3 : vector<1x128xf32> to vector<64x128xf32>
    %5 = arith.addf %2, %4 : vector<64x128xf32>
    %cst_5 = arith.constant 0.000000e+00 : f32
    %6 = vector.broadcast %cst_5 : f32 to vector<64x128xf32>
    %7 = arith.maximumf %5, %6 : vector<64x128xf32>
    %8 = arith.truncf %7 : vector<64x128xf32> to vector<64x128xbf16>
    %c0_6 = arith.constant 0 : index
    %c0_7 = arith.constant 0 : index
    %9 = vector.load %arg5[%c0_6, %c0_7] : memref<64x128xbf16, #tpu.memory_space<vmem>>, vector<64x128xbf16>
    tpu.vector_store %arg5[%c0_6, %c0_7], %8 {strides = array<i32>} : memref<64x128xbf16, #tpu.memory_space<vmem>>, vector<64x128xbf16>,
    return
  }
  func.func @transform_0(%arg0: i32, %arg1: i32) -> (i32, i32) {
    %c0_i32 = arith.constant 0 : i32
    %c0_i32_0 = arith.constant 0 : i32
    return %arg1, %c0_i32 : i32, i32
  }
  func.func @transform_1(%arg0: i32, %arg1: i32) -> (i32, i32) {
    %c0_i32 = arith.constant 0 : i32
    %c0_i32_0 = arith.constant 0 : i32
    return %c0_i32, %arg0 : i32, i32
  }
  func.func @transform_2(%arg0: i32, %arg1: i32) -> (i32, i32) {
    %c0_i32 = arith.constant 0 : i32
    %c0_i32_0 = arith.constant 0 : i32
    return %c0_i32, %arg0 : i32, i32
  }
  func.func @transform_3(%arg0: i32, %arg1: i32) -> (i32, i32) {
    %c0_i32 = arith.constant 0 : i32
    return %arg1, %arg0 : i32, i32
  }
}

module attributes {stable_mosaic.version = 11 : i64} {
  func.func @_mm_kernel_single_k(%arg0: i32, %arg1: i32, %arg2: memref<64x128xbf16, #tpu.memory_space<vmem>>, %arg3: memref<128x128xbf16, #tpu.memory_space<vmem>>, %arg4: memref<1x128xf32, #tpu.memory_space<vmem>>, %arg5: memref<64x128xbf16, #tpu.memory_space<vmem>>, %arg6: memref<64x128xbf16, #tpu.memory_space<vmem>>) attributes {dimension_semantics = [#tpu.dimension_semantics<parallel>, #tpu.dimension_semantics<parallel>], iteration_bounds = array<i64: 1, 2>, scalar_prefetch = 0 : i64, scratch_operands = 0 : i64, tpu.core_type = #tpu.core_type<tc>, window_params = [{transform_indices = @transform_0, window_bounds = array<i64: 64, 128>}, {transform_indices = @transform_1, window_bounds = array<i64: 128, 128>}, {transform_indices = @transform_2, window_bounds = array<i64: 1, 128>}, {transform_indices = @transform_3, window_bounds = array<i64: 64, 128>}, {transform_indices = @transform_4, window_bounds = array<i64: 64, 128>}]} {
    %c0 = arith.constant 0 : index
    %c0_0 = arith.constant 0 : index
    %0 = vector.load %arg2[%c0, %c0_0] : memref<64x128xbf16, #tpu.memory_space<vmem>>, vector<64x128xbf16>
    %c0_1 = arith.constant 0 : index
    %c0_2 = arith.constant 0 : index
    %1 = vector.load %arg3[%c0_1, %c0_2] : memref<128x128xbf16, #tpu.memory_space<vmem>>, vector<128x128xbf16>
    %cst = arith.constant dense<0.000000e+00> : vector<64x128xf32>
    %2 = tpu.matmul %0, %1, %cst {dimension_numbers = #tpu.dot_dimension_numbers<[1], [0], [0], [1], [0, 0, 1, 1], [], []>} : vector<64x128xbf16>, vector<128x128xbf16>, vector<64x128xf32> -> vector<64x128xf32>
    %c0_3 = arith.constant 0 : index
    %c0_4 = arith.constant 0 : index
    %3 = vector.load %arg4[%c0_3, %c0_4] : memref<1x128xf32, #tpu.memory_space<vmem>>, vector<1x128xf32>
    %4 = vector.broadcast %3 : vector<1x128xf32> to vector<64x128xf32>
    %5 = arith.addf %2, %4 : vector<64x128xf32>
    %c0_5 = arith.constant 0 : index
    %c0_6 = arith.constant 0 : index
    %6 = vector.load %arg5[%c0_5, %c0_6] : memref<64x128xbf16, #tpu.memory_space<vmem>>, vector<64x128xbf16>
    %7 = arith.extf %6 : vector<64x128xbf16> to vector<64x128xf32>
    %8 = arith.addf %5, %7 : vector<64x128xf32>
    %cst_7 = arith.constant 0.000000e+00 : f32
    %9 = vector.broadcast %cst_7 : f32 to vector<64x128xf32>
    %10 = arith.maximumf %8, %9 : vector<64x128xf32>
    %11 = arith.truncf %10 : vector<64x128xf32> to vector<64x128xbf16>
    %c0_8 = arith.constant 0 : index
    %c0_9 = arith.constant 0 : index
    %12 = vector.load %arg6[%c0_8, %c0_9] : memref<64x128xbf16, #tpu.memory_space<vmem>>, vector<64x128xbf16>
    tpu.vector_store %arg6[%c0_8, %c0_9], %11 {strides = array<i32>} : memref<64x128xbf16, #tpu.memory_space<vmem>>, vector<64x128xbf16>,
    return
  }
  func.func @transform_0(%arg0: i32, %arg1: i32) -> (i32, i32) {
    %c0_i32 = arith.constant 0 : i32
    %c0_i32_0 = arith.constant 0 : i32
    return %arg1, %c0_i32 : i32, i32
  }
  func.func @transform_1(%arg0: i32, %arg1: i32) -> (i32, i32) {
    %c0_i32 = arith.constant 0 : i32
    %c0_i32_0 = arith.constant 0 : i32
    return %c0_i32, %arg0 : i32, i32
  }
  func.func @transform_2(%arg0: i32, %arg1: i32) -> (i32, i32) {
    %c0_i32 = arith.constant 0 : i32
    %c0_i32_0 = arith.constant 0 : i32
    return %c0_i32, %arg0 : i32, i32
  }
  func.func @transform_3(%arg0: i32, %arg1: i32) -> (i32, i32) {
    %c0_i32 = arith.constant 0 : i32
    return %arg1, %arg0 : i32, i32
  }
  func.func @transform_4(%arg0: i32, %arg1: i32) -> (i32, i32) {
    %c0_i32 = arith.constant 0 : i32
    return %arg1, %arg0 : i32, i32
  }
}

module attributes {stable_mosaic.version = 11 : i64} {
  func.func @_mm_kernel_single_k(%arg0: i32, %arg1: i32, %arg2: memref<16x128xbf16, #tpu.memory_space<vmem>>, %arg3: memref<128x128xbf16, #tpu.memory_space<vmem>>, %arg4: memref<1x128xf32, #tpu.memory_space<vmem>>, %arg5: memref<16x128xbf16, #tpu.memory_space<vmem>>) attributes {dimension_semantics = [#tpu.dimension_semantics<parallel>, #tpu.dimension_semantics<parallel>], iteration_bounds = array<i64: 1, 2>, scalar_prefetch = 0 : i64, scratch_operands = 0 : i64, tpu.core_type = #tpu.core_type<tc>, window_params = [{transform_indices = @transform_0, window_bounds = array<i64: 16, 128>}, {transform_indices = @transform_1, window_bounds = array<i64: 128, 128>}, {transform_indices = @transform_2, window_bounds = array<i64: 1, 128>}, {transform_indices = @transform_3, window_bounds = array<i64: 16, 128>}]} {
    %c0 = arith.constant 0 : index
    %c0_0 = arith.constant 0 : index
    %0 = vector.load %arg2[%c0, %c0_0] : memref<16x128xbf16, #tpu.memory_space<vmem>>, vector<16x128xbf16>
    %c0_1 = arith.constant 0 : index
    %c0_2 = arith.constant 0 : index
    %1 = vector.load %arg3[%c0_1, %c0_2] : memref<128x128xbf16, #tpu.memory_space<vmem>>, vector<128x128xbf16>
    %cst = arith.constant dense<0.000000e+00> : vector<16x128xf32>
    %2 = tpu.matmul %0, %1, %cst {dimension_numbers = #tpu.dot_dimension_numbers<[1], [0], [0], [1], [0, 0, 1, 1], [], []>} : vector<16x128xbf16>, vector<128x128xbf16>, vector<16x128xf32> -> vector<16x128xf32>
    %c0_3 = arith.constant 0 : index
    %c0_4 = arith.constant 0 : index
    %3 = vector.load %arg4[%c0_3, %c0_4] : memref<1x128xf32, #tpu.memory_space<vmem>>, vector<1x128xf32>
    %4 = vector.broadcast %3 : vector<1x128xf32> to vector<16x128xf32>
    %5 = arith.addf %2, %4 : vector<16x128xf32>
    %cst_5 = arith.constant 0.000000e+00 : f32
    %6 = vector.broadcast %cst_5 : f32 to vector<16x128xf32>
    %7 = arith.maximumf %5, %6 : vector<16x128xf32>
    %8 = arith.truncf %7 : vector<16x128xf32> to vector<16x128xbf16>
    %c0_6 = arith.constant 0 : index
    %c0_7 = arith.constant 0 : index
    %9 = vector.load %arg5[%c0_6, %c0_7] : memref<16x128xbf16, #tpu.memory_space<vmem>>, vector<16x128xbf16>
    tpu.vector_store %arg5[%c0_6, %c0_7], %8 {strides = array<i32>} : memref<16x128xbf16, #tpu.memory_space<vmem>>, vector<16x128xbf16>,
    return
  }
  func.func @transform_0(%arg0: i32, %arg1: i32) -> (i32, i32) {
    %c0_i32 = arith.constant 0 : i32
    %c0_i32_0 = arith.constant 0 : i32
    return %arg1, %c0_i32 : i32, i32
  }
  func.func @transform_1(%arg0: i32, %arg1: i32) -> (i32, i32) {
    %c0_i32 = arith.constant 0 : i32
    %c0_i32_0 = arith.constant 0 : i32
    return %c0_i32, %arg0 : i32, i32
  }
  func.func @transform_2(%arg0: i32, %arg1: i32) -> (i32, i32) {
    %c0_i32 = arith.constant 0 : i32
    %c0_i32_0 = arith.constant 0 : i32
    return %c0_i32, %arg0 : i32, i32
  }
  func.func @transform_3(%arg0: i32, %arg1: i32) -> (i32, i32) {
    %c0_i32 = arith.constant 0 : i32
    return %arg1, %arg0 : i32, i32
  }
}

module attributes {stable_mosaic.version = 11 : i64} {
  func.func @_mm_kernel_single_k(%arg0: i32, %arg1: i32, %arg2: memref<16x256xbf16, #tpu.memory_space<vmem>>, %arg3: memref<256x128xbf16, #tpu.memory_space<vmem>>, %arg4: memref<1x128xf32, #tpu.memory_space<vmem>>, %arg5: memref<16x128xbf16, #tpu.memory_space<vmem>>, %arg6: memref<16x128xbf16, #tpu.memory_space<vmem>>) attributes {dimension_semantics = [#tpu.dimension_semantics<parallel>, #tpu.dimension_semantics<parallel>], iteration_bounds = array<i64: 1, 2>, scalar_prefetch = 0 : i64, scratch_operands = 0 : i64, tpu.core_type = #tpu.core_type<tc>, window_params = [{transform_indices = @transform_0, window_bounds = array<i64: 16, 256>}, {transform_indices = @transform_1, window_bounds = array<i64: 256, 128>}, {transform_indices = @transform_2, window_bounds = array<i64: 1, 128>}, {transform_indices = @transform_3, window_bounds = array<i64: 16, 128>}, {transform_indices = @transform_4, window_bounds = array<i64: 16, 128>}]} {
    %c0 = arith.constant 0 : index
    %c0_0 = arith.constant 0 : index
    %0 = vector.load %arg2[%c0, %c0_0] : memref<16x256xbf16, #tpu.memory_space<vmem>>, vector<16x256xbf16>
    %c0_1 = arith.constant 0 : index
    %c0_2 = arith.constant 0 : index
    %1 = vector.load %arg3[%c0_1, %c0_2] : memref<256x128xbf16, #tpu.memory_space<vmem>>, vector<256x128xbf16>
    %cst = arith.constant dense<0.000000e+00> : vector<16x128xf32>
    %2 = tpu.matmul %0, %1, %cst {dimension_numbers = #tpu.dot_dimension_numbers<[1], [0], [0], [1], [0, 0, 1, 1], [], []>} : vector<16x256xbf16>, vector<256x128xbf16>, vector<16x128xf32> -> vector<16x128xf32>
    %c0_3 = arith.constant 0 : index
    %c0_4 = arith.constant 0 : index
    %3 = vector.load %arg4[%c0_3, %c0_4] : memref<1x128xf32, #tpu.memory_space<vmem>>, vector<1x128xf32>
    %4 = vector.broadcast %3 : vector<1x128xf32> to vector<16x128xf32>
    %5 = arith.addf %2, %4 : vector<16x128xf32>
    %c0_5 = arith.constant 0 : index
    %c0_6 = arith.constant 0 : index
    %6 = vector.load %arg5[%c0_5, %c0_6] : memref<16x128xbf16, #tpu.memory_space<vmem>>, vector<16x128xbf16>
    %7 = arith.extf %6 : vector<16x128xbf16> to vector<16x128xf32>
    %8 = arith.addf %5, %7 : vector<16x128xf32>
    %cst_7 = arith.constant 0.000000e+00 : f32
    %9 = vector.broadcast %cst_7 : f32 to vector<16x128xf32>
    %10 = arith.maximumf %8, %9 : vector<16x128xf32>
    %11 = arith.truncf %10 : vector<16x128xf32> to vector<16x128xbf16>
    %c0_8 = arith.constant 0 : index
    %c0_9 = arith.constant 0 : index
    %12 = vector.load %arg6[%c0_8, %c0_9] : memref<16x128xbf16, #tpu.memory_space<vmem>>, vector<16x128xbf16>
    tpu.vector_store %arg6[%c0_8, %c0_9], %11 {strides = array<i32>} : memref<16x128xbf16, #tpu.memory_space<vmem>>, vector<16x128xbf16>,
    return
  }
  func.func @transform_0(%arg0: i32, %arg1: i32) -> (i32, i32) {
    %c0_i32 = arith.constant 0 : i32
    %c0_i32_0 = arith.constant 0 : i32
    return %arg1, %c0_i32 : i32, i32
  }
  func.func @transform_1(%arg0: i32, %arg1: i32) -> (i32, i32) {
    %c0_i32 = arith.constant 0 : i32
    %c0_i32_0 = arith.constant 0 : i32
    return %c0_i32, %arg0 : i32, i32
  }
  func.func @transform_2(%arg0: i32, %arg1: i32) -> (i32, i32) {
    %c0_i32 = arith.constant 0 : i32
    %c0_i32_0 = arith.constant 0 : i32
    return %c0_i32, %arg0 : i32, i32
  }
  func.func @transform_3(%arg0: i32, %arg1: i32) -> (i32, i32) {
    %c0_i32 = arith.constant 0 : i32
    return %arg1, %arg0 : i32, i32
  }
  func.func @transform_4(%arg0: i32, %arg1: i32) -> (i32, i32) {
    %c0_i32 = arith.constant 0 : i32
    return %arg1, %arg0 : i32, i32
  }
}

module attributes {stable_mosaic.version = 11 : i64} {
  func.func @_mm_kernel_single_k(%arg0: i32, %arg1: i32, %arg2: memref<16x128xbf16, #tpu.memory_space<vmem>>, %arg3: memref<128x128xbf16, #tpu.memory_space<vmem>>, %arg4: memref<1x128xf32, #tpu.memory_space<vmem>>, %arg5: memref<16x128xbf16, #tpu.memory_space<vmem>>) attributes {dimension_semantics = [#tpu.dimension_semantics<parallel>, #tpu.dimension_semantics<parallel>], iteration_bounds = array<i64: 1, 2>, scalar_prefetch = 0 : i64, scratch_operands = 0 : i64, tpu.core_type = #tpu.core_type<tc>, window_params = [{transform_indices = @transform_0, window_bounds = array<i64: 16, 128>}, {transform_indices = @transform_1, window_bounds = array<i64: 128, 128>}, {transform_indices = @transform_2, window_bounds = array<i64: 1, 128>}, {transform_indices = @transform_3, window_bounds = array<i64: 16, 128>}]} {
    %c0 = arith.constant 0 : index
    %c0_0 = arith.constant 0 : index
    %0 = vector.load %arg2[%c0, %c0_0] : memref<16x128xbf16, #tpu.memory_space<vmem>>, vector<16x128xbf16>
    %c0_1 = arith.constant 0 : index
    %c0_2 = arith.constant 0 : index
    %1 = vector.load %arg3[%c0_1, %c0_2] : memref<128x128xbf16, #tpu.memory_space<vmem>>, vector<128x128xbf16>
    %cst = arith.constant dense<0.000000e+00> : vector<16x128xf32>
    %2 = tpu.matmul %0, %1, %cst {dimension_numbers = #tpu.dot_dimension_numbers<[1], [0], [0], [1], [0, 0, 1, 1], [], []>} : vector<16x128xbf16>, vector<128x128xbf16>, vector<16x128xf32> -> vector<16x128xf32>
    %c0_3 = arith.constant 0 : index
    %c0_4 = arith.constant 0 : index
    %3 = vector.load %arg4[%c0_3, %c0_4] : memref<1x128xf32, #tpu.memory_space<vmem>>, vector<1x128xf32>
    %4 = vector.broadcast %3 : vector<1x128xf32> to vector<16x128xf32>
    %5 = arith.addf %2, %4 : vector<16x128xf32>
    %6 = arith.truncf %5 : vector<16x128xf32> to vector<16x128xbf16>
    %c0_5 = arith.constant 0 : index
    %c0_6 = arith.constant 0 : index
    %7 = vector.load %arg5[%c0_5, %c0_6] : memref<16x128xbf16, #tpu.memory_space<vmem>>, vector<16x128xbf16>
    tpu.vector_store %arg5[%c0_5, %c0_6], %6 {strides = array<i32>} : memref<16x128xbf16, #tpu.memory_space<vmem>>, vector<16x128xbf16>,
    return
  }
  func.func @transform_0(%arg0: i32, %arg1: i32) -> (i32, i32) {
    %c0_i32 = arith.constant 0 : i32
    %c0_i32_0 = arith.constant 0 : i32
    return %arg1, %c0_i32 : i32, i32
  }
  func.func @transform_1(%arg0: i32, %arg1: i32) -> (i32, i32) {
    %c0_i32 = arith.constant 0 : i32
    %c0_i32_0 = arith.constant 0 : i32
    return %c0_i32, %arg0 : i32, i32
  }
  func.func @transform_2(%arg0: i32, %arg1: i32) -> (i32, i32) {
    %c0_i32 = arith.constant 0 : i32
    %c0_i32_0 = arith.constant 0 : i32
    return %c0_i32, %arg0 : i32, i32
  }
  func.func @transform_3(%arg0: i32, %arg1: i32) -> (i32, i32) {
    %c0_i32 = arith.constant 0 : i32
    return %arg1, %arg0 : i32, i32
  }
}

module attributes {stable_mosaic.version = 11 : i64} {
  func.func @_mm_kernel_single_k(%arg0: i32, %arg1: i32, %arg2: memref<16x256xbf16, #tpu.memory_space<vmem>>, %arg3: memref<256x128xbf16, #tpu.memory_space<vmem>>, %arg4: memref<1x128xf32, #tpu.memory_space<vmem>>, %arg5: memref<16x128xbf16, #tpu.memory_space<vmem>>) attributes {dimension_semantics = [#tpu.dimension_semantics<parallel>, #tpu.dimension_semantics<parallel>], iteration_bounds = array<i64: 1, 1>, scalar_prefetch = 0 : i64, scratch_operands = 0 : i64, tpu.core_type = #tpu.core_type<tc>, window_params = [{transform_indices = @transform_0, window_bounds = array<i64: 16, 256>}, {transform_indices = @transform_1, window_bounds = array<i64: 256, 128>}, {transform_indices = @transform_2, window_bounds = array<i64: 1, 128>}, {transform_indices = @transform_3, window_bounds = array<i64: 16, 128>}]} {
    %c0 = arith.constant 0 : index
    %c0_0 = arith.constant 0 : index
    %0 = vector.load %arg2[%c0, %c0_0] : memref<16x256xbf16, #tpu.memory_space<vmem>>, vector<16x256xbf16>
    %c0_1 = arith.constant 0 : index
    %c0_2 = arith.constant 0 : index
    %1 = vector.load %arg3[%c0_1, %c0_2] : memref<256x128xbf16, #tpu.memory_space<vmem>>, vector<256x128xbf16>
    %cst = arith.constant dense<0.000000e+00> : vector<16x128xf32>
    %2 = tpu.matmul %0, %1, %cst {dimension_numbers = #tpu.dot_dimension_numbers<[1], [0], [0], [1], [0, 0, 1, 1], [], []>} : vector<16x256xbf16>, vector<256x128xbf16>, vector<16x128xf32> -> vector<16x128xf32>
    %c0_3 = arith.constant 0 : index
    %c0_4 = arith.constant 0 : index
    %3 = vector.load %arg4[%c0_3, %c0_4] : memref<1x128xf32, #tpu.memory_space<vmem>>, vector<1x128xf32>
    %4 = vector.broadcast %3 : vector<1x128xf32> to vector<16x128xf32>
    %5 = arith.addf %2, %4 : vector<16x128xf32>
    %cst_5 = arith.constant 0.000000e+00 : f32
    %6 = vector.broadcast %cst_5 : f32 to vector<16x128xf32>
    %7 = arith.maximumf %5, %6 : vector<16x128xf32>
    %8 = arith.truncf %7 : vector<16x128xf32> to vector<16x128xbf16>
    %c0_6 = arith.constant 0 : index
    %c0_7 = arith.constant 0 : index
    %9 = vector.load %arg5[%c0_6, %c0_7] : memref<16x128xbf16, #tpu.memory_space<vmem>>, vector<16x128xbf16>
    tpu.vector_store %arg5[%c0_6, %c0_7], %8 {strides = array<i32>} : memref<16x128xbf16, #tpu.memory_space<vmem>>, vector<16x128xbf16>,
    return
  }
  func.func @transform_0(%arg0: i32, %arg1: i32) -> (i32, i32) {
    %c0_i32 = arith.constant 0 : i32
    %c0_i32_0 = arith.constant 0 : i32
    return %arg1, %c0_i32 : i32, i32
  }
  func.func @transform_1(%arg0: i32, %arg1: i32) -> (i32, i32) {
    %c0_i32 = arith.constant 0 : i32
    %c0_i32_0 = arith.constant 0 : i32
    return %c0_i32, %arg0 : i32, i32
  }
  func.func @transform_2(%arg0: i32, %arg1: i32) -> (i32, i32) {
    %c0_i32 = arith.constant 0 : i32
    %c0_i32_0 = arith.constant 0 : i32
    return %c0_i32, %arg0 : i32, i32
  }
  func.func @transform_3(%arg0: i32, %arg1: i32) -> (i32, i32) {
    %c0_i32 = arith.constant 0 : i32
    return %arg1, %arg0 : i32, i32
  }
}

module attributes {stable_mosaic.version = 11 : i64} {
  func.func @_mm_kernel_single_k(%arg0: i32, %arg1: i32, %arg2: memref<16x128xbf16, #tpu.memory_space<vmem>>, %arg3: memref<128x128xbf16, #tpu.memory_space<vmem>>, %arg4: memref<1x128xf32, #tpu.memory_space<vmem>>, %arg5: memref<16x128xbf16, #tpu.memory_space<vmem>>) attributes {dimension_semantics = [#tpu.dimension_semantics<parallel>, #tpu.dimension_semantics<parallel>], iteration_bounds = array<i64: 1, 1>, scalar_prefetch = 0 : i64, scratch_operands = 0 : i64, tpu.core_type = #tpu.core_type<tc>, window_params = [{transform_indices = @transform_0, window_bounds = array<i64: 16, 128>}, {transform_indices = @transform_1, window_bounds = array<i64: 128, 128>}, {transform_indices = @transform_2, window_bounds = array<i64: 1, 128>}, {transform_indices = @transform_3, window_bounds = array<i64: 16, 128>}]} {
    %c0 = arith.constant 0 : index
    %c0_0 = arith.constant 0 : index
    %0 = vector.load %arg2[%c0, %c0_0] : memref<16x128xbf16, #tpu.memory_space<vmem>>, vector<16x128xbf16>
    %c0_1 = arith.constant 0 : index
    %c0_2 = arith.constant 0 : index
    %1 = vector.load %arg3[%c0_1, %c0_2] : memref<128x128xbf16, #tpu.memory_space<vmem>>, vector<128x128xbf16>
    %cst = arith.constant dense<0.000000e+00> : vector<16x128xf32>
    %2 = tpu.matmul %0, %1, %cst {dimension_numbers = #tpu.dot_dimension_numbers<[1], [0], [0], [1], [0, 0, 1, 1], [], []>} : vector<16x128xbf16>, vector<128x128xbf16>, vector<16x128xf32> -> vector<16x128xf32>
    %c0_3 = arith.constant 0 : index
    %c0_4 = arith.constant 0 : index
    %3 = vector.load %arg4[%c0_3, %c0_4] : memref<1x128xf32, #tpu.memory_space<vmem>>, vector<1x128xf32>
    %4 = vector.broadcast %3 : vector<1x128xf32> to vector<16x128xf32>
    %5 = arith.addf %2, %4 : vector<16x128xf32>
    %6 = arith.truncf %5 : vector<16x128xf32> to vector<16x128xbf16>
    %c0_5 = arith.constant 0 : index
    %c0_6 = arith.constant 0 : index
    %7 = vector.load %arg5[%c0_5, %c0_6] : memref<16x128xbf16, #tpu.memory_space<vmem>>, vector<16x128xbf16>
    tpu.vector_store %arg5[%c0_5, %c0_6], %6 {strides = array<i32>} : memref<16x128xbf16, #tpu.memory_space<vmem>>, vector<16x128xbf16>,
    return
  }
  func.func @transform_0(%arg0: i32, %arg1: i32) -> (i32, i32) {
    %c0_i32 = arith.constant 0 : i32
    %c0_i32_0 = arith.constant 0 : i32
    return %arg1, %c0_i32 : i32, i32
  }
  func.func @transform_1(%arg0: i32, %arg1: i32) -> (i32, i32) {
    %c0_i32 = arith.constant 0 : i32
    %c0_i32_0 = arith.constant 0 : i32
    return %c0_i32, %arg0 : i32, i32
  }
  func.func @transform_2(%arg0: i32, %arg1: i32) -> (i32, i32) {
    %c0_i32 = arith.constant 0 : i32
    %c0_i32_0 = arith.constant 0 : i32
    return %c0_i32, %arg0 : i32, i32
  }
  func.func @transform_3(%arg0: i32, %arg1: i32) -> (i32, i32) {
    %c0_i32 = arith.constant 0 : i32
    return %arg1, %arg0 : i32, i32
  }
}

module attributes {stable_mosaic.version = 11 : i64} {
  func.func @_mm_kernel_single_k(%arg0: i32, %arg1: i32, %arg2: memref<16x384xbf16, #tpu.memory_space<vmem>>, %arg3: memref<384x128xbf16, #tpu.memory_space<vmem>>, %arg4: memref<1x128xf32, #tpu.memory_space<vmem>>, %arg5: memref<16x128xbf16, #tpu.memory_space<vmem>>, %arg6: memref<16x128xbf16, #tpu.memory_space<vmem>>) attributes {dimension_semantics = [#tpu.dimension_semantics<parallel>, #tpu.dimension_semantics<parallel>], iteration_bounds = array<i64: 1, 1>, scalar_prefetch = 0 : i64, scratch_operands = 0 : i64, tpu.core_type = #tpu.core_type<tc>, window_params = [{transform_indices = @transform_0, window_bounds = array<i64: 16, 384>}, {transform_indices = @transform_1, window_bounds = array<i64: 384, 128>}, {transform_indices = @transform_2, window_bounds = array<i64: 1, 128>}, {transform_indices = @transform_3, window_bounds = array<i64: 16, 128>}, {transform_indices = @transform_4, window_bounds = array<i64: 16, 128>}]} {
    %c0 = arith.constant 0 : index
    %c0_0 = arith.constant 0 : index
    %0 = vector.load %arg2[%c0, %c0_0] : memref<16x384xbf16, #tpu.memory_space<vmem>>, vector<16x384xbf16>
    %c0_1 = arith.constant 0 : index
    %c0_2 = arith.constant 0 : index
    %1 = vector.load %arg3[%c0_1, %c0_2] : memref<384x128xbf16, #tpu.memory_space<vmem>>, vector<384x128xbf16>
    %cst = arith.constant dense<0.000000e+00> : vector<16x128xf32>
    %2 = tpu.matmul %0, %1, %cst {dimension_numbers = #tpu.dot_dimension_numbers<[1], [0], [0], [1], [0, 0, 1, 1], [], []>} : vector<16x384xbf16>, vector<384x128xbf16>, vector<16x128xf32> -> vector<16x128xf32>
    %c0_3 = arith.constant 0 : index
    %c0_4 = arith.constant 0 : index
    %3 = vector.load %arg4[%c0_3, %c0_4] : memref<1x128xf32, #tpu.memory_space<vmem>>, vector<1x128xf32>
    %4 = vector.broadcast %3 : vector<1x128xf32> to vector<16x128xf32>
    %5 = arith.addf %2, %4 : vector<16x128xf32>
    %c0_5 = arith.constant 0 : index
    %c0_6 = arith.constant 0 : index
    %6 = vector.load %arg5[%c0_5, %c0_6] : memref<16x128xbf16, #tpu.memory_space<vmem>>, vector<16x128xbf16>
    %7 = arith.extf %6 : vector<16x128xbf16> to vector<16x128xf32>
    %8 = arith.addf %5, %7 : vector<16x128xf32>
    %cst_7 = arith.constant 0.000000e+00 : f32
    %9 = vector.broadcast %cst_7 : f32 to vector<16x128xf32>
    %10 = arith.maximumf %8, %9 : vector<16x128xf32>
    %11 = arith.truncf %10 : vector<16x128xf32> to vector<16x128xbf16>
    %c0_8 = arith.constant 0 : index
    %c0_9 = arith.constant 0 : index
    %12 = vector.load %arg6[%c0_8, %c0_9] : memref<16x128xbf16, #tpu.memory_space<vmem>>, vector<16x128xbf16>
    tpu.vector_store %arg6[%c0_8, %c0_9], %11 {strides = array<i32>} : memref<16x128xbf16, #tpu.memory_space<vmem>>, vector<16x128xbf16>,
    return
  }
  func.func @transform_0(%arg0: i32, %arg1: i32) -> (i32, i32) {
    %c0_i32 = arith.constant 0 : i32
    %c0_i32_0 = arith.constant 0 : i32
    return %arg1, %c0_i32 : i32, i32
  }
  func.func @transform_1(%arg0: i32, %arg1: i32) -> (i32, i32) {
    %c0_i32 = arith.constant 0 : i32
    %c0_i32_0 = arith.constant 0 : i32
    return %c0_i32, %arg0 : i32, i32
  }
  func.func @transform_2(%arg0: i32, %arg1: i32) -> (i32, i32) {
    %c0_i32 = arith.constant 0 : i32
    %c0_i32_0 = arith.constant 0 : i32
    return %c0_i32, %arg0 : i32, i32
  }
  func.func @transform_3(%arg0: i32, %arg1: i32) -> (i32, i32) {
    %c0_i32 = arith.constant 0 : i32
    return %arg1, %arg0 : i32, i32
  }
  func.func @transform_4(%arg0: i32, %arg1: i32) -> (i32, i32) {
    %c0_i32 = arith.constant 0 : i32
    return %arg1, %arg0 : i32, i32
  }
}

module attributes {stable_mosaic.version = 11 : i64} {
  func.func @_mm_kernel_single_k(%arg0: i32, %arg1: i32, %arg2: memref<16x384xbf16, #tpu.memory_space<vmem>>, %arg3: memref<384x128xbf16, #tpu.memory_space<vmem>>, %arg4: memref<1x128xf32, #tpu.memory_space<vmem>>, %arg5: memref<16x128xbf16, #tpu.memory_space<vmem>>) attributes {dimension_semantics = [#tpu.dimension_semantics<parallel>, #tpu.dimension_semantics<parallel>], iteration_bounds = array<i64: 1, 1>, scalar_prefetch = 0 : i64, scratch_operands = 0 : i64, tpu.core_type = #tpu.core_type<tc>, window_params = [{transform_indices = @transform_0, window_bounds = array<i64: 16, 384>}, {transform_indices = @transform_1, window_bounds = array<i64: 384, 128>}, {transform_indices = @transform_2, window_bounds = array<i64: 1, 128>}, {transform_indices = @transform_3, window_bounds = array<i64: 16, 128>}]} {
    %c0 = arith.constant 0 : index
    %c0_0 = arith.constant 0 : index
    %0 = vector.load %arg2[%c0, %c0_0] : memref<16x384xbf16, #tpu.memory_space<vmem>>, vector<16x384xbf16>
    %c0_1 = arith.constant 0 : index
    %c0_2 = arith.constant 0 : index
    %1 = vector.load %arg3[%c0_1, %c0_2] : memref<384x128xbf16, #tpu.memory_space<vmem>>, vector<384x128xbf16>
    %cst = arith.constant dense<0.000000e+00> : vector<16x128xf32>
    %2 = tpu.matmul %0, %1, %cst {dimension_numbers = #tpu.dot_dimension_numbers<[1], [0], [0], [1], [0, 0, 1, 1], [], []>} : vector<16x384xbf16>, vector<384x128xbf16>, vector<16x128xf32> -> vector<16x128xf32>
    %c0_3 = arith.constant 0 : index
    %c0_4 = arith.constant 0 : index
    %3 = vector.load %arg4[%c0_3, %c0_4] : memref<1x128xf32, #tpu.memory_space<vmem>>, vector<1x128xf32>
    %4 = vector.broadcast %3 : vector<1x128xf32> to vector<16x128xf32>
    %5 = arith.addf %2, %4 : vector<16x128xf32>
    %cst_5 = arith.constant 0.000000e+00 : f32
    %6 = vector.broadcast %cst_5 : f32 to vector<16x128xf32>
    %7 = arith.maximumf %5, %6 : vector<16x128xf32>
    %8 = arith.truncf %7 : vector<16x128xf32> to vector<16x128xbf16>
    %c0_6 = arith.constant 0 : index
    %c0_7 = arith.constant 0 : index
    %9 = vector.load %arg5[%c0_6, %c0_7] : memref<16x128xbf16, #tpu.memory_space<vmem>>, vector<16x128xbf16>
    tpu.vector_store %arg5[%c0_6, %c0_7], %8 {strides = array<i32>} : memref<16x128xbf16, #tpu.memory_space<vmem>>, vector<16x128xbf16>,
    return
  }
  func.func @transform_0(%arg0: i32, %arg1: i32) -> (i32, i32) {
    %c0_i32 = arith.constant 0 : i32
    %c0_i32_0 = arith.constant 0 : i32
    return %arg1, %c0_i32 : i32, i32
  }
  func.func @transform_1(%arg0: i32, %arg1: i32) -> (i32, i32) {
    %c0_i32 = arith.constant 0 : i32
    %c0_i32_0 = arith.constant 0 : i32
    return %c0_i32, %arg0 : i32, i32
  }
  func.func @transform_2(%arg0: i32, %arg1: i32) -> (i32, i32) {
    %c0_i32 = arith.constant 0 : i32
    %c0_i32_0 = arith.constant 0 : i32
    return %c0_i32, %arg0 : i32, i32
  }
  func.func @transform_3(%arg0: i32, %arg1: i32) -> (i32, i32) {
    %c0_i32 = arith.constant 0 : i32
    return %arg1, %arg0 : i32, i32
  }
}

module attributes {stable_mosaic.version = 11 : i64} {
  func.func @_mm_kernel_single_k(%arg0: i32, %arg1: i32, %arg2: memref<16x640xbf16, #tpu.memory_space<vmem>>, %arg3: memref<640x128xbf16, #tpu.memory_space<vmem>>, %arg4: memref<1x128xf32, #tpu.memory_space<vmem>>, %arg5: memref<16x128xbf16, #tpu.memory_space<vmem>>, %arg6: memref<16x128xbf16, #tpu.memory_space<vmem>>) attributes {dimension_semantics = [#tpu.dimension_semantics<parallel>, #tpu.dimension_semantics<parallel>], iteration_bounds = array<i64: 1, 1>, scalar_prefetch = 0 : i64, scratch_operands = 0 : i64, tpu.core_type = #tpu.core_type<tc>, window_params = [{transform_indices = @transform_0, window_bounds = array<i64: 16, 640>}, {transform_indices = @transform_1, window_bounds = array<i64: 640, 128>}, {transform_indices = @transform_2, window_bounds = array<i64: 1, 128>}, {transform_indices = @transform_3, window_bounds = array<i64: 16, 128>}, {transform_indices = @transform_4, window_bounds = array<i64: 16, 128>}]} {
    %c0 = arith.constant 0 : index
    %c0_0 = arith.constant 0 : index
    %0 = vector.load %arg2[%c0, %c0_0] : memref<16x640xbf16, #tpu.memory_space<vmem>>, vector<16x640xbf16>
    %c0_1 = arith.constant 0 : index
    %c0_2 = arith.constant 0 : index
    %1 = vector.load %arg3[%c0_1, %c0_2] : memref<640x128xbf16, #tpu.memory_space<vmem>>, vector<640x128xbf16>
    %cst = arith.constant dense<0.000000e+00> : vector<16x128xf32>
    %2 = tpu.matmul %0, %1, %cst {dimension_numbers = #tpu.dot_dimension_numbers<[1], [0], [0], [1], [0, 0, 1, 1], [], []>} : vector<16x640xbf16>, vector<640x128xbf16>, vector<16x128xf32> -> vector<16x128xf32>
    %c0_3 = arith.constant 0 : index
    %c0_4 = arith.constant 0 : index
    %3 = vector.load %arg4[%c0_3, %c0_4] : memref<1x128xf32, #tpu.memory_space<vmem>>, vector<1x128xf32>
    %4 = vector.broadcast %3 : vector<1x128xf32> to vector<16x128xf32>
    %5 = arith.addf %2, %4 : vector<16x128xf32>
    %c0_5 = arith.constant 0 : index
    %c0_6 = arith.constant 0 : index
    %6 = vector.load %arg5[%c0_5, %c0_6] : memref<16x128xbf16, #tpu.memory_space<vmem>>, vector<16x128xbf16>
    %7 = arith.extf %6 : vector<16x128xbf16> to vector<16x128xf32>
    %8 = arith.addf %5, %7 : vector<16x128xf32>
    %cst_7 = arith.constant 0.000000e+00 : f32
    %9 = vector.broadcast %cst_7 : f32 to vector<16x128xf32>
    %10 = arith.maximumf %8, %9 : vector<16x128xf32>
    %11 = arith.truncf %10 : vector<16x128xf32> to vector<16x128xbf16>
    %c0_8 = arith.constant 0 : index
    %c0_9 = arith.constant 0 : index
    %12 = vector.load %arg6[%c0_8, %c0_9] : memref<16x128xbf16, #tpu.memory_space<vmem>>, vector<16x128xbf16>
    tpu.vector_store %arg6[%c0_8, %c0_9], %11 {strides = array<i32>} : memref<16x128xbf16, #tpu.memory_space<vmem>>, vector<16x128xbf16>,
    return
  }
  func.func @transform_0(%arg0: i32, %arg1: i32) -> (i32, i32) {
    %c0_i32 = arith.constant 0 : i32
    %c0_i32_0 = arith.constant 0 : i32
    return %arg1, %c0_i32 : i32, i32
  }
  func.func @transform_1(%arg0: i32, %arg1: i32) -> (i32, i32) {
    %c0_i32 = arith.constant 0 : i32
    %c0_i32_0 = arith.constant 0 : i32
    return %c0_i32, %arg0 : i32, i32
  }
  func.func @transform_2(%arg0: i32, %arg1: i32) -> (i32, i32) {
    %c0_i32 = arith.constant 0 : i32
    %c0_i32_0 = arith.constant 0 : i32
    return %c0_i32, %arg0 : i32, i32
  }
  func.func @transform_3(%arg0: i32, %arg1: i32) -> (i32, i32) {
    %c0_i32 = arith.constant 0 : i32
    return %arg1, %arg0 : i32, i32
  }
  func.func @transform_4(%arg0: i32, %arg1: i32) -> (i32, i32) {
    %c0_i32 = arith.constant 0 : i32
    return %arg1, %arg0 : i32, i32
  }
}

</mosaic_0001>

<llo_original>
// kernel: _lambda_.12
$region0: #{_lambda_.12}
  #allocation0 [shape = 'u32[]', space=smem, size = 0x4, offset = 0x4, fixed_abs, tag = 'smem constant byte address 0x4 - core index']
  #allocation1 [shape = 'u32[72,128]{1,0:T(1,128)}', space=vmem, size = 0x9000, scoped, tag = 'internal scratch']
  %s0 = inlined_call_operand.vmem [shape: bf16[512,256], index: 0, kind: input, shape index: {}]
  %s1 = inlined_call_operand.vmem [shape: bf16[256,128], index: 1, kind: input, shape index: {}]
  %s2 = inlined_call_operand.vmem [shape: f32[1,128], index: 2, kind: input, shape index: {}]
  %s3 = inlined_call_operand.vmem [shape: bf16[512,128], index: 3, kind: output, shape index: {}]
  %s4 = sld [smem:[#allocation0]]
  $region45: #{_lambda_.12} parent=0
    _
  %s6 = ssub.s32 1, %s4
  %s7 = scalar_select 0, %s6, %s4
  loop: start=0, step=1, limit=4
  $region2: #{_lambda_.12} parent=0 // loop_pre_header
    _
  $region3: #{_lambda_.12} parent=0 // loop_header
    %s9 = sphi 0, %s13
    %p10 = scmp.ge.s32.totalorder %s9, 4
    %s16 = sphi 0, %s28
    %s17 = sphi 0, %s24
    %s18 = sphi 0, %s16
    %s19 = sphi 0, %s17
    %s20 = sphi 0, %s18
    %s21 = sphi 0, %s19
    %s31 = sphi 0, %s33
    %s34 = sphi 0, %s31
    %s35 = sphi 0, %s34
    %s51 = sphi 0, %s35
    %s57 = sphi 0, %s59
    %s60 = sphi 0, %s57
    %s61 = sphi 0, %s60
    %s77 = sphi 0, %s61
    %s83 = sphi 0, %s85
    %s86 = sphi 0, %s83
    %s87 = sphi 0, %s86
    %s103 = sphi 0, %s87
    %s111 = sphi 0, %s113
    %s114 = sphi 0, %s111
    %s115 = sphi 0, %s114
    %s131 = sphi 0, %s115
  $region4: #{_lambda_.12} parent=0 // loop_header_branch
    %12 = sbr.rel (%p10) target = $region8
  $region5: #{_lambda_.12} parent=0 // loop_body
    %s14 = ssub.s32 %s9, 1
    %s15 = ssub.s32 %s9, 2
    %s22 = sadd.s32 1, %s17
    %p23 = scmp.ge.s32.totalorder %s22, 2
    %s24 = scalar_select %p23, 0, %s22
    %s25 = sadd.s32 1, %s16
    %s26 = scalar_select %p23, %s25, %s16
    %p27 = scmp.ge.s32.totalorder %s26, 1
    %s28 = scalar_select %p27, 0, %s26
    %s29 = ssub.s32 %s17, %s24
    %p30 = scmp.eq.s32.totalorder %s29, 0
    %s32 = sadd.s32 %s31, 1
    %s33 = scalar_select %p30, %s31, %s32
    %p36 = pneg %p30
    %p37 = scmp.eq.s32.totalorder %s9, 1
    %p38 = por %p36, %p37
    %p39 = scmp.ne.s32.totalorder %s31, %s34
    %p40 = scmp.eq.s32.totalorder %s9, 0
    %p41 = por %p39, %p40
    %p42 = scmp.ne.s32.totalorder %s31, %s34
    %p43 = scmp.eq.s32.totalorder %s14, 1
    %p44 = por %p42, %p43
    %p45 = scmp.ne.s32.totalorder %s34, %s35
    %p46 = scmp.eq.s32.totalorder %s14, 0
    %p47 = por %p45, %p46
    %p48 = scmp.ne.s32.totalorder %s34, %s35
    %p49 = scmp.eq.s32.totalorder %s15, 1
    %p50 = por %p48, %p49
    %p52 = scmp.ne.s32.totalorder %s35, %s51
    %p53 = scmp.eq.s32.totalorder %s15, 0
    %p54 = por %p52, %p53
    %s55 = ssub.s32 %s16, %s28
    %p56 = scmp.eq.s32.totalorder %s55, 0
    %s58 = sadd.s32 %s57, 1
    %s59 = scalar_select %p56, %s57, %s58
    %p62 = pneg %p56
    %p63 = scmp.eq.s32.totalorder %s9, 1
    %p64 = por %p62, %p63
    %p65 = scmp.ne.s32.totalorder %s57, %s60
    %p66 = scmp.eq.s32.totalorder %s9, 0
    %p67 = por %p65, %p66
    %p68 = scmp.ne.s32.totalorder %s57, %s60
    %p69 = scmp.eq.s32.totalorder %s14, 1
    %p70 = por %p68, %p69
    %p71 = scmp.ne.s32.totalorder %s60, %s61
    %p72 = scmp.eq.s32.totalorder %s14, 0
    %p73 = por %p71, %p72
    %p74 = scmp.ne.s32.totalorder %s60, %s61
    %p75 = scmp.eq.s32.totalorder %s15, 1
    %p76 = por %p74, %p75
    %p78 = scmp.ne.s32.totalorder %s61, %s77
    %p79 = scmp.eq.s32.totalorder %s15, 0
    %p80 = por %p78, %p79
    %s81 = ssub.s32 %s16, %s28
    %p82 = scmp.eq.s32.totalorder %s81, 0
    %s84 = sadd.s32 %s83, 1
    %s85 = scalar_select %p82, %s83, %s84
    %p88 = pneg %p82
    %p89 = scmp.eq.s32.totalorder %s9, 1
    %p90 = por %p88, %p89
    %p91 = scmp.ne.s32.totalorder %s83, %s86
    %p92 = scmp.eq.s32.totalorder %s9, 0
    %p93 = por %p91, %p92
    %p94 = scmp.ne.s32.totalorder %s83, %s86
    %p95 = scmp.eq.s32.totalorder %s14, 1
    %p96 = por %p94, %p95
    %p97 = scmp.ne.s32.totalorder %s86, %s87
    %p98 = scmp.eq.s32.totalorder %s14, 0
    %p99 = por %p97, %p98
    %p100 = scmp.ne.s32.totalorder %s86, %s87
    %p101 = scmp.eq.s32.totalorder %s15, 1
    %p102 = por %p100, %p101
    %p104 = scmp.ne.s32.totalorder %s87, %s103
    %p105 = scmp.eq.s32.totalorder %s15, 0
    %p106 = por %p104, %p105
    %s107 = ssub.s32 %s17, %s24
    %s108 = ssub.s32 %s16, %s28
    %s109 = sor.u32 %s107, %s108
    %p110 = scmp.eq.s32.totalorder %s109, 0
    %s112 = sadd.s32 %s111, 1
    %s113 = scalar_select %p110, %s111, %s112
    %p116 = pneg %p110
    %p117 = scmp.eq.s32.totalorder %s9, 1
    %p118 = por %p116, %p117
    %p119 = scmp.ne.s32.totalorder %s111, %s114
    %p120 = scmp.eq.s32.totalorder %s9, 0
    %p121 = por %p119, %p120
    %p122 = scmp.ne.s32.totalorder %s111, %s114
    %p123 = scmp.eq.s32.totalorder %s14, 1
    %p124 = por %p122, %p123
    %p125 = scmp.ne.s32.totalorder %s114, %s115
    %p126 = scmp.eq.s32.totalorder %s14, 0
    %p127 = por %p125, %p126
    %p128 = scmp.ne.s32.totalorder %s114, %s115
    %p129 = scmp.eq.s32.totalorder %s15, 1
    %p130 = por %p128, %p129
    %p132 = scmp.ne.s32.totalorder %s115, %s131
    %p133 = scmp.eq.s32.totalorder %s15, 0
    %p134 = por %p132, %p133
    %p135 = scmp.le.s32.totalorder 1, %s9
    %p136 = scmp.lt.s32.totalorder %s9, 3
    %p137 = pnand %p135, %p136
    %p138 = pneg %p137
    // Predicated region
    $region9: #{_lambda_.12} parent=5 // pred_check
      _
    $region10: #{_lambda_.12} parent=5 // pred_check_branch
      %140 = sbr.rel (%p137) target = $region12
    $region11: #{_lambda_.12} parent=5 // pred_region
      %s141 = ssub.s32 %s9, 1
      // Predicated region
      $region13: #{_lambda_.12} parent=11 // pred_check
        %p142 = pneg %p73
      $region14: #{_lambda_.12} parent=11 // pred_check_branch
        %144 = sbr.rel (%p142) target = $region16
      $region15: #{_lambda_.12} parent=11 // pred_region
        %p145 = scmp.lt.s32.totalorder %s18, 0
        %s146 = scalar_select %p145, %s18, 0
        %s147 = smul.addr %s146, 4
        %s148 = scalar_lea.vmem %s1, %s147
      $region16: #{_lambda_.12} parent=11 // pred_fallthru
        _
      // Predicated region
      $region17: #{_lambda_.12} parent=11 // pred_check
        %p149 = pneg %p99
      $region18: #{_lambda_.12} parent=11 // pred_check_branch
        %151 = sbr.rel (%p149) target = $region20
      $region19: #{_lambda_.12} parent=11 // pred_region
        %p152 = scmp.lt.s32.totalorder %s18, 0
        %s153 = scalar_select %p152, %s18, 0
        %s154 = scalar_lea.vmem %s2, %s153
      $region20: #{_lambda_.12} parent=11 // pred_fallthru
        _
    $region12: #{_lambda_.12} parent=5 // pred_fallthru
      _
    %p155 = scmp.lt.s32.totalorder %s9, 2
    // Predicated region
    $region21: #{_lambda_.12} parent=5 // pred_check
      %p156 = pneg %p155
    $region22: #{_lambda_.12} parent=5 // pred_check_branch
      %158 = sbr.rel (%p156) target = $region24
    $region23: #{_lambda_.12} parent=5 // pred_region
      // Predicated region
      $region25: #{_lambda_.12} parent=23 // pred_check
        %p159 = pneg %p41
      $region26: #{_lambda_.12} parent=23 // pred_check_branch
        %161 = sbr.rel (%p159) target = $region28
      $region27: #{_lambda_.12} parent=23 // pred_region
        %s162 = smul.u32 32, %s17
        %p163 = scmp.lt.s32.totalorder %s162, 63
        %s164 = scalar_select %p163, %s162, 63
        %s165 = smul.addr %s164, 2
        %s166 = smul.addr %s165, 4
        %s167 = scalar_lea.vmem %s0, %s166
        %s168 = smul.u32 32, %s17
      $region28: #{_lambda_.12} parent=23 // pred_fallthru
        _
    $region24: #{_lambda_.12} parent=5 // pred_fallthru
      _
    %p169 = scmp.le.s32.totalorder 1, %s9
    %p170 = scmp.lt.s32.totalorder %s9, 3
    %p171 = pnand %p169, %p170
    %p172 = pneg %p171
    // Predicated region
    $region29: #{_lambda_.12} parent=5 // pred_check
      _
    $region30: #{_lambda_.12} parent=5 // pred_check_branch
      %174 = sbr.rel (%p171) target = $region32
    $region31: #{_lambda_.12} parent=5 // pred_region
      %s175 = ssub.s32 %s9, 1
      %s176 = smul.u32 32, %s19
      %p177 = scmp.lt.s32.totalorder %s176, 63
      %s178 = scalar_select %p177, %s176, 63
      %s179 = smul.addr %s178, 2
      %s180 = smul.addr %s179, 4
      %s181 = scalar_lea.vmem %s0, %s180
      %p182 = pneg %p47
      %p183 = pneg %p44
      %p184 = scmp.lt.s32.totalorder %s18, 0
      %s185 = scalar_select %p184, %s18, 0
      %s186 = smul.addr %s185, 4
      %s187 = scalar_lea.vmem %s1, %s186
      %p188 = pneg %p73
      %p189 = pneg %p70
      %p190 = scmp.lt.s32.totalorder %s18, 0
      %s191 = scalar_select %p190, %s18, 0
      %s192 = scalar_lea.vmem %s2, %s191
      %p193 = pneg %p99
      %p194 = pneg %p96
      %p195 = pneg %p127
      %p196 = pneg %p124
      %s197 = smul.u32 32, %s19
      %p198 = scmp.lt.s32.totalorder %s197, 63
      %s199 = scalar_select %p198, %s197, 63
      %p200 = scmp.lt.s32.totalorder %s18, 0
      %s201 = scalar_select %p200, %s18, 0
      %s202 = sadd.s32 %s201, %s199
      %s203 = smul.addr %s202, 4
      %s204 = scalar_lea.vmem %s3, %s203
      %s205 = smul.u32 32, %s19
      %p206 = scmp.lt.s32.totalorder %s205, 63
      %s207 = scalar_select %p206, %s205, 63
      %s208 = smul.addr %s207, 2
      %s209 = smul.addr %s208, 4
      %s210 = scalar_lea.vmem %s0, %s209
      %s211 = smul.u32 32, %s19
      %p212 = scmp.lt.s32.totalorder %s18, 0
      %s213 = scalar_select %p212, %s18, 0
      %s214 = smul.addr %s213, 4
      %s215 = scalar_lea.vmem %s1, %s214
      %p216 = scmp.lt.s32.totalorder %s18, 0
      %s217 = scalar_select %p216, %s18, 0
      %s218 = scalar_lea.vmem %s2, %s217
      %s219 = smul.u32 32, %s19
      %p220 = scmp.lt.s32.totalorder %s219, 63
      %s221 = scalar_select %p220, %s219, 63
      %p222 = scmp.lt.s32.totalorder %s18, 0
      %s223 = scalar_select %p222, %s18, 0
      %s224 = sadd.s32 %s223, %s221
      %s225 = smul.addr %s224, 4
      %s226 = scalar_lea.vmem %s3, %s225
      %s227 = smul.u32 32, %s19
      %v228 = vld [vmem:[%s210] sm:$0xff]
      %v229 = vld [vmem:[%s210 + $0x8] sm:$0xff]
      %v230 = vld [vmem:[%s210 + $0x10] sm:$0xff]
      %v231 = vld [vmem:[%s210 + $0x18] sm:$0xff]
      %v232 = vld [vmem:[%s210 + $0x20] sm:$0xff]
      %v233 = vld [vmem:[%s210 + $0x28] sm:$0xff]
      %v234 = vld [vmem:[%s210 + $0x30] sm:$0xff]
      %v235 = vld [vmem:[%s210 + $0x38] sm:$0xff]
      %v236 = vld [vmem:[%s210 + $0x40] sm:$0xff]
      %v237 = vld [vmem:[%s210 + $0x48] sm:$0xff]
      %v238 = vld [vmem:[%s210 + $0x50] sm:$0xff]
      %v239 = vld [vmem:[%s210 + $0x58] sm:$0xff]
      %v240 = vld [vmem:[%s210 + $0x60] sm:$0xff]
      %v241 = vld [vmem:[%s210 + $0x68] sm:$0xff]
      %v242 = vld [vmem:[%s210 + $0x70] sm:$0xff]
      %v243 = vld [vmem:[%s210 + $0x78] sm:$0xff]
      %v244 = vld [vmem:[%s210 + $0x80] sm:$0xff]
      %v245 = vld [vmem:[%s210 + $0x88] sm:$0xff]
      %v246 = vld [vmem:[%s210 + $0x90] sm:$0xff]
      %v247 = vld [vmem:[%s210 + $0x98] sm:$0xff]
      %v248 = vld [vmem:[%s210 + $0xa0] sm:$0xff]
      %v249 = vld [vmem:[%s210 + $0xa8] sm:$0xff]
      %v250 = vld [vmem:[%s210 + $0xb0] sm:$0xff]
      %v251 = vld [vmem:[%s210 + $0xb8] sm:$0xff]
      %v252 = vld [vmem:[%s210 + $0xc0] sm:$0xff]
      %v253 = vld [vmem:[%s210 + $0xc8] sm:$0xff]
      %v254 = vld [vmem:[%s210 + $0xd0] sm:$0xff]
      %v255 = vld [vmem:[%s210 + $0xd8] sm:$0xff]
      %v256 = vld [vmem:[%s210 + $0xe0] sm:$0xff]
      %v257 = vld [vmem:[%s210 + $0xe8] sm:$0xff]
      %v258 = vld [vmem:[%s210 + $0xf0] sm:$0xff]
      %v259 = vld [vmem:[%s210 + $0xf8] sm:$0xff]
      %v260 = vld [vmem:[%s215] sm:$0xf]
      %v261 = vld [vmem:[%s215 + $0x4] sm:$0xf]
      %v262 = vld [vmem:[%s215 + $0x8] sm:$0xf]
      %v263 = vld [vmem:[%s215 + $0xc] sm:$0xf]
      %v264 = vld [vmem:[%s215 + $0x10] sm:$0xf]
      %v265 = vld [vmem:[%s215 + $0x14] sm:$0xf]
      %v266 = vld [vmem:[%s215 + $0x18] sm:$0xf]
      %v267 = vld [vmem:[%s215 + $0x1c] sm:$0xf]
      %v268 = vld [vmem:[%s215 + $0x20] sm:$0xf]
      %v269 = vld [vmem:[%s215 + $0x24] sm:$0xf]
      %v270 = vld [vmem:[%s215 + $0x28] sm:$0xf]
      %v271 = vld [vmem:[%s215 + $0x2c] sm:$0xf]
      %v272 = vld [vmem:[%s215 + $0x30] sm:$0xf]
      %v273 = vld [vmem:[%s215 + $0x34] sm:$0xf]
      %v274 = vld [vmem:[%s215 + $0x38] sm:$0xf]
      %v275 = vld [vmem:[%s215 + $0x3c] sm:$0xf]
      %v276 = vld [vmem:[%s215 + $0x40] sm:$0xf]
      %v277 = vld [vmem:[%s215 + $0x44] sm:$0xf]
      %v278 = vld [vmem:[%s215 + $0x48] sm:$0xf]
      %v279 = vld [vmem:[%s215 + $0x4c] sm:$0xf]
      %v280 = vld [vmem:[%s215 + $0x50] sm:$0xf]
      %v281 = vld [vmem:[%s215 + $0x54] sm:$0xf]
      %v282 = vld [vmem:[%s215 + $0x58] sm:$0xf]
      %v283 = vld [vmem:[%s215 + $0x5c] sm:$0xf]
      %v284 = vld [vmem:[%s215 + $0x60] sm:$0xf]
      %v285 = vld [vmem:[%s215 + $0x64] sm:$0xf]
      %v286 = vld [vmem:[%s215 + $0x68] sm:$0xf]
      %v287 = vld [vmem:[%s215 + $0x6c] sm:$0xf]
      %v288 = vld [vmem:[%s215 + $0x70] sm:$0xf]
      %v289 = vld [vmem:[%s215 + $0x74] sm:$0xf]
      %v290 = vld [vmem:[%s215 + $0x78] sm:$0xf]
      %v291 = vld [vmem:[%s215 + $0x7c] sm:$0xf]
      %v292 = vld [vmem:[%s218] sm:$0x1]
      %v294 = vperm.slane %v292, 0
      %v328 = vunpack.c.l.b16 %v228
      %v329 = vunpack.c.h.b16 %v228
      %v330 = vunpack.c.l.b16 %v229
      %v331 = vunpack.c.h.b16 %v229
      %v332 = vunpack.c.l.b16 %v230
      %v333 = vunpack.c.h.b16 %v230
      %v334 = vunpack.c.l.b16 %v231
      %v335 = vunpack.c.h.b16 %v231
      %v336 = vunpack.c.l.b16 %v232
      %v337 = vunpack.c.h.b16 %v232
      %v338 = vunpack.c.l.b16 %v233
      %v339 = vunpack.c.h.b16 %v233
      %v340 = vunpack.c.l.b16 %v234
      %v341 = vunpack.c.h.b16 %v234
      %v342 = vunpack.c.l.b16 %v235
      %v343 = vunpack.c.h.b16 %v235
      %v344 = vunpack.c.l.b16 %v236
      %v345 = vunpack.c.h.b16 %v236
      %v346 = vunpack.c.l.b16 %v237
      %v347 = vunpack.c.h.b16 %v237
      %v348 = vunpack.c.l.b16 %v238
      %v349 = vunpack.c.h.b16 %v238
      %v350 = vunpack.c.l.b16 %v239
      %v351 = vunpack.c.h.b16 %v239
      %v352 = vunpack.c.l.b16 %v240
      %v353 = vunpack.c.h.b16 %v240
      %v354 = vunpack.c.l.b16 %v241
      %v355 = vunpack.c.h.b16 %v241
      %v356 = vunpack.c.l.b16 %v242
      %v357 = vunpack.c.h.b16 %v242
      %v358 = vunpack.c.l.b16 %v243
      %v359 = vunpack.c.h.b16 %v243
      %v360 = vunpack.c.l.b16 %v244
      %v361 = vunpack.c.h.b16 %v244
      %v362 = vunpack.c.l.b16 %v245
      %v363 = vunpack.c.h.b16 %v245
      %v364 = vunpack.c.l.b16 %v246
      %v365 = vunpack.c.h.b16 %v246
      %v366 = vunpack.c.l.b16 %v247
      %v367 = vunpack.c.h.b16 %v247
      %v368 = vunpack.c.l.b16 %v248
      %v369 = vunpack.c.h.b16 %v248
      %v370 = vunpack.c.l.b16 %v249
      %v371 = vunpack.c.h.b16 %v249
      %v372 = vunpack.c.l.b16 %v250
      %v373 = vunpack.c.h.b16 %v250
      %v374 = vunpack.c.l.b16 %v251
      %v375 = vunpack.c.h.b16 %v251
      %v376 = vunpack.c.l.b16 %v252
      %v377 = vunpack.c.h.b16 %v252
      %v378 = vunpack.c.l.b16 %v253
      %v379 = vunpack.c.h.b16 %v253
      %v380 = vunpack.c.l.b16 %v254
      %v381 = vunpack.c.h.b16 %v254
      %v382 = vunpack.c.l.b16 %v255
      %v383 = vunpack.c.h.b16 %v255
      %v384 = vunpack.c.l.b16 %v256
      %v385 = vunpack.c.h.b16 %v256
      %v386 = vunpack.c.l.b16 %v257
      %v387 = vunpack.c.h.b16 %v257
      %v388 = vunpack.c.l.b16 %v258
      %v389 = vunpack.c.h.b16 %v258
      %v390 = vunpack.c.l.b16 %v259
      %v391 = vunpack.c.h.b16 %v259
      %v392 = vpack.c.b16 %v330, %v328
      %v393 = vpack.c.b16 %v331, %v329
      %v394 = vpack.c.b16 %v334, %v332
      %v395 = vpack.c.b16 %v335, %v333
      %v396 = vpack.c.b16 %v338, %v336
      %v397 = vpack.c.b16 %v339, %v337
      %v398 = vpack.c.b16 %v342, %v340
      %v399 = vpack.c.b16 %v343, %v341
      %v400 = vpack.c.b16 %v346, %v344
      %v401 = vpack.c.b16 %v347, %v345
      %v402 = vpack.c.b16 %v350, %v348
      %v403 = vpack.c.b16 %v351, %v349
      %v404 = vpack.c.b16 %v354, %v352
      %v405 = vpack.c.b16 %v355, %v353
      %v406 = vpack.c.b16 %v358, %v356
      %v407 = vpack.c.b16 %v359, %v357
      %v408 = vpack.c.b16 %v362, %v360
      %v409 = vpack.c.b16 %v363, %v361
      %v410 = vpack.c.b16 %v366, %v364
      %v411 = vpack.c.b16 %v367, %v365
      %v412 = vpack.c.b16 %v370, %v368
      %v413 = vpack.c.b16 %v371, %v369
      %v414 = vpack.c.b16 %v374, %v372
      %v415 = vpack.c.b16 %v375, %v373
      %v416 = vpack.c.b16 %v378, %v376
      %v417 = vpack.c.b16 %v379, %v377
      %v418 = vpack.c.b16 %v382, %v380
      %v419 = vpack.c.b16 %v383, %v381
      %v420 = vpack.c.b16 %v386, %v384
      %v421 = vpack.c.b16 %v387, %v385
      %v422 = vpack.c.b16 %v390, %v388
      %v423 = vpack.c.b16 %v391, %v389
      %v488 = vunpack.c.l.b16 %v260
      %v489 = vunpack.c.l.b16 %v261
      %v490 = vunpack.c.l.b16 %v262
      %v491 = vunpack.c.l.b16 %v263
      %v492 = vunpack.c.l.b16 %v264
      %v493 = vunpack.c.l.b16 %v265
      %v494 = vunpack.c.l.b16 %v266
      %v495 = vunpack.c.l.b16 %v267
      %v496 = vunpack.c.l.b16 %v268
      %v497 = vunpack.c.l.b16 %v269
      %v498 = vunpack.c.l.b16 %v270
      %v499 = vunpack.c.l.b16 %v271
      %v500 = vunpack.c.l.b16 %v272
      %v501 = vunpack.c.l.b16 %v273
      %v502 = vunpack.c.l.b16 %v274
      %v503 = vunpack.c.l.b16 %v275
      %v504 = vunpack.c.l.b16 %v276
      %v505 = vunpack.c.l.b16 %v277
      %v506 = vunpack.c.l.b16 %v278
      %v507 = vunpack.c.l.b16 %v279
      %v508 = vunpack.c.l.b16 %v280
      %v509 = vunpack.c.l.b16 %v281
      %v510 = vunpack.c.l.b16 %v282
      %v511 = vunpack.c.l.b16 %v283
      %v512 = vunpack.c.l.b16 %v284
      %v513 = vunpack.c.l.b16 %v285
      %v514 = vunpack.c.l.b16 %v286
      %v515 = vunpack.c.l.b16 %v287
      %v516 = vunpack.c.l.b16 %v288
      %v517 = vunpack.c.l.b16 %v289
      %v518 = vunpack.c.l.b16 %v290
      %v519 = vunpack.c.l.b16 %v291
      %v520 = vpack.c.b16 %v489, %v488
      %v521 = vpack.c.b16 %v491, %v490
      %v522 = vpack.c.b16 %v493, %v492
      %v523 = vpack.c.b16 %v495, %v494
      %v524 = vpack.c.b16 %v497, %v496
      %v525 = vpack.c.b16 %v499, %v498
      %v526 = vpack.c.b16 %v501, %v500
      %v527 = vpack.c.b16 %v503, %v502
      %v528 = vpack.c.b16 %v505, %v504
      %v529 = vpack.c.b16 %v507, %v506
      %v530 = vpack.c.b16 %v509, %v508
      %v531 = vpack.c.b16 %v511, %v510
      %v532 = vpack.c.b16 %v513, %v512
      %v533 = vpack.c.b16 %v515, %v514
      %v534 = vpack.c.b16 %v517, %v516
      %v535 = vpack.c.b16 %v519, %v518
      %552 = vmatpush.bf16.msra.mxu0 %v527
      %553 = vmatpush.bf16.msra.mxu0 %v526
      %554 = vmatpush.bf16.msra.mxu0 %v525
      %555 = vmatpush.bf16.msra.mxu0 %v524
      %556 = vmatpush.bf16.msra.mxu0 %v523
      %557 = vmatpush.bf16.msra.mxu0 %v522
      %558 = vmatpush.bf16.msra.mxu0 %v521
      %559 = vmatpush.bf16.msra.mxu0 %v520
      %560 = vmatmul.bf16.gmra.mxu0 %v392
      %v561 = vpop.f32.mrf.mxu0
      %v562 = vadd.f32 %v294, %v561
      %v563 = vpop.f32.mrf.mxu0
      %v564 = vadd.f32 %v294, %v563
      %565 = vmatmul.bf16.gmra.mxu0 %v394
      %v566 = vpop.f32.mrf.mxu0
      %v567 = vadd.f32 %v294, %v566
      %v568 = vpop.f32.mrf.mxu0
      %v569 = vadd.f32 %v294, %v568
      %570 = vmatmul.bf16.gmra.mxu0 %v396
      %v571 = vpop.f32.mrf.mxu0
      %v572 = vadd.f32 %v294, %v571
      %v573 = vpop.f32.mrf.mxu0
      %v574 = vadd.f32 %v294, %v573
      %575 = vmatmul.bf16.gmra.mxu0 %v398
      %v576 = vpop.f32.mrf.mxu0
      %v577 = vadd.f32 %v294, %v576
      %v578 = vpop.f32.mrf.mxu0
      %v579 = vadd.f32 %v294, %v578
      %580 = vmatmul.bf16.gmra.mxu0 %v400
      %v581 = vpop.f32.mrf.mxu0
      %v582 = vadd.f32 %v294, %v581
      %v583 = vpop.f32.mrf.mxu0
      %v584 = vadd.f32 %v294, %v583
      %585 = vmatmul.bf16.gmra.mxu0 %v402
      %v586 = vpop.f32.mrf.mxu0
      %v587 = vadd.f32 %v294, %v586
      %v588 = vpop.f32.mrf.mxu0
      %v589 = vadd.f32 %v294, %v588
      %590 = vmatmul.bf16.gmra.mxu0 %v404
      %v591 = vpop.f32.mrf.mxu0
      %v592 = vadd.f32 %v294, %v591
      %v593 = vpop.f32.mrf.mxu0
      %v594 = vadd.f32 %v294, %v593
      %595 = vmatmul.bf16.gmra.mxu0 %v406
      %v596 = vpop.f32.mrf.mxu0
      %v597 = vadd.f32 %v294, %v596
      %v598 = vpop.f32.mrf.mxu0
      %v599 = vadd.f32 %v294, %v598
      %600 = vmatmul.bf16.gmra.mxu0 %v408
      %v601 = vpop.f32.mrf.mxu0
      %v602 = vadd.f32 %v294, %v601
      %v603 = vpop.f32.mrf.mxu0
      %v604 = vadd.f32 %v294, %v603
      %605 = vmatmul.bf16.gmra.mxu0 %v410
      %v606 = vpop.f32.mrf.mxu0
      %v607 = vadd.f32 %v294, %v606
      %v608 = vpop.f32.mrf.mxu0
      %v609 = vadd.f32 %v294, %v608
      %610 = vmatmul.bf16.gmra.mxu0 %v412
      %v611 = vpop.f32.mrf.mxu0
      %v612 = vadd.f32 %v294, %v611
      %v613 = vpop.f32.mrf.mxu0
      %v614 = vadd.f32 %v294, %v613
      %615 = vmatmul.bf16.gmra.mxu0 %v414
      %v616 = vpop.f32.mrf.mxu0
      %v617 = vadd.f32 %v294, %v616
      %v618 = vpop.f32.mrf.mxu0
      %v619 = vadd.f32 %v294, %v618
      %620 = vmatmul.bf16.gmra.mxu0 %v416
      %v621 = vpop.f32.mrf.mxu0
      %v622 = vadd.f32 %v294, %v621
      %v623 = vpop.f32.mrf.mxu0
      %v624 = vadd.f32 %v294, %v623
      %625 = vmatmul.bf16.gmra.mxu0 %v418
      %v626 = vpop.f32.mrf.mxu0
      %v627 = vadd.f32 %v294, %v626
      %v628 = vpop.f32.mrf.mxu0
      %v629 = vadd.f32 %v294, %v628
      %630 = vmatmul.bf16.gmra.mxu0 %v420
      %v631 = vpop.f32.mrf.mxu0
      %v632 = vadd.f32 %v294, %v631
      %v633 = vpop.f32.mrf.mxu0
      %v634 = vadd.f32 %v294, %v633
      %635 = vmatmul.bf16.gmra.mxu0 %v422
      %v636 = vpop.f32.mrf.mxu0
      %v637 = vadd.f32 %v294, %v636
      %v638 = vpop.f32.mrf.mxu0
      %v639 = vadd.f32 %v294, %v638
      %640 = vdwg.mxu0
      %641 = vmatpush.bf16.msra.mxu0 %v535
      %642 = vmatpush.bf16.msra.mxu0 %v534
      %643 = vmatpush.bf16.msra.mxu0 %v533
      %644 = vmatpush.bf16.msra.mxu0 %v532
      %645 = vmatpush.bf16.msra.mxu0 %v531
      %646 = vmatpush.bf16.msra.mxu0 %v530
      %647 = vmatpush.bf16.msra.mxu0 %v529
      %648 = vmatpush.bf16.msra.mxu0 %v528
      %649 = vmatmul.bf16.gmra.mxu0 %v393
      %v650 = vpop.f32.mrf.mxu0
      %v651 = vadd.f32 %v562, %v650
      %v652 = vpop.f32.mrf.mxu0
      %v653 = vadd.f32 %v564, %v652
      %654 = vmatmul.bf16.gmra.mxu0 %v395
      %v655 = vpop.f32.mrf.mxu0
      %v656 = vadd.f32 %v567, %v655
      %v657 = vpop.f32.mrf.mxu0
      %v658 = vadd.f32 %v569, %v657
      %659 = vmatmul.bf16.gmra.mxu0 %v397
      %v660 = vpop.f32.mrf.mxu0
      %v661 = vadd.f32 %v572, %v660
      %v662 = vpop.f32.mrf.mxu0
      %v663 = vadd.f32 %v574, %v662
      %664 = vmatmul.bf16.gmra.mxu0 %v399
      %v665 = vpop.f32.mrf.mxu0
      %v666 = vadd.f32 %v577, %v665
      %v667 = vpop.f32.mrf.mxu0
      %v668 = vadd.f32 %v579, %v667
      %669 = vmatmul.bf16.gmra.mxu0 %v401
      %v670 = vpop.f32.mrf.mxu0
      %v671 = vadd.f32 %v582, %v670
      %v672 = vpop.f32.mrf.mxu0
      %v673 = vadd.f32 %v584, %v672
      %674 = vmatmul.bf16.gmra.mxu0 %v403
      %v675 = vpop.f32.mrf.mxu0
      %v676 = vadd.f32 %v587, %v675
      %v677 = vpop.f32.mrf.mxu0
      %v678 = vadd.f32 %v589, %v677
      %679 = vmatmul.bf16.gmra.mxu0 %v405
      %v680 = vpop.f32.mrf.mxu0
      %v681 = vadd.f32 %v592, %v680
      %v682 = vpop.f32.mrf.mxu0
      %v683 = vadd.f32 %v594, %v682
      %684 = vmatmul.bf16.gmra.mxu0 %v407
      %v685 = vpop.f32.mrf.mxu0
      %v686 = vadd.f32 %v597, %v685
      %v687 = vpop.f32.mrf.mxu0
      %v688 = vadd.f32 %v599, %v687
      %689 = vmatmul.bf16.gmra.mxu0 %v409
      %v690 = vpop.f32.mrf.mxu0
      %v691 = vadd.f32 %v602, %v690
      %v692 = vpop.f32.mrf.mxu0
      %v693 = vadd.f32 %v604, %v692
      %694 = vmatmul.bf16.gmra.mxu0 %v411
      %v695 = vpop.f32.mrf.mxu0
      %v696 = vadd.f32 %v607, %v695
      %v697 = vpop.f32.mrf.mxu0
      %v698 = vadd.f32 %v609, %v697
      %699 = vmatmul.bf16.gmra.mxu0 %v413
      %v700 = vpop.f32.mrf.mxu0
      %v701 = vadd.f32 %v612, %v700
      %v702 = vpop.f32.mrf.mxu0
      %v703 = vadd.f32 %v614, %v702
      %704 = vmatmul.bf16.gmra.mxu0 %v415
      %v705 = vpop.f32.mrf.mxu0
      %v706 = vadd.f32 %v617, %v705
      %v707 = vpop.f32.mrf.mxu0
      %v708 = vadd.f32 %v619, %v707
      %709 = vmatmul.bf16.gmra.mxu0 %v417
      %v710 = vpop.f32.mrf.mxu0
      %v711 = vadd.f32 %v622, %v710
      %v712 = vpop.f32.mrf.mxu0
      %v713 = vadd.f32 %v624, %v712
      %714 = vmatmul.bf16.gmra.mxu0 %v419
      %v715 = vpop.f32.mrf.mxu0
      %v716 = vadd.f32 %v627, %v715
      %v717 = vpop.f32.mrf.mxu0
      %v718 = vadd.f32 %v629, %v717
      %719 = vmatmul.bf16.gmra.mxu0 %v421
      %v720 = vpop.f32.mrf.mxu0
      %v721 = vadd.f32 %v632, %v720
      %v722 = vpop.f32.mrf.mxu0
      %v723 = vadd.f32 %v634, %v722
      %724 = vmatmul.bf16.gmra.mxu0 %v423
      %v725 = vpop.f32.mrf.mxu0
      %v726 = vadd.f32 %v637, %v725
      %v727 = vpop.f32.mrf.mxu0
      %v728 = vadd.f32 %v639, %v727
      %729 = vdwg.mxu0
      %v730 = vmax.f32 %v651, 0.0
      %v731 = vmax.f32 %v653, 0.0
      %v732 = vmax.f32 %v656, 0.0
      %v733 = vmax.f32 %v658, 0.0
      %v734 = vmax.f32 %v661, 0.0
      %v735 = vmax.f32 %v663, 0.0
      %v736 = vmax.f32 %v666, 0.0
      %v737 = vmax.f32 %v668, 0.0
      %v738 = vmax.f32 %v671, 0.0
      %v739 = vmax.f32 %v673, 0.0
      %v740 = vmax.f32 %v676, 0.0
      %v741 = vmax.f32 %v678, 0.0
      %v742 = vmax.f32 %v681, 0.0
      %v743 = vmax.f32 %v683, 0.0
      %v744 = vmax.f32 %v686, 0.0
      %v745 = vmax.f32 %v688, 0.0
      %v746 = vmax.f32 %v691, 0.0
      %v747 = vmax.f32 %v693, 0.0
      %v748 = vmax.f32 %v696, 0.0
      %v749 = vmax.f32 %v698, 0.0
      %v750 = vmax.f32 %v701, 0.0
      %v751 = vmax.f32 %v703, 0.0
      %v752 = vmax.f32 %v706, 0.0
      %v753 = vmax.f32 %v708, 0.0
      %v754 = vmax.f32 %v711, 0.0
      %v755 = vmax.f32 %v713, 0.0
      %v756 = vmax.f32 %v716, 0.0
      %v757 = vmax.f32 %v718, 0.0
      %v758 = vmax.f32 %v721, 0.0
      %v759 = vmax.f32 %v723, 0.0
      %v760 = vmax.f32 %v726, 0.0
      %v761 = vmax.f32 %v728, 0.0
      %v762 = vpack.c.bf16 %v730, %v730
      %v763 = vpack.c.bf16 %v731, %v731
      %v764 = vpack.c.bf16 %v732, %v732
      %v765 = vpack.c.bf16 %v733, %v733
      %v766 = vpack.c.bf16 %v734, %v734
      %v767 = vpack.c.bf16 %v735, %v735
      %v768 = vpack.c.bf16 %v736, %v736
      %v769 = vpack.c.bf16 %v737, %v737
      %v770 = vpack.c.bf16 %v738, %v738
      %v771 = vpack.c.bf16 %v739, %v739
      %v772 = vpack.c.bf16 %v740, %v740
      %v773 = vpack.c.bf16 %v741, %v741
      %v774 = vpack.c.bf16 %v742, %v742
      %v775 = vpack.c.bf16 %v743, %v743
      %v776 = vpack.c.bf16 %v744, %v744
      %v777 = vpack.c.bf16 %v745, %v745
      %v778 = vpack.c.bf16 %v746, %v746
      %v779 = vpack.c.bf16 %v747, %v747
      %v780 = vpack.c.bf16 %v748, %v748
      %v781 = vpack.c.bf16 %v749, %v749
      %v782 = vpack.c.bf16 %v750, %v750
      %v783 = vpack.c.bf16 %v751, %v751
      %v784 = vpack.c.bf16 %v752, %v752
      %v785 = vpack.c.bf16 %v753, %v753
      %v786 = vpack.c.bf16 %v754, %v754
      %v787 = vpack.c.bf16 %v755, %v755
      %v788 = vpack.c.bf16 %v756, %v756
      %v789 = vpack.c.bf16 %v757, %v757
      %v790 = vpack.c.bf16 %v758, %v758
      %v791 = vpack.c.bf16 %v759, %v759
      %v792 = vpack.c.bf16 %v760, %v760
      %v793 = vpack.c.bf16 %v761, %v761
      %794 = vst [vmem:[%s226] sm:$0xf] %v762
      %795 = vst [vmem:[%s226 + $0x4] sm:$0xf] %v763
      %796 = vst [vmem:[%s226 + $0x8] sm:$0xf] %v764
      %797 = vst [vmem:[%s226 + $0xc] sm:$0xf] %v765
      %798 = vst [vmem:[%s226 + $0x10] sm:$0xf] %v766
      %799 = vst [vmem:[%s226 + $0x14] sm:$0xf] %v767
      %800 = vst [vmem:[%s226 + $0x18] sm:$0xf] %v768
      %801 = vst [vmem:[%s226 + $0x1c] sm:$0xf] %v769
      %802 = vst [vmem:[%s226 + $0x20] sm:$0xf] %v770
      %803 = vst [vmem:[%s226 + $0x24] sm:$0xf] %v771
      %804 = vst [vmem:[%s226 + $0x28] sm:$0xf] %v772
      %805 = vst [vmem:[%s226 + $0x2c] sm:$0xf] %v773
      %806 = vst [vmem:[%s226 + $0x30] sm:$0xf] %v774
      %807 = vst [vmem:[%s226 + $0x34] sm:$0xf] %v775
      %808 = vst [vmem:[%s226 + $0x38] sm:$0xf] %v776
      %809 = vst [vmem:[%s226 + $0x3c] sm:$0xf] %v777
      %810 = vst [vmem:[%s226 + $0x40] sm:$0xf] %v778
      %811 = vst [vmem:[%s226 + $0x44] sm:$0xf] %v779
      %812 = vst [vmem:[%s226 + $0x48] sm:$0xf] %v780
      %813 = vst [vmem:[%s226 + $0x4c] sm:$0xf] %v781
      %814 = vst [vmem:[%s226 + $0x50] sm:$0xf] %v782
      %815 = vst [vmem:[%s226 + $0x54] sm:$0xf] %v783
      %816 = vst [vmem:[%s226 + $0x58] sm:$0xf] %v784
      %817 = vst [vmem:[%s226 + $0x5c] sm:$0xf] %v785
      %818 = vst [vmem:[%s226 + $0x60] sm:$0xf] %v786
      %819 = vst [vmem:[%s226 + $0x64] sm:$0xf] %v787
      %820 = vst [vmem:[%s226 + $0x68] sm:$0xf] %v788
      %821 = vst [vmem:[%s226 + $0x6c] sm:$0xf] %v789
      %822 = vst [vmem:[%s226 + $0x70] sm:$0xf] %v790
      %823 = vst [vmem:[%s226 + $0x74] sm:$0xf] %v791
      %824 = vst [vmem:[%s226 + $0x78] sm:$0xf] %v792
      %825 = vst [vmem:[%s226 + $0x7c] sm:$0xf] %v793
      %s826 = smul.u32 32, %s19
      %p827 = scmp.lt.s32.totalorder %s826, 63
      %s828 = scalar_select %p827, %s826, 63
      %p829 = scmp.lt.s32.totalorder %s18, 0
      %s830 = scalar_select %p829, %s18, 0
      %s831 = sadd.s32 %s830, %s828
      %s832 = smul.addr %s831, 4
      %s833 = scalar_lea.vmem %s3, %s832
      // Predicated region
      $region33: #{_lambda_.12} parent=31 // pred_check
        %p834 = pneg %p124
      $region34: #{_lambda_.12} parent=31 // pred_check_branch
        %836 = sbr.rel (%p834) target = $region36
      $region35: #{_lambda_.12} parent=31 // pred_region
        %s837 = smul.u32 32, %s19
      $region36: #{_lambda_.12} parent=31 // pred_fallthru
        _
    $region32: #{_lambda_.12} parent=5 // pred_fallthru
      _
    %p838 = scmp.le.s32.totalorder 2, %s9
    // Predicated region
    $region37: #{_lambda_.12} parent=5 // pred_check
      %p839 = pneg %p838
    $region38: #{_lambda_.12} parent=5 // pred_check_branch
      %841 = sbr.rel (%p839) target = $region40
    $region39: #{_lambda_.12} parent=5 // pred_region
      %s842 = ssub.s32 %s9, 2
      // Predicated region
      $region41: #{_lambda_.12} parent=39 // pred_check
        %p843 = pneg %p130
      $region42: #{_lambda_.12} parent=39 // pred_check_branch
        %845 = sbr.rel (%p843) target = $region44
      $region43: #{_lambda_.12} parent=39 // pred_region
        %s846 = smul.u32 32, %s21
        %p847 = scmp.lt.s32.totalorder %s846, 63
        %s848 = scalar_select %p847, %s846, 63
        %p849 = scmp.lt.s32.totalorder %s20, 0
        %s850 = scalar_select %p849, %s20, 0
        %s851 = sadd.s32 %s850, %s848
        %s852 = smul.addr %s851, 4
        %s853 = scalar_lea.vmem %s3, %s852
      $region44: #{_lambda_.12} parent=39 // pred_fallthru
        _
    $region40: #{_lambda_.12} parent=5 // pred_fallthru
      _
  $region6: #{_lambda_.12} parent=0 // loop_footer
    %s13 = sadd.s32 1, %s9
  $region7: #{_lambda_.12} parent=0 // loop_footer_branch
    %8 = sbr.rel target = $region3
  $region8: #{_lambda_.12} parent=0 // loop_exit
    _

// kernel: _lambda_.13
$region0: #{_lambda_.13}
  #allocation0 [shape = 'u32[]', space=smem, size = 0x4, offset = 0x4, fixed_abs, tag = 'smem constant byte address 0x4 - core index']
  #allocation1 [shape = 'u32[72,128]{1,0:T(1,128)}', space=vmem, size = 0x9000, scoped, tag = 'internal scratch']
  %s0 = inlined_call_operand.vmem [shape: bf16[128,128], index: 0, kind: input, shape index: {}]
  %s1 = inlined_call_operand.vmem [shape: bf16[128,128], index: 1, kind: input, shape index: {}]
  %s2 = inlined_call_operand.vmem [shape: f32[1,128], index: 2, kind: input, shape index: {}]
  %s3 = inlined_call_operand.vmem [shape: bf16[128,128], index: 3, kind: output, shape index: {}]
  %s4 = sld [smem:[#allocation0]]
  $region45: #{_lambda_.13} parent=0
    _
  %s6 = ssub.s32 1, %s4
  %s7 = scalar_select 0, %s6, %s4
  loop: start=0, step=1, limit=4
  $region2: #{_lambda_.13} parent=0 // loop_pre_header
    _
  $region3: #{_lambda_.13} parent=0 // loop_header
    %s9 = sphi 0, %s13
    %p10 = scmp.ge.s32.totalorder %s9, 4
    %s16 = sphi 0, %s28
    %s17 = sphi 0, %s24
    %s18 = sphi 0, %s16
    %s19 = sphi 0, %s17
    %s20 = sphi 0, %s18
    %s21 = sphi 0, %s19
    %s31 = sphi 0, %s33
    %s34 = sphi 0, %s31
    %s35 = sphi 0, %s34
    %s51 = sphi 0, %s35
    %s57 = sphi 0, %s59
    %s60 = sphi 0, %s57
    %s61 = sphi 0, %s60
    %s77 = sphi 0, %s61
    %s83 = sphi 0, %s85
    %s86 = sphi 0, %s83
    %s87 = sphi 0, %s86
    %s103 = sphi 0, %s87
    %s111 = sphi 0, %s113
    %s114 = sphi 0, %s111
    %s115 = sphi 0, %s114
    %s131 = sphi 0, %s115
  $region4: #{_lambda_.13} parent=0 // loop_header_branch
    %12 = sbr.rel (%p10) target = $region8
  $region5: #{_lambda_.13} parent=0 // loop_body
    %s14 = ssub.s32 %s9, 1
    %s15 = ssub.s32 %s9, 2
    %s22 = sadd.s32 1, %s17
    %p23 = scmp.ge.s32.totalorder %s22, 2
    %s24 = scalar_select %p23, 0, %s22
    %s25 = sadd.s32 1, %s16
    %s26 = scalar_select %p23, %s25, %s16
    %p27 = scmp.ge.s32.totalorder %s26, 1
    %s28 = scalar_select %p27, 0, %s26
    %s29 = ssub.s32 %s17, %s24
    %p30 = scmp.eq.s32.totalorder %s29, 0
    %s32 = sadd.s32 %s31, 1
    %s33 = scalar_select %p30, %s31, %s32
    %p36 = pneg %p30
    %p37 = scmp.eq.s32.totalorder %s9, 1
    %p38 = por %p36, %p37
    %p39 = scmp.ne.s32.totalorder %s31, %s34
    %p40 = scmp.eq.s32.totalorder %s9, 0
    %p41 = por %p39, %p40
    %p42 = scmp.ne.s32.totalorder %s31, %s34
    %p43 = scmp.eq.s32.totalorder %s14, 1
    %p44 = por %p42, %p43
    %p45 = scmp.ne.s32.totalorder %s34, %s35
    %p46 = scmp.eq.s32.totalorder %s14, 0
    %p47 = por %p45, %p46
    %p48 = scmp.ne.s32.totalorder %s34, %s35
    %p49 = scmp.eq.s32.totalorder %s15, 1
    %p50 = por %p48, %p49
    %p52 = scmp.ne.s32.totalorder %s35, %s51
    %p53 = scmp.eq.s32.totalorder %s15, 0
    %p54 = por %p52, %p53
    %s55 = ssub.s32 %s16, %s28
    %p56 = scmp.eq.s32.totalorder %s55, 0
    %s58 = sadd.s32 %s57, 1
    %s59 = scalar_select %p56, %s57, %s58
    %p62 = pneg %p56
    %p63 = scmp.eq.s32.totalorder %s9, 1
    %p64 = por %p62, %p63
    %p65 = scmp.ne.s32.totalorder %s57, %s60
    %p66 = scmp.eq.s32.totalorder %s9, 0
    %p67 = por %p65, %p66
    %p68 = scmp.ne.s32.totalorder %s57, %s60
    %p69 = scmp.eq.s32.totalorder %s14, 1
    %p70 = por %p68, %p69
    %p71 = scmp.ne.s32.totalorder %s60, %s61
    %p72 = scmp.eq.s32.totalorder %s14, 0
    %p73 = por %p71, %p72
    %p74 = scmp.ne.s32.totalorder %s60, %s61
    %p75 = scmp.eq.s32.totalorder %s15, 1
    %p76 = por %p74, %p75
    %p78 = scmp.ne.s32.totalorder %s61, %s77
    %p79 = scmp.eq.s32.totalorder %s15, 0
    %p80 = por %p78, %p79
    %s81 = ssub.s32 %s16, %s28
    %p82 = scmp.eq.s32.totalorder %s81, 0
    %s84 = sadd.s32 %s83, 1
    %s85 = scalar_select %p82, %s83, %s84
    %p88 = pneg %p82
    %p89 = scmp.eq.s32.totalorder %s9, 1
    %p90 = por %p88, %p89
    %p91 = scmp.ne.s32.totalorder %s83, %s86
    %p92 = scmp.eq.s32.totalorder %s9, 0
    %p93 = por %p91, %p92
    %p94 = scmp.ne.s32.totalorder %s83, %s86
    %p95 = scmp.eq.s32.totalorder %s14, 1
    %p96 = por %p94, %p95
    %p97 = scmp.ne.s32.totalorder %s86, %s87
    %p98 = scmp.eq.s32.totalorder %s14, 0
    %p99 = por %p97, %p98
    %p100 = scmp.ne.s32.totalorder %s86, %s87
    %p101 = scmp.eq.s32.totalorder %s15, 1
    %p102 = por %p100, %p101
    %p104 = scmp.ne.s32.totalorder %s87, %s103
    %p105 = scmp.eq.s32.totalorder %s15, 0
    %p106 = por %p104, %p105
    %s107 = ssub.s32 %s17, %s24
    %s108 = ssub.s32 %s16, %s28
    %s109 = sor.u32 %s107, %s108
    %p110 = scmp.eq.s32.totalorder %s109, 0
    %s112 = sadd.s32 %s111, 1
    %s113 = scalar_select %p110, %s111, %s112
    %p116 = pneg %p110
    %p117 = scmp.eq.s32.totalorder %s9, 1
    %p118 = por %p116, %p117
    %p119 = scmp.ne.s32.totalorder %s111, %s114
    %p120 = scmp.eq.s32.totalorder %s9, 0
    %p121 = por %p119, %p120
    %p122 = scmp.ne.s32.totalorder %s111, %s114
    %p123 = scmp.eq.s32.totalorder %s14, 1
    %p124 = por %p122, %p123
    %p125 = scmp.ne.s32.totalorder %s114, %s115
    %p126 = scmp.eq.s32.totalorder %s14, 0
    %p127 = por %p125, %p126
    %p128 = scmp.ne.s32.totalorder %s114, %s115
    %p129 = scmp.eq.s32.totalorder %s15, 1
    %p130 = por %p128, %p129
    %p132 = scmp.ne.s32.totalorder %s115, %s131
    %p133 = scmp.eq.s32.totalorder %s15, 0
    %p134 = por %p132, %p133
    %p135 = scmp.le.s32.totalorder 1, %s9
    %p136 = scmp.lt.s32.totalorder %s9, 3
    %p137 = pnand %p135, %p136
    %p138 = pneg %p137
    // Predicated region
    $region9: #{_lambda_.13} parent=5 // pred_check
      _
    $region10: #{_lambda_.13} parent=5 // pred_check_branch
      %140 = sbr.rel (%p137) target = $region12
    $region11: #{_lambda_.13} parent=5 // pred_region
      %s141 = ssub.s32 %s9, 1
      // Predicated region
      $region13: #{_lambda_.13} parent=11 // pred_check
        %p142 = pneg %p73
      $region14: #{_lambda_.13} parent=11 // pred_check_branch
        %144 = sbr.rel (%p142) target = $region16
      $region15: #{_lambda_.13} parent=11 // pred_region
        %p145 = scmp.lt.s32.totalorder %s18, 0
        %s146 = scalar_select %p145, %s18, 0
        %s147 = smul.addr %s146, 4
        %s148 = scalar_lea.vmem %s1, %s147
      $region16: #{_lambda_.13} parent=11 // pred_fallthru
        _
      // Predicated region
      $region17: #{_lambda_.13} parent=11 // pred_check
        %p149 = pneg %p99
      $region18: #{_lambda_.13} parent=11 // pred_check_branch
        %151 = sbr.rel (%p149) target = $region20
      $region19: #{_lambda_.13} parent=11 // pred_region
        %p152 = scmp.lt.s32.totalorder %s18, 0
        %s153 = scalar_select %p152, %s18, 0
        %s154 = scalar_lea.vmem %s2, %s153
      $region20: #{_lambda_.13} parent=11 // pred_fallthru
        _
    $region12: #{_lambda_.13} parent=5 // pred_fallthru
      _
    %p155 = scmp.lt.s32.totalorder %s9, 2
    // Predicated region
    $region21: #{_lambda_.13} parent=5 // pred_check
      %p156 = pneg %p155
    $region22: #{_lambda_.13} parent=5 // pred_check_branch
      %158 = sbr.rel (%p156) target = $region24
    $region23: #{_lambda_.13} parent=5 // pred_region
      // Predicated region
      $region25: #{_lambda_.13} parent=23 // pred_check
        %p159 = pneg %p41
      $region26: #{_lambda_.13} parent=23 // pred_check_branch
        %161 = sbr.rel (%p159) target = $region28
      $region27: #{_lambda_.13} parent=23 // pred_region
        %s162 = smul.u32 8, %s17
        %p163 = scmp.lt.s32.totalorder %s162, 15
        %s164 = scalar_select %p163, %s162, 15
        %s165 = smul.addr %s164, 4
        %s166 = scalar_lea.vmem %s0, %s165
        %s167 = smul.u32 8, %s17
      $region28: #{_lambda_.13} parent=23 // pred_fallthru
        _
    $region24: #{_lambda_.13} parent=5 // pred_fallthru
      _
    %p168 = scmp.le.s32.totalorder 1, %s9
    %p169 = scmp.lt.s32.totalorder %s9, 3
    %p170 = pnand %p168, %p169
    %p171 = pneg %p170
    // Predicated region
    $region29: #{_lambda_.13} parent=5 // pred_check
      _
    $region30: #{_lambda_.13} parent=5 // pred_check_branch
      %173 = sbr.rel (%p170) target = $region32
    $region31: #{_lambda_.13} parent=5 // pred_region
      %s174 = ssub.s32 %s9, 1
      %s175 = smul.u32 8, %s19
      %p176 = scmp.lt.s32.totalorder %s175, 15
      %s177 = scalar_select %p176, %s175, 15
      %s178 = smul.addr %s177, 4
      %s179 = scalar_lea.vmem %s0, %s178
      %p180 = pneg %p47
      %p181 = pneg %p44
      %p182 = scmp.lt.s32.totalorder %s18, 0
      %s183 = scalar_select %p182, %s18, 0
      %s184 = smul.addr %s183, 4
      %s185 = scalar_lea.vmem %s1, %s184
      %p186 = pneg %p73
      %p187 = pneg %p70
      %p188 = scmp.lt.s32.totalorder %s18, 0
      %s189 = scalar_select %p188, %s18, 0
      %s190 = scalar_lea.vmem %s2, %s189
      %p191 = pneg %p99
      %p192 = pneg %p96
      %p193 = pneg %p127
      %p194 = pneg %p124
      %s195 = smul.u32 8, %s19
      %p196 = scmp.lt.s32.totalorder %s195, 15
      %s197 = scalar_select %p196, %s195, 15
      %p198 = scmp.lt.s32.totalorder %s18, 0
      %s199 = scalar_select %p198, %s18, 0
      %s200 = sadd.s32 %s199, %s197
      %s201 = smul.addr %s200, 4
      %s202 = scalar_lea.vmem %s3, %s201
      %s203 = smul.u32 8, %s19
      %p204 = scmp.lt.s32.totalorder %s203, 15
      %s205 = scalar_select %p204, %s203, 15
      %s206 = smul.addr %s205, 4
      %s207 = scalar_lea.vmem %s0, %s206
      %s208 = smul.u32 8, %s19
      %p209 = scmp.lt.s32.totalorder %s18, 0
      %s210 = scalar_select %p209, %s18, 0
      %s211 = smul.addr %s210, 4
      %s212 = scalar_lea.vmem %s1, %s211
      %p213 = scmp.lt.s32.totalorder %s18, 0
      %s214 = scalar_select %p213, %s18, 0
      %s215 = scalar_lea.vmem %s2, %s214
      %s216 = smul.u32 8, %s19
      %p217 = scmp.lt.s32.totalorder %s216, 15
      %s218 = scalar_select %p217, %s216, 15
      %p219 = scmp.lt.s32.totalorder %s18, 0
      %s220 = scalar_select %p219, %s18, 0
      %s221 = sadd.s32 %s220, %s218
      %s222 = smul.addr %s221, 4
      %s223 = scalar_lea.vmem %s3, %s222
      %s224 = smul.u32 8, %s19
      %v225 = vld [vmem:[%s207] sm:$0xf]
      %v226 = vld [vmem:[%s207 + $0x4] sm:$0xf]
      %v227 = vld [vmem:[%s207 + $0x8] sm:$0xf]
      %v228 = vld [vmem:[%s207 + $0xc] sm:$0xf]
      %v229 = vld [vmem:[%s207 + $0x10] sm:$0xf]
      %v230 = vld [vmem:[%s207 + $0x14] sm:$0xf]
      %v231 = vld [vmem:[%s207 + $0x18] sm:$0xf]
      %v232 = vld [vmem:[%s207 + $0x1c] sm:$0xf]
      %v233 = vld [vmem:[%s212] sm:$0xf]
      %v234 = vld [vmem:[%s212 + $0x4] sm:$0xf]
      %v235 = vld [vmem:[%s212 + $0x8] sm:$0xf]
      %v236 = vld [vmem:[%s212 + $0xc] sm:$0xf]
      %v237 = vld [vmem:[%s212 + $0x10] sm:$0xf]
      %v238 = vld [vmem:[%s212 + $0x14] sm:$0xf]
      %v239 = vld [vmem:[%s212 + $0x18] sm:$0xf]
      %v240 = vld [vmem:[%s212 + $0x1c] sm:$0xf]
      %v241 = vld [vmem:[%s212 + $0x20] sm:$0xf]
      %v242 = vld [vmem:[%s212 + $0x24] sm:$0xf]
      %v243 = vld [vmem:[%s212 + $0x28] sm:$0xf]
      %v244 = vld [vmem:[%s212 + $0x2c] sm:$0xf]
      %v245 = vld [vmem:[%s212 + $0x30] sm:$0xf]
      %v246 = vld [vmem:[%s212 + $0x34] sm:$0xf]
      %v247 = vld [vmem:[%s212 + $0x38] sm:$0xf]
      %v248 = vld [vmem:[%s212 + $0x3c] sm:$0xf]
      %v249 = vld [vmem:[%s215] sm:$0x1]
      %v251 = vperm.slane %v249, 0
      %v261 = vunpack.c.l.b16 %v225
      %v262 = vunpack.c.l.b16 %v226
      %v263 = vunpack.c.l.b16 %v227
      %v264 = vunpack.c.l.b16 %v228
      %v265 = vunpack.c.l.b16 %v229
      %v266 = vunpack.c.l.b16 %v230
      %v267 = vunpack.c.l.b16 %v231
      %v268 = vunpack.c.l.b16 %v232
      %v269 = vpack.c.b16 %v262, %v261
      %v270 = vpack.c.b16 %v264, %v263
      %v271 = vpack.c.b16 %v266, %v265
      %v272 = vpack.c.b16 %v268, %v267
      %v293 = vunpack.c.l.b16 %v233
      %v294 = vunpack.c.l.b16 %v234
      %v295 = vunpack.c.l.b16 %v235
      %v296 = vunpack.c.l.b16 %v236
      %v297 = vunpack.c.l.b16 %v237
      %v298 = vunpack.c.l.b16 %v238
      %v299 = vunpack.c.l.b16 %v239
      %v300 = vunpack.c.l.b16 %v240
      %v301 = vunpack.c.l.b16 %v241
      %v302 = vunpack.c.l.b16 %v242
      %v303 = vunpack.c.l.b16 %v243
      %v304 = vunpack.c.l.b16 %v244
      %v305 = vunpack.c.l.b16 %v245
      %v306 = vunpack.c.l.b16 %v246
      %v307 = vunpack.c.l.b16 %v247
      %v308 = vunpack.c.l.b16 %v248
      %v309 = vpack.c.b16 %v294, %v293
      %v310 = vpack.c.b16 %v296, %v295
      %v311 = vpack.c.b16 %v298, %v297
      %v312 = vpack.c.b16 %v300, %v299
      %v313 = vpack.c.b16 %v302, %v301
      %v314 = vpack.c.b16 %v304, %v303
      %v315 = vpack.c.b16 %v306, %v305
      %v316 = vpack.c.b16 %v308, %v307
      %325 = vmatpush.bf16.msra.mxu0 %v316
      %326 = vmatpush.bf16.msra.mxu0 %v315
      %327 = vmatpush.bf16.msra.mxu0 %v314
      %328 = vmatpush.bf16.msra.mxu0 %v313
      %329 = vmatpush.bf16.msra.mxu0 %v312
      %330 = vmatpush.bf16.msra.mxu0 %v311
      %331 = vmatpush.bf16.msra.mxu0 %v310
      %332 = vmatpush.bf16.msra.mxu0 %v309
      %333 = vmatmul.bf16.gmra.mxu0 %v269
      %v334 = vpop.f32.mrf.mxu0
      %v335 = vadd.f32 %v251, %v334
      %v336 = vpop.f32.mrf.mxu0
      %v337 = vadd.f32 %v251, %v336
      %338 = vmatmul.bf16.gmra.mxu0 %v270
      %v339 = vpop.f32.mrf.mxu0
      %v340 = vadd.f32 %v251, %v339
      %v341 = vpop.f32.mrf.mxu0
      %v342 = vadd.f32 %v251, %v341
      %343 = vmatmul.bf16.gmra.mxu0 %v271
      %v344 = vpop.f32.mrf.mxu0
      %v345 = vadd.f32 %v251, %v344
      %v346 = vpop.f32.mrf.mxu0
      %v347 = vadd.f32 %v251, %v346
      %348 = vmatmul.bf16.gmra.mxu0 %v272
      %v349 = vpop.f32.mrf.mxu0
      %v350 = vadd.f32 %v251, %v349
      %v351 = vpop.f32.mrf.mxu0
      %v352 = vadd.f32 %v251, %v351
      %353 = vdwg.mxu0
      %v354 = vmax.f32 %v335, 0.0
      %v355 = vmax.f32 %v337, 0.0
      %v356 = vmax.f32 %v340, 0.0
      %v357 = vmax.f32 %v342, 0.0
      %v358 = vmax.f32 %v345, 0.0
      %v359 = vmax.f32 %v347, 0.0
      %v360 = vmax.f32 %v350, 0.0
      %v361 = vmax.f32 %v352, 0.0
      %v362 = vpack.c.bf16 %v354, %v354
      %v363 = vpack.c.bf16 %v355, %v355
      %v364 = vpack.c.bf16 %v356, %v356
      %v365 = vpack.c.bf16 %v357, %v357
      %v366 = vpack.c.bf16 %v358, %v358
      %v367 = vpack.c.bf16 %v359, %v359
      %v368 = vpack.c.bf16 %v360, %v360
      %v369 = vpack.c.bf16 %v361, %v361
      %370 = vst [vmem:[%s223] sm:$0xf] %v362
      %371 = vst [vmem:[%s223 + $0x4] sm:$0xf] %v363
      %372 = vst [vmem:[%s223 + $0x8] sm:$0xf] %v364
      %373 = vst [vmem:[%s223 + $0xc] sm:$0xf] %v365
      %374 = vst [vmem:[%s223 + $0x10] sm:$0xf] %v366
      %375 = vst [vmem:[%s223 + $0x14] sm:$0xf] %v367
      %376 = vst [vmem:[%s223 + $0x18] sm:$0xf] %v368
      %377 = vst [vmem:[%s223 + $0x1c] sm:$0xf] %v369
      %s378 = smul.u32 8, %s19
      %p379 = scmp.lt.s32.totalorder %s378, 15
      %s380 = scalar_select %p379, %s378, 15
      %p381 = scmp.lt.s32.totalorder %s18, 0
      %s382 = scalar_select %p381, %s18, 0
      %s383 = sadd.s32 %s382, %s380
      %s384 = smul.addr %s383, 4
      %s385 = scalar_lea.vmem %s3, %s384
      // Predicated region
      $region33: #{_lambda_.13} parent=31 // pred_check
        %p386 = pneg %p124
      $region34: #{_lambda_.13} parent=31 // pred_check_branch
        %388 = sbr.rel (%p386) target = $region36
      $region35: #{_lambda_.13} parent=31 // pred_region
        %s389 = smul.u32 8, %s19
      $region36: #{_lambda_.13} parent=31 // pred_fallthru
        _
    $region32: #{_lambda_.13} parent=5 // pred_fallthru
      _
    %p390 = scmp.le.s32.totalorder 2, %s9
    // Predicated region
    $region37: #{_lambda_.13} parent=5 // pred_check
      %p391 = pneg %p390
    $region38: #{_lambda_.13} parent=5 // pred_check_branch
      %393 = sbr.rel (%p391) target = $region40
    $region39: #{_lambda_.13} parent=5 // pred_region
      %s394 = ssub.s32 %s9, 2
      // Predicated region
      $region41: #{_lambda_.13} parent=39 // pred_check
        %p395 = pneg %p130
      $region42: #{_lambda_.13} parent=39 // pred_check_branch
        %397 = sbr.rel (%p395) target = $region44
      $region43: #{_lambda_.13} parent=39 // pred_region
        %s398 = smul.u32 8, %s21
        %p399 = scmp.lt.s32.totalorder %s398, 15
        %s400 = scalar_select %p399, %s398, 15
        %p401 = scmp.lt.s32.totalorder %s20, 0
        %s402 = scalar_select %p401, %s20, 0
        %s403 = sadd.s32 %s402, %s400
        %s404 = smul.addr %s403, 4
        %s405 = scalar_lea.vmem %s3, %s404
      $region44: #{_lambda_.13} parent=39 // pred_fallthru
        _
    $region40: #{_lambda_.13} parent=5 // pred_fallthru
      _
  $region6: #{_lambda_.13} parent=0 // loop_footer
    %s13 = sadd.s32 1, %s9
  $region7: #{_lambda_.13} parent=0 // loop_footer_branch
    %8 = sbr.rel target = $region3
  $region8: #{_lambda_.13} parent=0 // loop_exit
    _

// kernel: _lambda_.14
$region0: #{_lambda_.14}
  #allocation0 [shape = 'u32[]', space=smem, size = 0x4, offset = 0x4, fixed_abs, tag = 'smem constant byte address 0x4 - core index']
  #allocation1 [shape = 'u32[72,128]{1,0:T(1,128)}', space=vmem, size = 0x9000, scoped, tag = 'internal scratch']
  %s0 = inlined_call_operand.vmem [shape: bf16[128,128], index: 0, kind: input, shape index: {}]
  %s1 = inlined_call_operand.vmem [shape: bf16[128,128], index: 1, kind: input, shape index: {}]
  %s2 = inlined_call_operand.vmem [shape: f32[1,128], index: 2, kind: input, shape index: {}]
  %s3 = inlined_call_operand.vmem [shape: bf16[128,128], index: 3, kind: input, shape index: {}]
  %s4 = inlined_call_operand.vmem [shape: bf16[128,128], index: 4, kind: output, shape index: {}]
  %s5 = sld [smem:[#allocation0]]
  $region49: #{_lambda_.14} parent=0
    _
  %s7 = ssub.s32 1, %s5
  %s8 = scalar_select 0, %s7, %s5
  loop: start=0, step=1, limit=4
  $region2: #{_lambda_.14} parent=0 // loop_pre_header
    _
  $region3: #{_lambda_.14} parent=0 // loop_header
    %s10 = sphi 0, %s14
    %p11 = scmp.ge.s32.totalorder %s10, 4
    %s17 = sphi 0, %s29
    %s18 = sphi 0, %s25
    %s19 = sphi 0, %s17
    %s20 = sphi 0, %s18
    %s21 = sphi 0, %s19
    %s22 = sphi 0, %s20
    %s32 = sphi 0, %s34
    %s35 = sphi 0, %s32
    %s36 = sphi 0, %s35
    %s52 = sphi 0, %s36
    %s58 = sphi 0, %s60
    %s61 = sphi 0, %s58
    %s62 = sphi 0, %s61
    %s78 = sphi 0, %s62
    %s84 = sphi 0, %s86
    %s87 = sphi 0, %s84
    %s88 = sphi 0, %s87
    %s104 = sphi 0, %s88
    %s112 = sphi 0, %s114
    %s115 = sphi 0, %s112
    %s116 = sphi 0, %s115
    %s132 = sphi 0, %s116
    %s140 = sphi 0, %s142
    %s143 = sphi 0, %s140
    %s144 = sphi 0, %s143
    %s160 = sphi 0, %s144
  $region4: #{_lambda_.14} parent=0 // loop_header_branch
    %13 = sbr.rel (%p11) target = $region8
  $region5: #{_lambda_.14} parent=0 // loop_body
    %s15 = ssub.s32 %s10, 1
    %s16 = ssub.s32 %s10, 2
    %s23 = sadd.s32 1, %s18
    %p24 = scmp.ge.s32.totalorder %s23, 2
    %s25 = scalar_select %p24, 0, %s23
    %s26 = sadd.s32 1, %s17
    %s27 = scalar_select %p24, %s26, %s17
    %p28 = scmp.ge.s32.totalorder %s27, 1
    %s29 = scalar_select %p28, 0, %s27
    %s30 = ssub.s32 %s18, %s25
    %p31 = scmp.eq.s32.totalorder %s30, 0
    %s33 = sadd.s32 %s32, 1
    %s34 = scalar_select %p31, %s32, %s33
    %p37 = pneg %p31
    %p38 = scmp.eq.s32.totalorder %s10, 1
    %p39 = por %p37, %p38
    %p40 = scmp.ne.s32.totalorder %s32, %s35
    %p41 = scmp.eq.s32.totalorder %s10, 0
    %p42 = por %p40, %p41
    %p43 = scmp.ne.s32.totalorder %s32, %s35
    %p44 = scmp.eq.s32.totalorder %s15, 1
    %p45 = por %p43, %p44
    %p46 = scmp.ne.s32.totalorder %s35, %s36
    %p47 = scmp.eq.s32.totalorder %s15, 0
    %p48 = por %p46, %p47
    %p49 = scmp.ne.s32.totalorder %s35, %s36
    %p50 = scmp.eq.s32.totalorder %s16, 1
    %p51 = por %p49, %p50
    %p53 = scmp.ne.s32.totalorder %s36, %s52
    %p54 = scmp.eq.s32.totalorder %s16, 0
    %p55 = por %p53, %p54
    %s56 = ssub.s32 %s17, %s29
    %p57 = scmp.eq.s32.totalorder %s56, 0
    %s59 = sadd.s32 %s58, 1
    %s60 = scalar_select %p57, %s58, %s59
    %p63 = pneg %p57
    %p64 = scmp.eq.s32.totalorder %s10, 1
    %p65 = por %p63, %p64
    %p66 = scmp.ne.s32.totalorder %s58, %s61
    %p67 = scmp.eq.s32.totalorder %s10, 0
    %p68 = por %p66, %p67
    %p69 = scmp.ne.s32.totalorder %s58, %s61
    %p70 = scmp.eq.s32.totalorder %s15, 1
    %p71 = por %p69, %p70
    %p72 = scmp.ne.s32.totalorder %s61, %s62
    %p73 = scmp.eq.s32.totalorder %s15, 0
    %p74 = por %p72, %p73
    %p75 = scmp.ne.s32.totalorder %s61, %s62
    %p76 = scmp.eq.s32.totalorder %s16, 1
    %p77 = por %p75, %p76
    %p79 = scmp.ne.s32.totalorder %s62, %s78
    %p80 = scmp.eq.s32.totalorder %s16, 0
    %p81 = por %p79, %p80
    %s82 = ssub.s32 %s17, %s29
    %p83 = scmp.eq.s32.totalorder %s82, 0
    %s85 = sadd.s32 %s84, 1
    %s86 = scalar_select %p83, %s84, %s85
    %p89 = pneg %p83
    %p90 = scmp.eq.s32.totalorder %s10, 1
    %p91 = por %p89, %p90
    %p92 = scmp.ne.s32.totalorder %s84, %s87
    %p93 = scmp.eq.s32.totalorder %s10, 0
    %p94 = por %p92, %p93
    %p95 = scmp.ne.s32.totalorder %s84, %s87
    %p96 = scmp.eq.s32.totalorder %s15, 1
    %p97 = por %p95, %p96
    %p98 = scmp.ne.s32.totalorder %s87, %s88
    %p99 = scmp.eq.s32.totalorder %s15, 0
    %p100 = por %p98, %p99
    %p101 = scmp.ne.s32.totalorder %s87, %s88
    %p102 = scmp.eq.s32.totalorder %s16, 1
    %p103 = por %p101, %p102
    %p105 = scmp.ne.s32.totalorder %s88, %s104
    %p106 = scmp.eq.s32.totalorder %s16, 0
    %p107 = por %p105, %p106
    %s108 = ssub.s32 %s18, %s25
    %s109 = ssub.s32 %s17, %s29
    %s110 = sor.u32 %s108, %s109
    %p111 = scmp.eq.s32.totalorder %s110, 0
    %s113 = sadd.s32 %s112, 1
    %s114 = scalar_select %p111, %s112, %s113
    %p117 = pneg %p111
    %p118 = scmp.eq.s32.totalorder %s10, 1
    %p119 = por %p117, %p118
    %p120 = scmp.ne.s32.totalorder %s112, %s115
    %p121 = scmp.eq.s32.totalorder %s10, 0
    %p122 = por %p120, %p121
    %p123 = scmp.ne.s32.totalorder %s112, %s115
    %p124 = scmp.eq.s32.totalorder %s15, 1
    %p125 = por %p123, %p124
    %p126 = scmp.ne.s32.totalorder %s115, %s116
    %p127 = scmp.eq.s32.totalorder %s15, 0
    %p128 = por %p126, %p127
    %p129 = scmp.ne.s32.totalorder %s115, %s116
    %p130 = scmp.eq.s32.totalorder %s16, 1
    %p131 = por %p129, %p130
    %p133 = scmp.ne.s32.totalorder %s116, %s132
    %p134 = scmp.eq.s32.totalorder %s16, 0
    %p135 = por %p133, %p134
    %s136 = ssub.s32 %s18, %s25
    %s137 = ssub.s32 %s17, %s29
    %s138 = sor.u32 %s136, %s137
    %p139 = scmp.eq.s32.totalorder %s138, 0
    %s141 = sadd.s32 %s140, 1
    %s142 = scalar_select %p139, %s140, %s141
    %p145 = pneg %p139
    %p146 = scmp.eq.s32.totalorder %s10, 1
    %p147 = por %p145, %p146
    %p148 = scmp.ne.s32.totalorder %s140, %s143
    %p149 = scmp.eq.s32.totalorder %s10, 0
    %p150 = por %p148, %p149
    %p151 = scmp.ne.s32.totalorder %s140, %s143
    %p152 = scmp.eq.s32.totalorder %s15, 1
    %p153 = por %p151, %p152
    %p154 = scmp.ne.s32.totalorder %s143, %s144
    %p155 = scmp.eq.s32.totalorder %s15, 0
    %p156 = por %p154, %p155
    %p157 = scmp.ne.s32.totalorder %s143, %s144
    %p158 = scmp.eq.s32.totalorder %s16, 1
    %p159 = por %p157, %p158
    %p161 = scmp.ne.s32.totalorder %s144, %s160
    %p162 = scmp.eq.s32.totalorder %s16, 0
    %p163 = por %p161, %p162
    %p164 = scmp.le.s32.totalorder 1, %s10
    %p165 = scmp.lt.s32.totalorder %s10, 3
    %p166 = pnand %p164, %p165
    %p167 = pneg %p166
    // Predicated region
    $region9: #{_lambda_.14} parent=5 // pred_check
      _
    $region10: #{_lambda_.14} parent=5 // pred_check_branch
      %169 = sbr.rel (%p166) target = $region12
    $region11: #{_lambda_.14} parent=5 // pred_region
      %s170 = ssub.s32 %s10, 1
      // Predicated region
      $region13: #{_lambda_.14} parent=11 // pred_check
        %p171 = pneg %p74
      $region14: #{_lambda_.14} parent=11 // pred_check_branch
        %173 = sbr.rel (%p171) target = $region16
      $region15: #{_lambda_.14} parent=11 // pred_region
        %p174 = scmp.lt.s32.totalorder %s19, 0
        %s175 = scalar_select %p174, %s19, 0
        %s176 = smul.addr %s175, 4
        %s177 = scalar_lea.vmem %s1, %s176
      $region16: #{_lambda_.14} parent=11 // pred_fallthru
        _
      // Predicated region
      $region17: #{_lambda_.14} parent=11 // pred_check
        %p178 = pneg %p100
      $region18: #{_lambda_.14} parent=11 // pred_check_branch
        %180 = sbr.rel (%p178) target = $region20
      $region19: #{_lambda_.14} parent=11 // pred_region
        %p181 = scmp.lt.s32.totalorder %s19, 0
        %s182 = scalar_select %p181, %s19, 0
        %s183 = scalar_lea.vmem %s2, %s182
      $region20: #{_lambda_.14} parent=11 // pred_fallthru
        _
    $region12: #{_lambda_.14} parent=5 // pred_fallthru
      _
    %p184 = scmp.lt.s32.totalorder %s10, 2
    // Predicated region
    $region21: #{_lambda_.14} parent=5 // pred_check
      %p185 = pneg %p184
    $region22: #{_lambda_.14} parent=5 // pred_check_branch
      %187 = sbr.rel (%p185) target = $region24
    $region23: #{_lambda_.14} parent=5 // pred_region
      // Predicated region
      $region25: #{_lambda_.14} parent=23 // pred_check
        %p188 = pneg %p42
      $region26: #{_lambda_.14} parent=23 // pred_check_branch
        %190 = sbr.rel (%p188) target = $region28
      $region27: #{_lambda_.14} parent=23 // pred_region
        %s191 = smul.u32 8, %s18
        %p192 = scmp.lt.s32.totalorder %s191, 15
        %s193 = scalar_select %p192, %s191, 15
        %s194 = smul.addr %s193, 4
        %s195 = scalar_lea.vmem %s0, %s194
        %s196 = smul.u32 8, %s18
      $region28: #{_lambda_.14} parent=23 // pred_fallthru
        _
      // Predicated region
      $region29: #{_lambda_.14} parent=23 // pred_check
        %p197 = pneg %p122
      $region30: #{_lambda_.14} parent=23 // pred_check_branch
        %199 = sbr.rel (%p197) target = $region32
      $region31: #{_lambda_.14} parent=23 // pred_region
        %s200 = smul.u32 8, %s18
        %p201 = scmp.lt.s32.totalorder %s200, 15
        %s202 = scalar_select %p201, %s200, 15
        %p203 = scmp.lt.s32.totalorder %s17, 0
        %s204 = scalar_select %p203, %s17, 0
        %s205 = sadd.s32 %s204, %s202
        %s206 = smul.addr %s205, 4
        %s207 = scalar_lea.vmem %s3, %s206
        %s208 = smul.u32 8, %s18
      $region32: #{_lambda_.14} parent=23 // pred_fallthru
        _
    $region24: #{_lambda_.14} parent=5 // pred_fallthru
      _
    %p209 = scmp.le.s32.totalorder 1, %s10
    %p210 = scmp.lt.s32.totalorder %s10, 3
    %p211 = pnand %p209, %p210
    %p212 = pneg %p211
    // Predicated region
    $region33: #{_lambda_.14} parent=5 // pred_check
      _
    $region34: #{_lambda_.14} parent=5 // pred_check_branch
      %214 = sbr.rel (%p211) target = $region36
    $region35: #{_lambda_.14} parent=5 // pred_region
      %s215 = ssub.s32 %s10, 1
      %s216 = smul.u32 8, %s20
      %p217 = scmp.lt.s32.totalorder %s216, 15
      %s218 = scalar_select %p217, %s216, 15
      %s219 = smul.addr %s218, 4
      %s220 = scalar_lea.vmem %s0, %s219
      %p221 = pneg %p48
      %p222 = pneg %p45
      %p223 = scmp.lt.s32.totalorder %s19, 0
      %s224 = scalar_select %p223, %s19, 0
      %s225 = smul.addr %s224, 4
      %s226 = scalar_lea.vmem %s1, %s225
      %p227 = pneg %p74
      %p228 = pneg %p71
      %p229 = scmp.lt.s32.totalorder %s19, 0
      %s230 = scalar_select %p229, %s19, 0
      %s231 = scalar_lea.vmem %s2, %s230
      %p232 = pneg %p100
      %p233 = pneg %p97
      %s234 = smul.u32 8, %s20
      %p235 = scmp.lt.s32.totalorder %s234, 15
      %s236 = scalar_select %p235, %s234, 15
      %p237 = scmp.lt.s32.totalorder %s19, 0
      %s238 = scalar_select %p237, %s19, 0
      %s239 = sadd.s32 %s238, %s236
      %s240 = smul.addr %s239, 4
      %s241 = scalar_lea.vmem %s3, %s240
      %p242 = pneg %p128
      %p243 = pneg %p125
      %p244 = pneg %p156
      %p245 = pneg %p153
      %s246 = smul.u32 8, %s20
      %p247 = scmp.lt.s32.totalorder %s246, 15
      %s248 = scalar_select %p247, %s246, 15
      %p249 = scmp.lt.s32.totalorder %s19, 0
      %s250 = scalar_select %p249, %s19, 0
      %s251 = sadd.s32 %s250, %s248
      %s252 = smul.addr %s251, 4
      %s253 = scalar_lea.vmem %s4, %s252
      %s254 = smul.u32 8, %s20
      %p255 = scmp.lt.s32.totalorder %s254, 15
      %s256 = scalar_select %p255, %s254, 15
      %s257 = smul.addr %s256, 4
      %s258 = scalar_lea.vmem %s0, %s257
      %s259 = smul.u32 8, %s20
      %p260 = scmp.lt.s32.totalorder %s19, 0
      %s261 = scalar_select %p260, %s19, 0
      %s262 = smul.addr %s261, 4
      %s263 = scalar_lea.vmem %s1, %s262
      %p264 = scmp.lt.s32.totalorder %s19, 0
      %s265 = scalar_select %p264, %s19, 0
      %s266 = scalar_lea.vmem %s2, %s265
      %s267 = smul.u32 8, %s20
      %p268 = scmp.lt.s32.totalorder %s267, 15
      %s269 = scalar_select %p268, %s267, 15
      %p270 = scmp.lt.s32.totalorder %s19, 0
      %s271 = scalar_select %p270, %s19, 0
      %s272 = sadd.s32 %s271, %s269
      %s273 = smul.addr %s272, 4
      %s274 = scalar_lea.vmem %s3, %s273
      %s275 = smul.u32 8, %s20
      %s276 = smul.u32 8, %s20
      %p277 = scmp.lt.s32.totalorder %s276, 15
      %s278 = scalar_select %p277, %s276, 15
      %p279 = scmp.lt.s32.totalorder %s19, 0
      %s280 = scalar_select %p279, %s19, 0
      %s281 = sadd.s32 %s280, %s278
      %s282 = smul.addr %s281, 4
      %s283 = scalar_lea.vmem %s4, %s282
      %s284 = smul.u32 8, %s20
      %v285 = vld [vmem:[%s258] sm:$0xf]
      %v286 = vld [vmem:[%s258 + $0x4] sm:$0xf]
      %v287 = vld [vmem:[%s258 + $0x8] sm:$0xf]
      %v288 = vld [vmem:[%s258 + $0xc] sm:$0xf]
      %v289 = vld [vmem:[%s258 + $0x10] sm:$0xf]
      %v290 = vld [vmem:[%s258 + $0x14] sm:$0xf]
      %v291 = vld [vmem:[%s258 + $0x18] sm:$0xf]
      %v292 = vld [vmem:[%s258 + $0x1c] sm:$0xf]
      %v293 = vld [vmem:[%s263] sm:$0xf]
      %v294 = vld [vmem:[%s263 + $0x4] sm:$0xf]
      %v295 = vld [vmem:[%s263 + $0x8] sm:$0xf]
      %v296 = vld [vmem:[%s263 + $0xc] sm:$0xf]
      %v297 = vld [vmem:[%s263 + $0x10] sm:$0xf]
      %v298 = vld [vmem:[%s263 + $0x14] sm:$0xf]
      %v299 = vld [vmem:[%s263 + $0x18] sm:$0xf]
      %v300 = vld [vmem:[%s263 + $0x1c] sm:$0xf]
      %v301 = vld [vmem:[%s263 + $0x20] sm:$0xf]
      %v302 = vld [vmem:[%s263 + $0x24] sm:$0xf]
      %v303 = vld [vmem:[%s263 + $0x28] sm:$0xf]
      %v304 = vld [vmem:[%s263 + $0x2c] sm:$0xf]
      %v305 = vld [vmem:[%s263 + $0x30] sm:$0xf]
      %v306 = vld [vmem:[%s263 + $0x34] sm:$0xf]
      %v307 = vld [vmem:[%s263 + $0x38] sm:$0xf]
      %v308 = vld [vmem:[%s263 + $0x3c] sm:$0xf]
      %v309 = vld [vmem:[%s266] sm:$0x1]
      %v311 = vperm.slane %v309, 0
      %v321 = vunpack.c.l.b16 %v285
      %v322 = vunpack.c.l.b16 %v286
      %v323 = vunpack.c.l.b16 %v287
      %v324 = vunpack.c.l.b16 %v288
      %v325 = vunpack.c.l.b16 %v289
      %v326 = vunpack.c.l.b16 %v290
      %v327 = vunpack.c.l.b16 %v291
      %v328 = vunpack.c.l.b16 %v292
      %v329 = vpack.c.b16 %v322, %v321
      %v330 = vpack.c.b16 %v324, %v323
      %v331 = vpack.c.b16 %v326, %v325
      %v332 = vpack.c.b16 %v328, %v327
      %v353 = vunpack.c.l.b16 %v293
      %v354 = vunpack.c.l.b16 %v294
      %v355 = vunpack.c.l.b16 %v295
      %v356 = vunpack.c.l.b16 %v296
      %v357 = vunpack.c.l.b16 %v297
      %v358 = vunpack.c.l.b16 %v298
      %v359 = vunpack.c.l.b16 %v299
      %v360 = vunpack.c.l.b16 %v300
      %v361 = vunpack.c.l.b16 %v301
      %v362 = vunpack.c.l.b16 %v302
      %v363 = vunpack.c.l.b16 %v303
      %v364 = vunpack.c.l.b16 %v304
      %v365 = vunpack.c.l.b16 %v305
      %v366 = vunpack.c.l.b16 %v306
      %v367 = vunpack.c.l.b16 %v307
      %v368 = vunpack.c.l.b16 %v308
      %v369 = vpack.c.b16 %v354, %v353
      %v370 = vpack.c.b16 %v356, %v355
      %v371 = vpack.c.b16 %v358, %v357
      %v372 = vpack.c.b16 %v360, %v359
      %v373 = vpack.c.b16 %v362, %v361
      %v374 = vpack.c.b16 %v364, %v363
      %v375 = vpack.c.b16 %v366, %v365
      %v376 = vpack.c.b16 %v368, %v367
      %385 = vmatpush.bf16.msra.mxu0 %v376
      %386 = vmatpush.bf16.msra.mxu0 %v375
      %387 = vmatpush.bf16.msra.mxu0 %v374
      %388 = vmatpush.bf16.msra.mxu0 %v373
      %389 = vmatpush.bf16.msra.mxu0 %v372
      %390 = vmatpush.bf16.msra.mxu0 %v371
      %391 = vmatpush.bf16.msra.mxu0 %v370
      %392 = vmatpush.bf16.msra.mxu0 %v369
      %393 = vmatmul.bf16.gmra.mxu0 %v329
      %v394 = vpop.f32.mrf.mxu0
      %v395 = vadd.f32 %v311, %v394
      %v396 = vpop.f32.mrf.mxu0
      %v397 = vadd.f32 %v311, %v396
      %398 = vmatmul.bf16.gmra.mxu0 %v330
      %v399 = vpop.f32.mrf.mxu0
      %v400 = vadd.f32 %v311, %v399
      %v401 = vpop.f32.mrf.mxu0
      %v402 = vadd.f32 %v311, %v401
      %403 = vmatmul.bf16.gmra.mxu0 %v331
      %v404 = vpop.f32.mrf.mxu0
      %v405 = vadd.f32 %v311, %v404
      %v406 = vpop.f32.mrf.mxu0
      %v407 = vadd.f32 %v311, %v406
      %408 = vmatmul.bf16.gmra.mxu0 %v332
      %v409 = vpop.f32.mrf.mxu0
      %v410 = vadd.f32 %v311, %v409
      %v411 = vpop.f32.mrf.mxu0
      %v412 = vadd.f32 %v311, %v411
      %413 = vdwg.mxu0
      %v414 = vld [vmem:[%s274] sm:$0xf]
      %v415 = vld [vmem:[%s274 + $0x4] sm:$0xf]
      %v416 = vld [vmem:[%s274 + $0x8] sm:$0xf]
      %v417 = vld [vmem:[%s274 + $0xc] sm:$0xf]
      %v418 = vld [vmem:[%s274 + $0x10] sm:$0xf]
      %v419 = vld [vmem:[%s274 + $0x14] sm:$0xf]
      %v420 = vld [vmem:[%s274 + $0x18] sm:$0xf]
      %v421 = vld [vmem:[%s274 + $0x1c] sm:$0xf]
      %v422 = vunpack.c.l.bf16 %v414
      %v423 = vunpack.c.l.bf16 %v415
      %v424 = vunpack.c.l.bf16 %v416
      %v425 = vunpack.c.l.bf16 %v417
      %v426 = vunpack.c.l.bf16 %v418
      %v427 = vunpack.c.l.bf16 %v419
      %v428 = vunpack.c.l.bf16 %v420
      %v429 = vunpack.c.l.bf16 %v421
      %v430 = vadd.f32 %v395, %v422
      %v431 = vadd.f32 %v397, %v423
      %v432 = vadd.f32 %v400, %v424
      %v433 = vadd.f32 %v402, %v425
      %v434 = vadd.f32 %v405, %v426
      %v435 = vadd.f32 %v407, %v427
      %v436 = vadd.f32 %v410, %v428
      %v437 = vadd.f32 %v412, %v429
      %v438 = vmax.f32 %v430, 0.0
      %v439 = vmax.f32 %v431, 0.0
      %v440 = vmax.f32 %v432, 0.0
      %v441 = vmax.f32 %v433, 0.0
      %v442 = vmax.f32 %v434, 0.0
      %v443 = vmax.f32 %v435, 0.0
      %v444 = vmax.f32 %v436, 0.0
      %v445 = vmax.f32 %v437, 0.0
      %v446 = vpack.c.bf16 %v438, %v438
      %v447 = vpack.c.bf16 %v439, %v439
      %v448 = vpack.c.bf16 %v440, %v440
      %v449 = vpack.c.bf16 %v441, %v441
      %v450 = vpack.c.bf16 %v442, %v442
      %v451 = vpack.c.bf16 %v443, %v443
      %v452 = vpack.c.bf16 %v444, %v444
      %v453 = vpack.c.bf16 %v445, %v445
      %454 = vst [vmem:[%s283] sm:$0xf] %v446
      %455 = vst [vmem:[%s283 + $0x4] sm:$0xf] %v447
      %456 = vst [vmem:[%s283 + $0x8] sm:$0xf] %v448
      %457 = vst [vmem:[%s283 + $0xc] sm:$0xf] %v449
      %458 = vst [vmem:[%s283 + $0x10] sm:$0xf] %v450
      %459 = vst [vmem:[%s283 + $0x14] sm:$0xf] %v451
      %460 = vst [vmem:[%s283 + $0x18] sm:$0xf] %v452
      %461 = vst [vmem:[%s283 + $0x1c] sm:$0xf] %v453
      %s462 = smul.u32 8, %s20
      %p463 = scmp.lt.s32.totalorder %s462, 15
      %s464 = scalar_select %p463, %s462, 15
      %p465 = scmp.lt.s32.totalorder %s19, 0
      %s466 = scalar_select %p465, %s19, 0
      %s467 = sadd.s32 %s466, %s464
      %s468 = smul.addr %s467, 4
      %s469 = scalar_lea.vmem %s4, %s468
      // Predicated region
      $region37: #{_lambda_.14} parent=35 // pred_check
        %p470 = pneg %p153
      $region38: #{_lambda_.14} parent=35 // pred_check_branch
        %472 = sbr.rel (%p470) target = $region40
      $region39: #{_lambda_.14} parent=35 // pred_region
        %s473 = smul.u32 8, %s20
      $region40: #{_lambda_.14} parent=35 // pred_fallthru
        _
    $region36: #{_lambda_.14} parent=5 // pred_fallthru
      _
    %p474 = scmp.le.s32.totalorder 2, %s10
    // Predicated region
    $region41: #{_lambda_.14} parent=5 // pred_check
      %p475 = pneg %p474
    $region42: #{_lambda_.14} parent=5 // pred_check_branch
      %477 = sbr.rel (%p475) target = $region44
    $region43: #{_lambda_.14} parent=5 // pred_region
      %s478 = ssub.s32 %s10, 2
      // Predicated region
      $region45: #{_lambda_.14} parent=43 // pred_check
        %p479 = pneg %p159
      $region46: #{_lambda_.14} parent=43 // pred_check_branch
        %481 = sbr.rel (%p479) target = $region48
      $region47: #{_lambda_.14} parent=43 // pred_region
        %s482 = smul.u32 8, %s22
        %p483 = scmp.lt.s32.totalorder %s482, 15
        %s484 = scalar_select %p483, %s482, 15
        %p485 = scmp.lt.s32.totalorder %s21, 0
        %s486 = scalar_select %p485, %s21, 0
        %s487 = sadd.s32 %s486, %s484
        %s488 = smul.addr %s487, 4
        %s489 = scalar_lea.vmem %s4, %s488
      $region48: #{_lambda_.14} parent=43 // pred_fallthru
        _
    $region44: #{_lambda_.14} parent=5 // pred_fallthru
      _
  $region6: #{_lambda_.14} parent=0 // loop_footer
    %s14 = sadd.s32 1, %s10
  $region7: #{_lambda_.14} parent=0 // loop_footer_branch
    %9 = sbr.rel target = $region3
  $region8: #{_lambda_.14} parent=0 // loop_exit
    _

// kernel: _lambda_.16
$region0: #{_lambda_.16}
  #allocation0 [shape = 'u32[]', space=smem, size = 0x4, offset = 0x4, fixed_abs, tag = 'smem constant byte address 0x4 - core index']
  #allocation1 [shape = 'u32[72,128]{1,0:T(1,128)}', space=vmem, size = 0x9000, scoped, tag = 'internal scratch']
  %s0 = inlined_call_operand.vmem [shape: bf16[32,128], index: 0, kind: input, shape index: {}]
  %s1 = inlined_call_operand.vmem [shape: bf16[128,128], index: 1, kind: input, shape index: {}]
  %s2 = inlined_call_operand.vmem [shape: f32[1,128], index: 2, kind: input, shape index: {}]
  %s3 = inlined_call_operand.vmem [shape: bf16[32,128], index: 3, kind: output, shape index: {}]
  %s4 = sld [smem:[#allocation0]]
  $region45: #{_lambda_.16} parent=0
    _
  %s6 = ssub.s32 1, %s4
  %s7 = scalar_select 0, %s6, %s4
  loop: start=0, step=1, limit=4
  $region2: #{_lambda_.16} parent=0 // loop_pre_header
    _
  $region3: #{_lambda_.16} parent=0 // loop_header
    %s9 = sphi 0, %s13
    %p10 = scmp.ge.s32.totalorder %s9, 4
    %s16 = sphi 0, %s28
    %s17 = sphi 0, %s24
    %s18 = sphi 0, %s16
    %s19 = sphi 0, %s17
    %s20 = sphi 0, %s18
    %s21 = sphi 0, %s19
    %s31 = sphi 0, %s33
    %s34 = sphi 0, %s31
    %s35 = sphi 0, %s34
    %s51 = sphi 0, %s35
    %s57 = sphi 0, %s59
    %s60 = sphi 0, %s57
    %s61 = sphi 0, %s60
    %s77 = sphi 0, %s61
    %s83 = sphi 0, %s85
    %s86 = sphi 0, %s83
    %s87 = sphi 0, %s86
    %s103 = sphi 0, %s87
    %s111 = sphi 0, %s113
    %s114 = sphi 0, %s111
    %s115 = sphi 0, %s114
    %s131 = sphi 0, %s115
  $region4: #{_lambda_.16} parent=0 // loop_header_branch
    %12 = sbr.rel (%p10) target = $region8
  $region5: #{_lambda_.16} parent=0 // loop_body
    %s14 = ssub.s32 %s9, 1
    %s15 = ssub.s32 %s9, 2
    %s22 = sadd.s32 1, %s17
    %p23 = scmp.ge.s32.totalorder %s22, 2
    %s24 = scalar_select %p23, 0, %s22
    %s25 = sadd.s32 1, %s16
    %s26 = scalar_select %p23, %s25, %s16
    %p27 = scmp.ge.s32.totalorder %s26, 1
    %s28 = scalar_select %p27, 0, %s26
    %s29 = ssub.s32 %s17, %s24
    %p30 = scmp.eq.s32.totalorder %s29, 0
    %s32 = sadd.s32 %s31, 1
    %s33 = scalar_select %p30, %s31, %s32
    %p36 = pneg %p30
    %p37 = scmp.eq.s32.totalorder %s9, 1
    %p38 = por %p36, %p37
    %p39 = scmp.ne.s32.totalorder %s31, %s34
    %p40 = scmp.eq.s32.totalorder %s9, 0
    %p41 = por %p39, %p40
    %p42 = scmp.ne.s32.totalorder %s31, %s34
    %p43 = scmp.eq.s32.totalorder %s14, 1
    %p44 = por %p42, %p43
    %p45 = scmp.ne.s32.totalorder %s34, %s35
    %p46 = scmp.eq.s32.totalorder %s14, 0
    %p47 = por %p45, %p46
    %p48 = scmp.ne.s32.totalorder %s34, %s35
    %p49 = scmp.eq.s32.totalorder %s15, 1
    %p50 = por %p48, %p49
    %p52 = scmp.ne.s32.totalorder %s35, %s51
    %p53 = scmp.eq.s32.totalorder %s15, 0
    %p54 = por %p52, %p53
    %s55 = ssub.s32 %s16, %s28
    %p56 = scmp.eq.s32.totalorder %s55, 0
    %s58 = sadd.s32 %s57, 1
    %s59 = scalar_select %p56, %s57, %s58
    %p62 = pneg %p56
    %p63 = scmp.eq.s32.totalorder %s9, 1
    %p64 = por %p62, %p63
    %p65 = scmp.ne.s32.totalorder %s57, %s60
    %p66 = scmp.eq.s32.totalorder %s9, 0
    %p67 = por %p65, %p66
    %p68 = scmp.ne.s32.totalorder %s57, %s60
    %p69 = scmp.eq.s32.totalorder %s14, 1
    %p70 = por %p68, %p69
    %p71 = scmp.ne.s32.totalorder %s60, %s61
    %p72 = scmp.eq.s32.totalorder %s14, 0
    %p73 = por %p71, %p72
    %p74 = scmp.ne.s32.totalorder %s60, %s61
    %p75 = scmp.eq.s32.totalorder %s15, 1
    %p76 = por %p74, %p75
    %p78 = scmp.ne.s32.totalorder %s61, %s77
    %p79 = scmp.eq.s32.totalorder %s15, 0
    %p80 = por %p78, %p79
    %s81 = ssub.s32 %s16, %s28
    %p82 = scmp.eq.s32.totalorder %s81, 0
    %s84 = sadd.s32 %s83, 1
    %s85 = scalar_select %p82, %s83, %s84
    %p88 = pneg %p82
    %p89 = scmp.eq.s32.totalorder %s9, 1
    %p90 = por %p88, %p89
    %p91 = scmp.ne.s32.totalorder %s83, %s86
    %p92 = scmp.eq.s32.totalorder %s9, 0
    %p93 = por %p91, %p92
    %p94 = scmp.ne.s32.totalorder %s83, %s86
    %p95 = scmp.eq.s32.totalorder %s14, 1
    %p96 = por %p94, %p95
    %p97 = scmp.ne.s32.totalorder %s86, %s87
    %p98 = scmp.eq.s32.totalorder %s14, 0
    %p99 = por %p97, %p98
    %p100 = scmp.ne.s32.totalorder %s86, %s87
    %p101 = scmp.eq.s32.totalorder %s15, 1
    %p102 = por %p100, %p101
    %p104 = scmp.ne.s32.totalorder %s87, %s103
    %p105 = scmp.eq.s32.totalorder %s15, 0
    %p106 = por %p104, %p105
    %s107 = ssub.s32 %s17, %s24
    %s108 = ssub.s32 %s16, %s28
    %s109 = sor.u32 %s107, %s108
    %p110 = scmp.eq.s32.totalorder %s109, 0
    %s112 = sadd.s32 %s111, 1
    %s113 = scalar_select %p110, %s111, %s112
    %p116 = pneg %p110
    %p117 = scmp.eq.s32.totalorder %s9, 1
    %p118 = por %p116, %p117
    %p119 = scmp.ne.s32.totalorder %s111, %s114
    %p120 = scmp.eq.s32.totalorder %s9, 0
    %p121 = por %p119, %p120
    %p122 = scmp.ne.s32.totalorder %s111, %s114
    %p123 = scmp.eq.s32.totalorder %s14, 1
    %p124 = por %p122, %p123
    %p125 = scmp.ne.s32.totalorder %s114, %s115
    %p126 = scmp.eq.s32.totalorder %s14, 0
    %p127 = por %p125, %p126
    %p128 = scmp.ne.s32.totalorder %s114, %s115
    %p129 = scmp.eq.s32.totalorder %s15, 1
    %p130 = por %p128, %p129
    %p132 = scmp.ne.s32.totalorder %s115, %s131
    %p133 = scmp.eq.s32.totalorder %s15, 0
    %p134 = por %p132, %p133
    %p135 = scmp.le.s32.totalorder 1, %s9
    %p136 = scmp.lt.s32.totalorder %s9, 3
    %p137 = pnand %p135, %p136
    %p138 = pneg %p137
    // Predicated region
    $region9: #{_lambda_.16} parent=5 // pred_check
      _
    $region10: #{_lambda_.16} parent=5 // pred_check_branch
      %140 = sbr.rel (%p137) target = $region12
    $region11: #{_lambda_.16} parent=5 // pred_region
      %s141 = ssub.s32 %s9, 1
      // Predicated region
      $region13: #{_lambda_.16} parent=11 // pred_check
        %p142 = pneg %p73
      $region14: #{_lambda_.16} parent=11 // pred_check_branch
        %144 = sbr.rel (%p142) target = $region16
      $region15: #{_lambda_.16} parent=11 // pred_region
        %p145 = scmp.lt.s32.totalorder %s18, 0
        %s146 = scalar_select %p145, %s18, 0
        %s147 = smul.addr %s146, 4
        %s148 = scalar_lea.vmem %s1, %s147
      $region16: #{_lambda_.16} parent=11 // pred_fallthru
        _
      // Predicated region
      $region17: #{_lambda_.16} parent=11 // pred_check
        %p149 = pneg %p99
      $region18: #{_lambda_.16} parent=11 // pred_check_branch
        %151 = sbr.rel (%p149) target = $region20
      $region19: #{_lambda_.16} parent=11 // pred_region
        %p152 = scmp.lt.s32.totalorder %s18, 0
        %s153 = scalar_select %p152, %s18, 0
        %s154 = scalar_lea.vmem %s2, %s153
      $region20: #{_lambda_.16} parent=11 // pred_fallthru
        _
    $region12: #{_lambda_.16} parent=5 // pred_fallthru
      _
    %p155 = scmp.lt.s32.totalorder %s9, 2
    // Predicated region
    $region21: #{_lambda_.16} parent=5 // pred_check
      %p156 = pneg %p155
    $region22: #{_lambda_.16} parent=5 // pred_check_branch
      %158 = sbr.rel (%p156) target = $region24
    $region23: #{_lambda_.16} parent=5 // pred_region
      // Predicated region
      $region25: #{_lambda_.16} parent=23 // pred_check
        %p159 = pneg %p41
      $region26: #{_lambda_.16} parent=23 // pred_check_branch
        %161 = sbr.rel (%p159) target = $region28
      $region27: #{_lambda_.16} parent=23 // pred_region
        %s162 = smul.u32 2, %s17
        %p163 = scmp.lt.s32.totalorder %s162, 3
        %s164 = scalar_select %p163, %s162, 3
        %s165 = smul.addr %s164, 4
        %s166 = scalar_lea.vmem %s0, %s165
        %s167 = smul.u32 2, %s17
      $region28: #{_lambda_.16} parent=23 // pred_fallthru
        _
    $region24: #{_lambda_.16} parent=5 // pred_fallthru
      _
    %p168 = scmp.le.s32.totalorder 1, %s9
    %p169 = scmp.lt.s32.totalorder %s9, 3
    %p170 = pnand %p168, %p169
    %p171 = pneg %p170
    // Predicated region
    $region29: #{_lambda_.16} parent=5 // pred_check
      _
    $region30: #{_lambda_.16} parent=5 // pred_check_branch
      %173 = sbr.rel (%p170) target = $region32
    $region31: #{_lambda_.16} parent=5 // pred_region
      %s174 = ssub.s32 %s9, 1
      %s175 = smul.u32 2, %s19
      %p176 = scmp.lt.s32.totalorder %s175, 3
      %s177 = scalar_select %p176, %s175, 3
      %s178 = smul.addr %s177, 4
      %s179 = scalar_lea.vmem %s0, %s178
      %p180 = pneg %p47
      %p181 = pneg %p44
      %p182 = scmp.lt.s32.totalorder %s18, 0
      %s183 = scalar_select %p182, %s18, 0
      %s184 = smul.addr %s183, 4
      %s185 = scalar_lea.vmem %s1, %s184
      %p186 = pneg %p73
      %p187 = pneg %p70
      %p188 = scmp.lt.s32.totalorder %s18, 0
      %s189 = scalar_select %p188, %s18, 0
      %s190 = scalar_lea.vmem %s2, %s189
      %p191 = pneg %p99
      %p192 = pneg %p96
      %p193 = pneg %p127
      %p194 = pneg %p124
      %s195 = smul.u32 2, %s19
      %p196 = scmp.lt.s32.totalorder %s195, 3
      %s197 = scalar_select %p196, %s195, 3
      %p198 = scmp.lt.s32.totalorder %s18, 0
      %s199 = scalar_select %p198, %s18, 0
      %s200 = sadd.s32 %s199, %s197
      %s201 = smul.addr %s200, 4
      %s202 = scalar_lea.vmem %s3, %s201
      %s203 = smul.u32 2, %s19
      %p204 = scmp.lt.s32.totalorder %s203, 3
      %s205 = scalar_select %p204, %s203, 3
      %s206 = smul.addr %s205, 4
      %s207 = scalar_lea.vmem %s0, %s206
      %s208 = smul.u32 2, %s19
      %p209 = scmp.lt.s32.totalorder %s18, 0
      %s210 = scalar_select %p209, %s18, 0
      %s211 = smul.addr %s210, 4
      %s212 = scalar_lea.vmem %s1, %s211
      %p213 = scmp.lt.s32.totalorder %s18, 0
      %s214 = scalar_select %p213, %s18, 0
      %s215 = scalar_lea.vmem %s2, %s214
      %s216 = smul.u32 2, %s19
      %p217 = scmp.lt.s32.totalorder %s216, 3
      %s218 = scalar_select %p217, %s216, 3
      %p219 = scmp.lt.s32.totalorder %s18, 0
      %s220 = scalar_select %p219, %s18, 0
      %s221 = sadd.s32 %s220, %s218
      %s222 = smul.addr %s221, 4
      %s223 = scalar_lea.vmem %s3, %s222
      %s224 = smul.u32 2, %s19
      %v225 = vld [vmem:[%s207] sm:$0xf]
      %v226 = vld [vmem:[%s207 + $0x4] sm:$0xf]
      %v227 = vld [vmem:[%s212] sm:$0xf]
      %v228 = vld [vmem:[%s212 + $0x4] sm:$0xf]
      %v229 = vld [vmem:[%s212 + $0x8] sm:$0xf]
      %v230 = vld [vmem:[%s212 + $0xc] sm:$0xf]
      %v231 = vld [vmem:[%s212 + $0x10] sm:$0xf]
      %v232 = vld [vmem:[%s212 + $0x14] sm:$0xf]
      %v233 = vld [vmem:[%s212 + $0x18] sm:$0xf]
      %v234 = vld [vmem:[%s212 + $0x1c] sm:$0xf]
      %v235 = vld [vmem:[%s212 + $0x20] sm:$0xf]
      %v236 = vld [vmem:[%s212 + $0x24] sm:$0xf]
      %v237 = vld [vmem:[%s212 + $0x28] sm:$0xf]
      %v238 = vld [vmem:[%s212 + $0x2c] sm:$0xf]
      %v239 = vld [vmem:[%s212 + $0x30] sm:$0xf]
      %v240 = vld [vmem:[%s212 + $0x34] sm:$0xf]
      %v241 = vld [vmem:[%s212 + $0x38] sm:$0xf]
      %v242 = vld [vmem:[%s212 + $0x3c] sm:$0xf]
      %v243 = vld [vmem:[%s215] sm:$0x1]
      %v245 = vperm.slane %v243, 0
      %v249 = vunpack.c.l.b16 %v225
      %v250 = vunpack.c.l.b16 %v226
      %v251 = vpack.c.b16 %v250, %v249
      %v269 = vunpack.c.l.b16 %v227
      %v270 = vunpack.c.l.b16 %v228
      %v271 = vunpack.c.l.b16 %v229
      %v272 = vunpack.c.l.b16 %v230
      %v273 = vunpack.c.l.b16 %v231
      %v274 = vunpack.c.l.b16 %v232
      %v275 = vunpack.c.l.b16 %v233
      %v276 = vunpack.c.l.b16 %v234
      %v277 = vunpack.c.l.b16 %v235
      %v278 = vunpack.c.l.b16 %v236
      %v279 = vunpack.c.l.b16 %v237
      %v280 = vunpack.c.l.b16 %v238
      %v281 = vunpack.c.l.b16 %v239
      %v282 = vunpack.c.l.b16 %v240
      %v283 = vunpack.c.l.b16 %v241
      %v284 = vunpack.c.l.b16 %v242
      %v285 = vpack.c.b16 %v270, %v269
      %v286 = vpack.c.b16 %v272, %v271
      %v287 = vpack.c.b16 %v274, %v273
      %v288 = vpack.c.b16 %v276, %v275
      %v289 = vpack.c.b16 %v278, %v277
      %v290 = vpack.c.b16 %v280, %v279
      %v291 = vpack.c.b16 %v282, %v281
      %v292 = vpack.c.b16 %v284, %v283
      %301 = vmatpush.bf16.msra.mxu0 %v292
      %302 = vmatpush.bf16.msra.mxu0 %v291
      %303 = vmatpush.bf16.msra.mxu0 %v290
      %304 = vmatpush.bf16.msra.mxu0 %v289
      %305 = vmatpush.bf16.msra.mxu0 %v288
      %306 = vmatpush.bf16.msra.mxu0 %v287
      %307 = vmatpush.bf16.msra.mxu0 %v286
      %308 = vmatpush.bf16.msra.mxu0 %v285
      %309 = vmatmul.bf16.gmra.mxu0 %v251
      %v310 = vpop.f32.mrf.mxu0
      %v311 = vadd.f32 %v245, %v310
      %v312 = vpop.f32.mrf.mxu0
      %v313 = vadd.f32 %v245, %v312
      %314 = vdwg.mxu0
      %v315 = vmax.f32 %v311, 0.0
      %v316 = vmax.f32 %v313, 0.0
      %v317 = vpack.c.bf16 %v315, %v315
      %v318 = vpack.c.bf16 %v316, %v316
      %319 = vst [vmem:[%s223] sm:$0xf] %v317
      %320 = vst [vmem:[%s223 + $0x4] sm:$0xf] %v318
      %s321 = smul.u32 2, %s19
      %p322 = scmp.lt.s32.totalorder %s321, 3
      %s323 = scalar_select %p322, %s321, 3
      %p324 = scmp.lt.s32.totalorder %s18, 0
      %s325 = scalar_select %p324, %s18, 0
      %s326 = sadd.s32 %s325, %s323
      %s327 = smul.addr %s326, 4
      %s328 = scalar_lea.vmem %s3, %s327
      // Predicated region
      $region33: #{_lambda_.16} parent=31 // pred_check
        %p329 = pneg %p124
      $region34: #{_lambda_.16} parent=31 // pred_check_branch
        %331 = sbr.rel (%p329) target = $region36
      $region35: #{_lambda_.16} parent=31 // pred_region
        %s332 = smul.u32 2, %s19
      $region36: #{_lambda_.16} parent=31 // pred_fallthru
        _
    $region32: #{_lambda_.16} parent=5 // pred_fallthru
      _
    %p333 = scmp.le.s32.totalorder 2, %s9
    // Predicated region
    $region37: #{_lambda_.16} parent=5 // pred_check
      %p334 = pneg %p333
    $region38: #{_lambda_.16} parent=5 // pred_check_branch
      %336 = sbr.rel (%p334) target = $region40
    $region39: #{_lambda_.16} parent=5 // pred_region
      %s337 = ssub.s32 %s9, 2
      // Predicated region
      $region41: #{_lambda_.16} parent=39 // pred_check
        %p338 = pneg %p130
      $region42: #{_lambda_.16} parent=39 // pred_check_branch
        %340 = sbr.rel (%p338) target = $region44
      $region43: #{_lambda_.16} parent=39 // pred_region
        %s341 = smul.u32 2, %s21
        %p342 = scmp.lt.s32.totalorder %s341, 3
        %s343 = scalar_select %p342, %s341, 3
        %p344 = scmp.lt.s32.totalorder %s20, 0
        %s345 = scalar_select %p344, %s20, 0
        %s346 = sadd.s32 %s345, %s343
        %s347 = smul.addr %s346, 4
        %s348 = scalar_lea.vmem %s3, %s347
      $region44: #{_lambda_.16} parent=39 // pred_fallthru
        _
    $region40: #{_lambda_.16} parent=5 // pred_fallthru
      _
  $region6: #{_lambda_.16} parent=0 // loop_footer
    %s13 = sadd.s32 1, %s9
  $region7: #{_lambda_.16} parent=0 // loop_footer_branch
    %8 = sbr.rel target = $region3
  $region8: #{_lambda_.16} parent=0 // loop_exit
    _

// kernel: _lambda_.17
$region0: #{_lambda_.17}
  #allocation0 [shape = 'u32[]', space=smem, size = 0x4, offset = 0x4, fixed_abs, tag = 'smem constant byte address 0x4 - core index']
  #allocation1 [shape = 'u32[72,128]{1,0:T(1,128)}', space=vmem, size = 0x9000, scoped, tag = 'internal scratch']
  %s0 = inlined_call_operand.vmem [shape: bf16[32,256], index: 0, kind: input, shape index: {}]
  %s1 = inlined_call_operand.vmem [shape: bf16[256,128], index: 1, kind: input, shape index: {}]
  %s2 = inlined_call_operand.vmem [shape: f32[1,128], index: 2, kind: input, shape index: {}]
  %s3 = inlined_call_operand.vmem [shape: bf16[32,128], index: 3, kind: input, shape index: {}]
  %s4 = inlined_call_operand.vmem [shape: bf16[32,128], index: 4, kind: output, shape index: {}]
  %s5 = sld [smem:[#allocation0]]
  $region49: #{_lambda_.17} parent=0
    _
  %s7 = ssub.s32 1, %s5
  %s8 = scalar_select 0, %s7, %s5
  loop: start=0, step=1, limit=4
  $region2: #{_lambda_.17} parent=0 // loop_pre_header
    _
  $region3: #{_lambda_.17} parent=0 // loop_header
    %s10 = sphi 0, %s14
    %p11 = scmp.ge.s32.totalorder %s10, 4
    %s17 = sphi 0, %s29
    %s18 = sphi 0, %s25
    %s19 = sphi 0, %s17
    %s20 = sphi 0, %s18
    %s21 = sphi 0, %s19
    %s22 = sphi 0, %s20
    %s32 = sphi 0, %s34
    %s35 = sphi 0, %s32
    %s36 = sphi 0, %s35
    %s52 = sphi 0, %s36
    %s58 = sphi 0, %s60
    %s61 = sphi 0, %s58
    %s62 = sphi 0, %s61
    %s78 = sphi 0, %s62
    %s84 = sphi 0, %s86
    %s87 = sphi 0, %s84
    %s88 = sphi 0, %s87
    %s104 = sphi 0, %s88
    %s112 = sphi 0, %s114
    %s115 = sphi 0, %s112
    %s116 = sphi 0, %s115
    %s132 = sphi 0, %s116
    %s140 = sphi 0, %s142
    %s143 = sphi 0, %s140
    %s144 = sphi 0, %s143
    %s160 = sphi 0, %s144
  $region4: #{_lambda_.17} parent=0 // loop_header_branch
    %13 = sbr.rel (%p11) target = $region8
  $region5: #{_lambda_.17} parent=0 // loop_body
    %s15 = ssub.s32 %s10, 1
    %s16 = ssub.s32 %s10, 2
    %s23 = sadd.s32 1, %s18
    %p24 = scmp.ge.s32.totalorder %s23, 2
    %s25 = scalar_select %p24, 0, %s23
    %s26 = sadd.s32 1, %s17
    %s27 = scalar_select %p24, %s26, %s17
    %p28 = scmp.ge.s32.totalorder %s27, 1
    %s29 = scalar_select %p28, 0, %s27
    %s30 = ssub.s32 %s18, %s25
    %p31 = scmp.eq.s32.totalorder %s30, 0
    %s33 = sadd.s32 %s32, 1
    %s34 = scalar_select %p31, %s32, %s33
    %p37 = pneg %p31
    %p38 = scmp.eq.s32.totalorder %s10, 1
    %p39 = por %p37, %p38
    %p40 = scmp.ne.s32.totalorder %s32, %s35
    %p41 = scmp.eq.s32.totalorder %s10, 0
    %p42 = por %p40, %p41
    %p43 = scmp.ne.s32.totalorder %s32, %s35
    %p44 = scmp.eq.s32.totalorder %s15, 1
    %p45 = por %p43, %p44
    %p46 = scmp.ne.s32.totalorder %s35, %s36
    %p47 = scmp.eq.s32.totalorder %s15, 0
    %p48 = por %p46, %p47
    %p49 = scmp.ne.s32.totalorder %s35, %s36
    %p50 = scmp.eq.s32.totalorder %s16, 1
    %p51 = por %p49, %p50
    %p53 = scmp.ne.s32.totalorder %s36, %s52
    %p54 = scmp.eq.s32.totalorder %s16, 0
    %p55 = por %p53, %p54
    %s56 = ssub.s32 %s17, %s29
    %p57 = scmp.eq.s32.totalorder %s56, 0
    %s59 = sadd.s32 %s58, 1
    %s60 = scalar_select %p57, %s58, %s59
    %p63 = pneg %p57
    %p64 = scmp.eq.s32.totalorder %s10, 1
    %p65 = por %p63, %p64
    %p66 = scmp.ne.s32.totalorder %s58, %s61
    %p67 = scmp.eq.s32.totalorder %s10, 0
    %p68 = por %p66, %p67
    %p69 = scmp.ne.s32.totalorder %s58, %s61
    %p70 = scmp.eq.s32.totalorder %s15, 1
    %p71 = por %p69, %p70
    %p72 = scmp.ne.s32.totalorder %s61, %s62
    %p73 = scmp.eq.s32.totalorder %s15, 0
    %p74 = por %p72, %p73
    %p75 = scmp.ne.s32.totalorder %s61, %s62
    %p76 = scmp.eq.s32.totalorder %s16, 1
    %p77 = por %p75, %p76
    %p79 = scmp.ne.s32.totalorder %s62, %s78
    %p80 = scmp.eq.s32.totalorder %s16, 0
    %p81 = por %p79, %p80
    %s82 = ssub.s32 %s17, %s29
    %p83 = scmp.eq.s32.totalorder %s82, 0
    %s85 = sadd.s32 %s84, 1
    %s86 = scalar_select %p83, %s84, %s85
    %p89 = pneg %p83
    %p90 = scmp.eq.s32.totalorder %s10, 1
    %p91 = por %p89, %p90
    %p92 = scmp.ne.s32.totalorder %s84, %s87
    %p93 = scmp.eq.s32.totalorder %s10, 0
    %p94 = por %p92, %p93
    %p95 = scmp.ne.s32.totalorder %s84, %s87
    %p96 = scmp.eq.s32.totalorder %s15, 1
    %p97 = por %p95, %p96
    %p98 = scmp.ne.s32.totalorder %s87, %s88
    %p99 = scmp.eq.s32.totalorder %s15, 0
    %p100 = por %p98, %p99
    %p101 = scmp.ne.s32.totalorder %s87, %s88
    %p102 = scmp.eq.s32.totalorder %s16, 1
    %p103 = por %p101, %p102
    %p105 = scmp.ne.s32.totalorder %s88, %s104
    %p106 = scmp.eq.s32.totalorder %s16, 0
    %p107 = por %p105, %p106
    %s108 = ssub.s32 %s18, %s25
    %s109 = ssub.s32 %s17, %s29
    %s110 = sor.u32 %s108, %s109
    %p111 = scmp.eq.s32.totalorder %s110, 0
    %s113 = sadd.s32 %s112, 1
    %s114 = scalar_select %p111, %s112, %s113
    %p117 = pneg %p111
    %p118 = scmp.eq.s32.totalorder %s10, 1
    %p119 = por %p117, %p118
    %p120 = scmp.ne.s32.totalorder %s112, %s115
    %p121 = scmp.eq.s32.totalorder %s10, 0
    %p122 = por %p120, %p121
    %p123 = scmp.ne.s32.totalorder %s112, %s115
    %p124 = scmp.eq.s32.totalorder %s15, 1
    %p125 = por %p123, %p124
    %p126 = scmp.ne.s32.totalorder %s115, %s116
    %p127 = scmp.eq.s32.totalorder %s15, 0
    %p128 = por %p126, %p127
    %p129 = scmp.ne.s32.totalorder %s115, %s116
    %p130 = scmp.eq.s32.totalorder %s16, 1
    %p131 = por %p129, %p130
    %p133 = scmp.ne.s32.totalorder %s116, %s132
    %p134 = scmp.eq.s32.totalorder %s16, 0
    %p135 = por %p133, %p134
    %s136 = ssub.s32 %s18, %s25
    %s137 = ssub.s32 %s17, %s29
    %s138 = sor.u32 %s136, %s137
    %p139 = scmp.eq.s32.totalorder %s138, 0
    %s141 = sadd.s32 %s140, 1
    %s142 = scalar_select %p139, %s140, %s141
    %p145 = pneg %p139
    %p146 = scmp.eq.s32.totalorder %s10, 1
    %p147 = por %p145, %p146
    %p148 = scmp.ne.s32.totalorder %s140, %s143
    %p149 = scmp.eq.s32.totalorder %s10, 0
    %p150 = por %p148, %p149
    %p151 = scmp.ne.s32.totalorder %s140, %s143
    %p152 = scmp.eq.s32.totalorder %s15, 1
    %p153 = por %p151, %p152
    %p154 = scmp.ne.s32.totalorder %s143, %s144
    %p155 = scmp.eq.s32.totalorder %s15, 0
    %p156 = por %p154, %p155
    %p157 = scmp.ne.s32.totalorder %s143, %s144
    %p158 = scmp.eq.s32.totalorder %s16, 1
    %p159 = por %p157, %p158
    %p161 = scmp.ne.s32.totalorder %s144, %s160
    %p162 = scmp.eq.s32.totalorder %s16, 0
    %p163 = por %p161, %p162
    %p164 = scmp.le.s32.totalorder 1, %s10
    %p165 = scmp.lt.s32.totalorder %s10, 3
    %p166 = pnand %p164, %p165
    %p167 = pneg %p166
    // Predicated region
    $region9: #{_lambda_.17} parent=5 // pred_check
      _
    $region10: #{_lambda_.17} parent=5 // pred_check_branch
      %169 = sbr.rel (%p166) target = $region12
    $region11: #{_lambda_.17} parent=5 // pred_region
      %s170 = ssub.s32 %s10, 1
      // Predicated region
      $region13: #{_lambda_.17} parent=11 // pred_check
        %p171 = pneg %p74
      $region14: #{_lambda_.17} parent=11 // pred_check_branch
        %173 = sbr.rel (%p171) target = $region16
      $region15: #{_lambda_.17} parent=11 // pred_region
        %p174 = scmp.lt.s32.totalorder %s19, 0
        %s175 = scalar_select %p174, %s19, 0
        %s176 = smul.addr %s175, 4
        %s177 = scalar_lea.vmem %s1, %s176
      $region16: #{_lambda_.17} parent=11 // pred_fallthru
        _
      // Predicated region
      $region17: #{_lambda_.17} parent=11 // pred_check
        %p178 = pneg %p100
      $region18: #{_lambda_.17} parent=11 // pred_check_branch
        %180 = sbr.rel (%p178) target = $region20
      $region19: #{_lambda_.17} parent=11 // pred_region
        %p181 = scmp.lt.s32.totalorder %s19, 0
        %s182 = scalar_select %p181, %s19, 0
        %s183 = scalar_lea.vmem %s2, %s182
      $region20: #{_lambda_.17} parent=11 // pred_fallthru
        _
    $region12: #{_lambda_.17} parent=5 // pred_fallthru
      _
    %p184 = scmp.lt.s32.totalorder %s10, 2
    // Predicated region
    $region21: #{_lambda_.17} parent=5 // pred_check
      %p185 = pneg %p184
    $region22: #{_lambda_.17} parent=5 // pred_check_branch
      %187 = sbr.rel (%p185) target = $region24
    $region23: #{_lambda_.17} parent=5 // pred_region
      // Predicated region
      $region25: #{_lambda_.17} parent=23 // pred_check
        %p188 = pneg %p42
      $region26: #{_lambda_.17} parent=23 // pred_check_branch
        %190 = sbr.rel (%p188) target = $region28
      $region27: #{_lambda_.17} parent=23 // pred_region
        %s191 = smul.u32 2, %s18
        %p192 = scmp.lt.s32.totalorder %s191, 3
        %s193 = scalar_select %p192, %s191, 3
        %s194 = smul.addr %s193, 2
        %s195 = smul.addr %s194, 4
        %s196 = scalar_lea.vmem %s0, %s195
        %s197 = smul.u32 2, %s18
      $region28: #{_lambda_.17} parent=23 // pred_fallthru
        _
      // Predicated region
      $region29: #{_lambda_.17} parent=23 // pred_check
        %p198 = pneg %p122
      $region30: #{_lambda_.17} parent=23 // pred_check_branch
        %200 = sbr.rel (%p198) target = $region32
      $region31: #{_lambda_.17} parent=23 // pred_region
        %s201 = smul.u32 2, %s18
        %p202 = scmp.lt.s32.totalorder %s201, 3
        %s203 = scalar_select %p202, %s201, 3
        %p204 = scmp.lt.s32.totalorder %s17, 0
        %s205 = scalar_select %p204, %s17, 0
        %s206 = sadd.s32 %s205, %s203
        %s207 = smul.addr %s206, 4
        %s208 = scalar_lea.vmem %s3, %s207
        %s209 = smul.u32 2, %s18
      $region32: #{_lambda_.17} parent=23 // pred_fallthru
        _
    $region24: #{_lambda_.17} parent=5 // pred_fallthru
      _
    %p210 = scmp.le.s32.totalorder 1, %s10
    %p211 = scmp.lt.s32.totalorder %s10, 3
    %p212 = pnand %p210, %p211
    %p213 = pneg %p212
    // Predicated region
    $region33: #{_lambda_.17} parent=5 // pred_check
      _
    $region34: #{_lambda_.17} parent=5 // pred_check_branch
      %215 = sbr.rel (%p212) target = $region36
    $region35: #{_lambda_.17} parent=5 // pred_region
      %s216 = ssub.s32 %s10, 1
      %s217 = smul.u32 2, %s20
      %p218 = scmp.lt.s32.totalorder %s217, 3
      %s219 = scalar_select %p218, %s217, 3
      %s220 = smul.addr %s219, 2
      %s221 = smul.addr %s220, 4
      %s222 = scalar_lea.vmem %s0, %s221
      %p223 = pneg %p48
      %p224 = pneg %p45
      %p225 = scmp.lt.s32.totalorder %s19, 0
      %s226 = scalar_select %p225, %s19, 0
      %s227 = smul.addr %s226, 4
      %s228 = scalar_lea.vmem %s1, %s227
      %p229 = pneg %p74
      %p230 = pneg %p71
      %p231 = scmp.lt.s32.totalorder %s19, 0
      %s232 = scalar_select %p231, %s19, 0
      %s233 = scalar_lea.vmem %s2, %s232
      %p234 = pneg %p100
      %p235 = pneg %p97
      %s236 = smul.u32 2, %s20
      %p237 = scmp.lt.s32.totalorder %s236, 3
      %s238 = scalar_select %p237, %s236, 3
      %p239 = scmp.lt.s32.totalorder %s19, 0
      %s240 = scalar_select %p239, %s19, 0
      %s241 = sadd.s32 %s240, %s238
      %s242 = smul.addr %s241, 4
      %s243 = scalar_lea.vmem %s3, %s242
      %p244 = pneg %p128
      %p245 = pneg %p125
      %p246 = pneg %p156
      %p247 = pneg %p153
      %s248 = smul.u32 2, %s20
      %p249 = scmp.lt.s32.totalorder %s248, 3
      %s250 = scalar_select %p249, %s248, 3
      %p251 = scmp.lt.s32.totalorder %s19, 0
      %s252 = scalar_select %p251, %s19, 0
      %s253 = sadd.s32 %s252, %s250
      %s254 = smul.addr %s253, 4
      %s255 = scalar_lea.vmem %s4, %s254
      %s256 = smul.u32 2, %s20
      %p257 = scmp.lt.s32.totalorder %s256, 3
      %s258 = scalar_select %p257, %s256, 3
      %s259 = smul.addr %s258, 2
      %s260 = smul.addr %s259, 4
      %s261 = scalar_lea.vmem %s0, %s260
      %s262 = smul.u32 2, %s20
      %p263 = scmp.lt.s32.totalorder %s19, 0
      %s264 = scalar_select %p263, %s19, 0
      %s265 = smul.addr %s264, 4
      %s266 = scalar_lea.vmem %s1, %s265
      %p267 = scmp.lt.s32.totalorder %s19, 0
      %s268 = scalar_select %p267, %s19, 0
      %s269 = scalar_lea.vmem %s2, %s268
      %s270 = smul.u32 2, %s20
      %p271 = scmp.lt.s32.totalorder %s270, 3
      %s272 = scalar_select %p271, %s270, 3
      %p273 = scmp.lt.s32.totalorder %s19, 0
      %s274 = scalar_select %p273, %s19, 0
      %s275 = sadd.s32 %s274, %s272
      %s276 = smul.addr %s275, 4
      %s277 = scalar_lea.vmem %s3, %s276
      %s278 = smul.u32 2, %s20
      %s279 = smul.u32 2, %s20
      %p280 = scmp.lt.s32.totalorder %s279, 3
      %s281 = scalar_select %p280, %s279, 3
      %p282 = scmp.lt.s32.totalorder %s19, 0
      %s283 = scalar_select %p282, %s19, 0
      %s284 = sadd.s32 %s283, %s281
      %s285 = smul.addr %s284, 4
      %s286 = scalar_lea.vmem %s4, %s285
      %s287 = smul.u32 2, %s20
      %v288 = vld [vmem:[%s261] sm:$0xff]
      %v289 = vld [vmem:[%s261 + $0x8] sm:$0xff]
      %v290 = vld [vmem:[%s266] sm:$0xf]
      %v291 = vld [vmem:[%s266 + $0x4] sm:$0xf]
      %v292 = vld [vmem:[%s266 + $0x8] sm:$0xf]
      %v293 = vld [vmem:[%s266 + $0xc] sm:$0xf]
      %v294 = vld [vmem:[%s266 + $0x10] sm:$0xf]
      %v295 = vld [vmem:[%s266 + $0x14] sm:$0xf]
      %v296 = vld [vmem:[%s266 + $0x18] sm:$0xf]
      %v297 = vld [vmem:[%s266 + $0x1c] sm:$0xf]
      %v298 = vld [vmem:[%s266 + $0x20] sm:$0xf]
      %v299 = vld [vmem:[%s266 + $0x24] sm:$0xf]
      %v300 = vld [vmem:[%s266 + $0x28] sm:$0xf]
      %v301 = vld [vmem:[%s266 + $0x2c] sm:$0xf]
      %v302 = vld [vmem:[%s266 + $0x30] sm:$0xf]
      %v303 = vld [vmem:[%s266 + $0x34] sm:$0xf]
      %v304 = vld [vmem:[%s266 + $0x38] sm:$0xf]
      %v305 = vld [vmem:[%s266 + $0x3c] sm:$0xf]
      %v306 = vld [vmem:[%s266 + $0x40] sm:$0xf]
      %v307 = vld [vmem:[%s266 + $0x44] sm:$0xf]
      %v308 = vld [vmem:[%s266 + $0x48] sm:$0xf]
      %v309 = vld [vmem:[%s266 + $0x4c] sm:$0xf]
      %v310 = vld [vmem:[%s266 + $0x50] sm:$0xf]
      %v311 = vld [vmem:[%s266 + $0x54] sm:$0xf]
      %v312 = vld [vmem:[%s266 + $0x58] sm:$0xf]
      %v313 = vld [vmem:[%s266 + $0x5c] sm:$0xf]
      %v314 = vld [vmem:[%s266 + $0x60] sm:$0xf]
      %v315 = vld [vmem:[%s266 + $0x64] sm:$0xf]
      %v316 = vld [vmem:[%s266 + $0x68] sm:$0xf]
      %v317 = vld [vmem:[%s266 + $0x6c] sm:$0xf]
      %v318 = vld [vmem:[%s266 + $0x70] sm:$0xf]
      %v319 = vld [vmem:[%s266 + $0x74] sm:$0xf]
      %v320 = vld [vmem:[%s266 + $0x78] sm:$0xf]
      %v321 = vld [vmem:[%s266 + $0x7c] sm:$0xf]
      %v322 = vld [vmem:[%s269] sm:$0x1]
      %v324 = vperm.slane %v322, 0
      %v328 = vunpack.c.l.b16 %v288
      %v329 = vunpack.c.h.b16 %v288
      %v330 = vunpack.c.l.b16 %v289
      %v331 = vunpack.c.h.b16 %v289
      %v332 = vpack.c.b16 %v330, %v328
      %v333 = vpack.c.b16 %v331, %v329
      %v368 = vunpack.c.l.b16 %v290
      %v369 = vunpack.c.l.b16 %v291
      %v370 = vunpack.c.l.b16 %v292
      %v371 = vunpack.c.l.b16 %v293
      %v372 = vunpack.c.l.b16 %v294
      %v373 = vunpack.c.l.b16 %v295
      %v374 = vunpack.c.l.b16 %v296
      %v375 = vunpack.c.l.b16 %v297
      %v376 = vunpack.c.l.b16 %v298
      %v377 = vunpack.c.l.b16 %v299
      %v378 = vunpack.c.l.b16 %v300
      %v379 = vunpack.c.l.b16 %v301
      %v380 = vunpack.c.l.b16 %v302
      %v381 = vunpack.c.l.b16 %v303
      %v382 = vunpack.c.l.b16 %v304
      %v383 = vunpack.c.l.b16 %v305
      %v384 = vunpack.c.l.b16 %v306
      %v385 = vunpack.c.l.b16 %v307
      %v386 = vunpack.c.l.b16 %v308
      %v387 = vunpack.c.l.b16 %v309
      %v388 = vunpack.c.l.b16 %v310
      %v389 = vunpack.c.l.b16 %v311
      %v390 = vunpack.c.l.b16 %v312
      %v391 = vunpack.c.l.b16 %v313
      %v392 = vunpack.c.l.b16 %v314
      %v393 = vunpack.c.l.b16 %v315
      %v394 = vunpack.c.l.b16 %v316
      %v395 = vunpack.c.l.b16 %v317
      %v396 = vunpack.c.l.b16 %v318
      %v397 = vunpack.c.l.b16 %v319
      %v398 = vunpack.c.l.b16 %v320
      %v399 = vunpack.c.l.b16 %v321
      %v400 = vpack.c.b16 %v369, %v368
      %v401 = vpack.c.b16 %v371, %v370
      %v402 = vpack.c.b16 %v373, %v372
      %v403 = vpack.c.b16 %v375, %v374
      %v404 = vpack.c.b16 %v377, %v376
      %v405 = vpack.c.b16 %v379, %v378
      %v406 = vpack.c.b16 %v381, %v380
      %v407 = vpack.c.b16 %v383, %v382
      %v408 = vpack.c.b16 %v385, %v384
      %v409 = vpack.c.b16 %v387, %v386
      %v410 = vpack.c.b16 %v389, %v388
      %v411 = vpack.c.b16 %v391, %v390
      %v412 = vpack.c.b16 %v393, %v392
      %v413 = vpack.c.b16 %v395, %v394
      %v414 = vpack.c.b16 %v397, %v396
      %v415 = vpack.c.b16 %v399, %v398
      %432 = vmatpush.bf16.msra.mxu0 %v407
      %433 = vmatpush.bf16.msra.mxu0 %v406
      %434 = vmatpush.bf16.msra.mxu0 %v405
      %435 = vmatpush.bf16.msra.mxu0 %v404
      %436 = vmatpush.bf16.msra.mxu0 %v403
      %437 = vmatpush.bf16.msra.mxu0 %v402
      %438 = vmatpush.bf16.msra.mxu0 %v401
      %439 = vmatpush.bf16.msra.mxu0 %v400
      %440 = vmatmul.bf16.gmra.mxu0 %v332
      %v441 = vpop.f32.mrf.mxu0
      %v442 = vadd.f32 %v324, %v441
      %v443 = vpop.f32.mrf.mxu0
      %v444 = vadd.f32 %v324, %v443
      %445 = vdwg.mxu0
      %446 = vmatpush.bf16.msra.mxu0 %v415
      %447 = vmatpush.bf16.msra.mxu0 %v414
      %448 = vmatpush.bf16.msra.mxu0 %v413
      %449 = vmatpush.bf16.msra.mxu0 %v412
      %450 = vmatpush.bf16.msra.mxu0 %v411
      %451 = vmatpush.bf16.msra.mxu0 %v410
      %452 = vmatpush.bf16.msra.mxu0 %v409
      %453 = vmatpush.bf16.msra.mxu0 %v408
      %454 = vmatmul.bf16.gmra.mxu0 %v333
      %v455 = vpop.f32.mrf.mxu0
      %v456 = vadd.f32 %v442, %v455
      %v457 = vpop.f32.mrf.mxu0
      %v458 = vadd.f32 %v444, %v457
      %459 = vdwg.mxu0
      %v460 = vld [vmem:[%s277] sm:$0xf]
      %v461 = vld [vmem:[%s277 + $0x4] sm:$0xf]
      %v462 = vunpack.c.l.bf16 %v460
      %v463 = vunpack.c.l.bf16 %v461
      %v464 = vadd.f32 %v456, %v462
      %v465 = vadd.f32 %v458, %v463
      %v466 = vmax.f32 %v464, 0.0
      %v467 = vmax.f32 %v465, 0.0
      %v468 = vpack.c.bf16 %v466, %v466
      %v469 = vpack.c.bf16 %v467, %v467
      %470 = vst [vmem:[%s286] sm:$0xf] %v468
      %471 = vst [vmem:[%s286 + $0x4] sm:$0xf] %v469
      %s472 = smul.u32 2, %s20
      %p473 = scmp.lt.s32.totalorder %s472, 3
      %s474 = scalar_select %p473, %s472, 3
      %p475 = scmp.lt.s32.totalorder %s19, 0
      %s476 = scalar_select %p475, %s19, 0
      %s477 = sadd.s32 %s476, %s474
      %s478 = smul.addr %s477, 4
      %s479 = scalar_lea.vmem %s4, %s478
      // Predicated region
      $region37: #{_lambda_.17} parent=35 // pred_check
        %p480 = pneg %p153
      $region38: #{_lambda_.17} parent=35 // pred_check_branch
        %482 = sbr.rel (%p480) target = $region40
      $region39: #{_lambda_.17} parent=35 // pred_region
        %s483 = smul.u32 2, %s20
      $region40: #{_lambda_.17} parent=35 // pred_fallthru
        _
    $region36: #{_lambda_.17} parent=5 // pred_fallthru
      _
    %p484 = scmp.le.s32.totalorder 2, %s10
    // Predicated region
    $region41: #{_lambda_.17} parent=5 // pred_check
      %p485 = pneg %p484
    $region42: #{_lambda_.17} parent=5 // pred_check_branch
      %487 = sbr.rel (%p485) target = $region44
    $region43: #{_lambda_.17} parent=5 // pred_region
      %s488 = ssub.s32 %s10, 2
      // Predicated region
      $region45: #{_lambda_.17} parent=43 // pred_check
        %p489 = pneg %p159
      $region46: #{_lambda_.17} parent=43 // pred_check_branch
        %491 = sbr.rel (%p489) target = $region48
      $region47: #{_lambda_.17} parent=43 // pred_region
        %s492 = smul.u32 2, %s22
        %p493 = scmp.lt.s32.totalorder %s492, 3
        %s494 = scalar_select %p493, %s492, 3
        %p495 = scmp.lt.s32.totalorder %s21, 0
        %s496 = scalar_select %p495, %s21, 0
        %s497 = sadd.s32 %s496, %s494
        %s498 = smul.addr %s497, 4
        %s499 = scalar_lea.vmem %s4, %s498
      $region48: #{_lambda_.17} parent=43 // pred_fallthru
        _
    $region44: #{_lambda_.17} parent=5 // pred_fallthru
      _
  $region6: #{_lambda_.17} parent=0 // loop_footer
    %s14 = sadd.s32 1, %s10
  $region7: #{_lambda_.17} parent=0 // loop_footer_branch
    %9 = sbr.rel target = $region3
  $region8: #{_lambda_.17} parent=0 // loop_exit
    _

// kernel: _lambda_.15
$region0: #{_lambda_.15}
  #allocation0 [shape = 'u32[]', space=smem, size = 0x4, offset = 0x4, fixed_abs, tag = 'smem constant byte address 0x4 - core index']
  #allocation1 [shape = 'u32[72,128]{1,0:T(1,128)}', space=vmem, size = 0x9000, scoped, tag = 'internal scratch']
  %s0 = inlined_call_operand.vmem [shape: bf16[32,128], index: 0, kind: input, shape index: {}]
  %s1 = inlined_call_operand.vmem [shape: bf16[128,128], index: 1, kind: input, shape index: {}]
  %s2 = inlined_call_operand.vmem [shape: f32[1,128], index: 2, kind: input, shape index: {}]
  %s3 = inlined_call_operand.vmem [shape: bf16[32,128], index: 3, kind: output, shape index: {}]
  %s4 = sld [smem:[#allocation0]]
  $region45: #{_lambda_.15} parent=0
    _
  %s6 = ssub.s32 1, %s4
  %s7 = scalar_select 0, %s6, %s4
  loop: start=0, step=1, limit=4
  $region2: #{_lambda_.15} parent=0 // loop_pre_header
    _
  $region3: #{_lambda_.15} parent=0 // loop_header
    %s9 = sphi 0, %s13
    %p10 = scmp.ge.s32.totalorder %s9, 4
    %s16 = sphi 0, %s28
    %s17 = sphi 0, %s24
    %s18 = sphi 0, %s16
    %s19 = sphi 0, %s17
    %s20 = sphi 0, %s18
    %s21 = sphi 0, %s19
    %s31 = sphi 0, %s33
    %s34 = sphi 0, %s31
    %s35 = sphi 0, %s34
    %s51 = sphi 0, %s35
    %s57 = sphi 0, %s59
    %s60 = sphi 0, %s57
    %s61 = sphi 0, %s60
    %s77 = sphi 0, %s61
    %s83 = sphi 0, %s85
    %s86 = sphi 0, %s83
    %s87 = sphi 0, %s86
    %s103 = sphi 0, %s87
    %s111 = sphi 0, %s113
    %s114 = sphi 0, %s111
    %s115 = sphi 0, %s114
    %s131 = sphi 0, %s115
  $region4: #{_lambda_.15} parent=0 // loop_header_branch
    %12 = sbr.rel (%p10) target = $region8
  $region5: #{_lambda_.15} parent=0 // loop_body
    %s14 = ssub.s32 %s9, 1
    %s15 = ssub.s32 %s9, 2
    %s22 = sadd.s32 1, %s17
    %p23 = scmp.ge.s32.totalorder %s22, 2
    %s24 = scalar_select %p23, 0, %s22
    %s25 = sadd.s32 1, %s16
    %s26 = scalar_select %p23, %s25, %s16
    %p27 = scmp.ge.s32.totalorder %s26, 1
    %s28 = scalar_select %p27, 0, %s26
    %s29 = ssub.s32 %s17, %s24
    %p30 = scmp.eq.s32.totalorder %s29, 0
    %s32 = sadd.s32 %s31, 1
    %s33 = scalar_select %p30, %s31, %s32
    %p36 = pneg %p30
    %p37 = scmp.eq.s32.totalorder %s9, 1
    %p38 = por %p36, %p37
    %p39 = scmp.ne.s32.totalorder %s31, %s34
    %p40 = scmp.eq.s32.totalorder %s9, 0
    %p41 = por %p39, %p40
    %p42 = scmp.ne.s32.totalorder %s31, %s34
    %p43 = scmp.eq.s32.totalorder %s14, 1
    %p44 = por %p42, %p43
    %p45 = scmp.ne.s32.totalorder %s34, %s35
    %p46 = scmp.eq.s32.totalorder %s14, 0
    %p47 = por %p45, %p46
    %p48 = scmp.ne.s32.totalorder %s34, %s35
    %p49 = scmp.eq.s32.totalorder %s15, 1
    %p50 = por %p48, %p49
    %p52 = scmp.ne.s32.totalorder %s35, %s51
    %p53 = scmp.eq.s32.totalorder %s15, 0
    %p54 = por %p52, %p53
    %s55 = ssub.s32 %s16, %s28
    %p56 = scmp.eq.s32.totalorder %s55, 0
    %s58 = sadd.s32 %s57, 1
    %s59 = scalar_select %p56, %s57, %s58
    %p62 = pneg %p56
    %p63 = scmp.eq.s32.totalorder %s9, 1
    %p64 = por %p62, %p63
    %p65 = scmp.ne.s32.totalorder %s57, %s60
    %p66 = scmp.eq.s32.totalorder %s9, 0
    %p67 = por %p65, %p66
    %p68 = scmp.ne.s32.totalorder %s57, %s60
    %p69 = scmp.eq.s32.totalorder %s14, 1
    %p70 = por %p68, %p69
    %p71 = scmp.ne.s32.totalorder %s60, %s61
    %p72 = scmp.eq.s32.totalorder %s14, 0
    %p73 = por %p71, %p72
    %p74 = scmp.ne.s32.totalorder %s60, %s61
    %p75 = scmp.eq.s32.totalorder %s15, 1
    %p76 = por %p74, %p75
    %p78 = scmp.ne.s32.totalorder %s61, %s77
    %p79 = scmp.eq.s32.totalorder %s15, 0
    %p80 = por %p78, %p79
    %s81 = ssub.s32 %s16, %s28
    %p82 = scmp.eq.s32.totalorder %s81, 0
    %s84 = sadd.s32 %s83, 1
    %s85 = scalar_select %p82, %s83, %s84
    %p88 = pneg %p82
    %p89 = scmp.eq.s32.totalorder %s9, 1
    %p90 = por %p88, %p89
    %p91 = scmp.ne.s32.totalorder %s83, %s86
    %p92 = scmp.eq.s32.totalorder %s9, 0
    %p93 = por %p91, %p92
    %p94 = scmp.ne.s32.totalorder %s83, %s86
    %p95 = scmp.eq.s32.totalorder %s14, 1
    %p96 = por %p94, %p95
    %p97 = scmp.ne.s32.totalorder %s86, %s87
    %p98 = scmp.eq.s32.totalorder %s14, 0
    %p99 = por %p97, %p98
    %p100 = scmp.ne.s32.totalorder %s86, %s87
    %p101 = scmp.eq.s32.totalorder %s15, 1
    %p102 = por %p100, %p101
    %p104 = scmp.ne.s32.totalorder %s87, %s103
    %p105 = scmp.eq.s32.totalorder %s15, 0
    %p106 = por %p104, %p105
    %s107 = ssub.s32 %s17, %s24
    %s108 = ssub.s32 %s16, %s28
    %s109 = sor.u32 %s107, %s108
    %p110 = scmp.eq.s32.totalorder %s109, 0
    %s112 = sadd.s32 %s111, 1
    %s113 = scalar_select %p110, %s111, %s112
    %p116 = pneg %p110
    %p117 = scmp.eq.s32.totalorder %s9, 1
    %p118 = por %p116, %p117
    %p119 = scmp.ne.s32.totalorder %s111, %s114
    %p120 = scmp.eq.s32.totalorder %s9, 0
    %p121 = por %p119, %p120
    %p122 = scmp.ne.s32.totalorder %s111, %s114
    %p123 = scmp.eq.s32.totalorder %s14, 1
    %p124 = por %p122, %p123
    %p125 = scmp.ne.s32.totalorder %s114, %s115
    %p126 = scmp.eq.s32.totalorder %s14, 0
    %p127 = por %p125, %p126
    %p128 = scmp.ne.s32.totalorder %s114, %s115
    %p129 = scmp.eq.s32.totalorder %s15, 1
    %p130 = por %p128, %p129
    %p132 = scmp.ne.s32.totalorder %s115, %s131
    %p133 = scmp.eq.s32.totalorder %s15, 0
    %p134 = por %p132, %p133
    %p135 = scmp.le.s32.totalorder 1, %s9
    %p136 = scmp.lt.s32.totalorder %s9, 3
    %p137 = pnand %p135, %p136
    %p138 = pneg %p137
    // Predicated region
    $region9: #{_lambda_.15} parent=5 // pred_check
      _
    $region10: #{_lambda_.15} parent=5 // pred_check_branch
      %140 = sbr.rel (%p137) target = $region12
    $region11: #{_lambda_.15} parent=5 // pred_region
      %s141 = ssub.s32 %s9, 1
      // Predicated region
      $region13: #{_lambda_.15} parent=11 // pred_check
        %p142 = pneg %p73
      $region14: #{_lambda_.15} parent=11 // pred_check_branch
        %144 = sbr.rel (%p142) target = $region16
      $region15: #{_lambda_.15} parent=11 // pred_region
        %p145 = scmp.lt.s32.totalorder %s18, 0
        %s146 = scalar_select %p145, %s18, 0
        %s147 = smul.addr %s146, 4
        %s148 = scalar_lea.vmem %s1, %s147
      $region16: #{_lambda_.15} parent=11 // pred_fallthru
        _
      // Predicated region
      $region17: #{_lambda_.15} parent=11 // pred_check
        %p149 = pneg %p99
      $region18: #{_lambda_.15} parent=11 // pred_check_branch
        %151 = sbr.rel (%p149) target = $region20
      $region19: #{_lambda_.15} parent=11 // pred_region
        %p152 = scmp.lt.s32.totalorder %s18, 0
        %s153 = scalar_select %p152, %s18, 0
        %s154 = scalar_lea.vmem %s2, %s153
      $region20: #{_lambda_.15} parent=11 // pred_fallthru
        _
    $region12: #{_lambda_.15} parent=5 // pred_fallthru
      _
    %p155 = scmp.lt.s32.totalorder %s9, 2
    // Predicated region
    $region21: #{_lambda_.15} parent=5 // pred_check
      %p156 = pneg %p155
    $region22: #{_lambda_.15} parent=5 // pred_check_branch
      %158 = sbr.rel (%p156) target = $region24
    $region23: #{_lambda_.15} parent=5 // pred_region
      // Predicated region
      $region25: #{_lambda_.15} parent=23 // pred_check
        %p159 = pneg %p41
      $region26: #{_lambda_.15} parent=23 // pred_check_branch
        %161 = sbr.rel (%p159) target = $region28
      $region27: #{_lambda_.15} parent=23 // pred_region
        %s162 = smul.u32 2, %s17
        %p163 = scmp.lt.s32.totalorder %s162, 3
        %s164 = scalar_select %p163, %s162, 3
        %s165 = smul.addr %s164, 4
        %s166 = scalar_lea.vmem %s0, %s165
        %s167 = smul.u32 2, %s17
      $region28: #{_lambda_.15} parent=23 // pred_fallthru
        _
    $region24: #{_lambda_.15} parent=5 // pred_fallthru
      _
    %p168 = scmp.le.s32.totalorder 1, %s9
    %p169 = scmp.lt.s32.totalorder %s9, 3
    %p170 = pnand %p168, %p169
    %p171 = pneg %p170
    // Predicated region
    $region29: #{_lambda_.15} parent=5 // pred_check
      _
    $region30: #{_lambda_.15} parent=5 // pred_check_branch
      %173 = sbr.rel (%p170) target = $region32
    $region31: #{_lambda_.15} parent=5 // pred_region
      %s174 = ssub.s32 %s9, 1
      %s175 = smul.u32 2, %s19
      %p176 = scmp.lt.s32.totalorder %s175, 3
      %s177 = scalar_select %p176, %s175, 3
      %s178 = smul.addr %s177, 4
      %s179 = scalar_lea.vmem %s0, %s178
      %p180 = pneg %p47
      %p181 = pneg %p44
      %p182 = scmp.lt.s32.totalorder %s18, 0
      %s183 = scalar_select %p182, %s18, 0
      %s184 = smul.addr %s183, 4
      %s185 = scalar_lea.vmem %s1, %s184
      %p186 = pneg %p73
      %p187 = pneg %p70
      %p188 = scmp.lt.s32.totalorder %s18, 0
      %s189 = scalar_select %p188, %s18, 0
      %s190 = scalar_lea.vmem %s2, %s189
      %p191 = pneg %p99
      %p192 = pneg %p96
      %p193 = pneg %p127
      %p194 = pneg %p124
      %s195 = smul.u32 2, %s19
      %p196 = scmp.lt.s32.totalorder %s195, 3
      %s197 = scalar_select %p196, %s195, 3
      %p198 = scmp.lt.s32.totalorder %s18, 0
      %s199 = scalar_select %p198, %s18, 0
      %s200 = sadd.s32 %s199, %s197
      %s201 = smul.addr %s200, 4
      %s202 = scalar_lea.vmem %s3, %s201
      %s203 = smul.u32 2, %s19
      %p204 = scmp.lt.s32.totalorder %s203, 3
      %s205 = scalar_select %p204, %s203, 3
      %s206 = smul.addr %s205, 4
      %s207 = scalar_lea.vmem %s0, %s206
      %s208 = smul.u32 2, %s19
      %p209 = scmp.lt.s32.totalorder %s18, 0
      %s210 = scalar_select %p209, %s18, 0
      %s211 = smul.addr %s210, 4
      %s212 = scalar_lea.vmem %s1, %s211
      %p213 = scmp.lt.s32.totalorder %s18, 0
      %s214 = scalar_select %p213, %s18, 0
      %s215 = scalar_lea.vmem %s2, %s214
      %s216 = smul.u32 2, %s19
      %p217 = scmp.lt.s32.totalorder %s216, 3
      %s218 = scalar_select %p217, %s216, 3
      %p219 = scmp.lt.s32.totalorder %s18, 0
      %s220 = scalar_select %p219, %s18, 0
      %s221 = sadd.s32 %s220, %s218
      %s222 = smul.addr %s221, 4
      %s223 = scalar_lea.vmem %s3, %s222
      %s224 = smul.u32 2, %s19
      %v225 = vld [vmem:[%s207] sm:$0xf]
      %v226 = vld [vmem:[%s207 + $0x4] sm:$0xf]
      %v227 = vld [vmem:[%s212] sm:$0xf]
      %v228 = vld [vmem:[%s212 + $0x4] sm:$0xf]
      %v229 = vld [vmem:[%s212 + $0x8] sm:$0xf]
      %v230 = vld [vmem:[%s212 + $0xc] sm:$0xf]
      %v231 = vld [vmem:[%s212 + $0x10] sm:$0xf]
      %v232 = vld [vmem:[%s212 + $0x14] sm:$0xf]
      %v233 = vld [vmem:[%s212 + $0x18] sm:$0xf]
      %v234 = vld [vmem:[%s212 + $0x1c] sm:$0xf]
      %v235 = vld [vmem:[%s212 + $0x20] sm:$0xf]
      %v236 = vld [vmem:[%s212 + $0x24] sm:$0xf]
      %v237 = vld [vmem:[%s212 + $0x28] sm:$0xf]
      %v238 = vld [vmem:[%s212 + $0x2c] sm:$0xf]
      %v239 = vld [vmem:[%s212 + $0x30] sm:$0xf]
      %v240 = vld [vmem:[%s212 + $0x34] sm:$0xf]
      %v241 = vld [vmem:[%s212 + $0x38] sm:$0xf]
      %v242 = vld [vmem:[%s212 + $0x3c] sm:$0xf]
      %v243 = vld [vmem:[%s215] sm:$0x1]
      %v245 = vperm.slane %v243, 0
      %v249 = vunpack.c.l.b16 %v225
      %v250 = vunpack.c.l.b16 %v226
      %v251 = vpack.c.b16 %v250, %v249
      %v269 = vunpack.c.l.b16 %v227
      %v270 = vunpack.c.l.b16 %v228
      %v271 = vunpack.c.l.b16 %v229
      %v272 = vunpack.c.l.b16 %v230
      %v273 = vunpack.c.l.b16 %v231
      %v274 = vunpack.c.l.b16 %v232
      %v275 = vunpack.c.l.b16 %v233
      %v276 = vunpack.c.l.b16 %v234
      %v277 = vunpack.c.l.b16 %v235
      %v278 = vunpack.c.l.b16 %v236
      %v279 = vunpack.c.l.b16 %v237
      %v280 = vunpack.c.l.b16 %v238
      %v281 = vunpack.c.l.b16 %v239
      %v282 = vunpack.c.l.b16 %v240
      %v283 = vunpack.c.l.b16 %v241
      %v284 = vunpack.c.l.b16 %v242
      %v285 = vpack.c.b16 %v270, %v269
      %v286 = vpack.c.b16 %v272, %v271
      %v287 = vpack.c.b16 %v274, %v273
      %v288 = vpack.c.b16 %v276, %v275
      %v289 = vpack.c.b16 %v278, %v277
      %v290 = vpack.c.b16 %v280, %v279
      %v291 = vpack.c.b16 %v282, %v281
      %v292 = vpack.c.b16 %v284, %v283
      %301 = vmatpush.bf16.msra.mxu0 %v292
      %302 = vmatpush.bf16.msra.mxu0 %v291
      %303 = vmatpush.bf16.msra.mxu0 %v290
      %304 = vmatpush.bf16.msra.mxu0 %v289
      %305 = vmatpush.bf16.msra.mxu0 %v288
      %306 = vmatpush.bf16.msra.mxu0 %v287
      %307 = vmatpush.bf16.msra.mxu0 %v286
      %308 = vmatpush.bf16.msra.mxu0 %v285
      %309 = vmatmul.bf16.gmra.mxu0 %v251
      %v310 = vpop.f32.mrf.mxu0
      %v311 = vadd.f32 %v245, %v310
      %v312 = vpop.f32.mrf.mxu0
      %v313 = vadd.f32 %v245, %v312
      %314 = vdwg.mxu0
      %v315 = vpack.c.bf16 %v311, %v311
      %v316 = vpack.c.bf16 %v313, %v313
      %317 = vst [vmem:[%s223] sm:$0xf] %v315
      %318 = vst [vmem:[%s223 + $0x4] sm:$0xf] %v316
      %s319 = smul.u32 2, %s19
      %p320 = scmp.lt.s32.totalorder %s319, 3
      %s321 = scalar_select %p320, %s319, 3
      %p322 = scmp.lt.s32.totalorder %s18, 0
      %s323 = scalar_select %p322, %s18, 0
      %s324 = sadd.s32 %s323, %s321
      %s325 = smul.addr %s324, 4
      %s326 = scalar_lea.vmem %s3, %s325
      // Predicated region
      $region33: #{_lambda_.15} parent=31 // pred_check
        %p327 = pneg %p124
      $region34: #{_lambda_.15} parent=31 // pred_check_branch
        %329 = sbr.rel (%p327) target = $region36
      $region35: #{_lambda_.15} parent=31 // pred_region
        %s330 = smul.u32 2, %s19
      $region36: #{_lambda_.15} parent=31 // pred_fallthru
        _
    $region32: #{_lambda_.15} parent=5 // pred_fallthru
      _
    %p331 = scmp.le.s32.totalorder 2, %s9
    // Predicated region
    $region37: #{_lambda_.15} parent=5 // pred_check
      %p332 = pneg %p331
    $region38: #{_lambda_.15} parent=5 // pred_check_branch
      %334 = sbr.rel (%p332) target = $region40
    $region39: #{_lambda_.15} parent=5 // pred_region
      %s335 = ssub.s32 %s9, 2
      // Predicated region
      $region41: #{_lambda_.15} parent=39 // pred_check
        %p336 = pneg %p130
      $region42: #{_lambda_.15} parent=39 // pred_check_branch
        %338 = sbr.rel (%p336) target = $region44
      $region43: #{_lambda_.15} parent=39 // pred_region
        %s339 = smul.u32 2, %s21
        %p340 = scmp.lt.s32.totalorder %s339, 3
        %s341 = scalar_select %p340, %s339, 3
        %p342 = scmp.lt.s32.totalorder %s20, 0
        %s343 = scalar_select %p342, %s20, 0
        %s344 = sadd.s32 %s343, %s341
        %s345 = smul.addr %s344, 4
        %s346 = scalar_lea.vmem %s3, %s345
      $region44: #{_lambda_.15} parent=39 // pred_fallthru
        _
    $region40: #{_lambda_.15} parent=5 // pred_fallthru
      _
  $region6: #{_lambda_.15} parent=0 // loop_footer
    %s13 = sadd.s32 1, %s9
  $region7: #{_lambda_.15} parent=0 // loop_footer_branch
    %8 = sbr.rel target = $region3
  $region8: #{_lambda_.15} parent=0 // loop_exit
    _

// kernel: _lambda_.19
$region0: #{_lambda_.19}
  #allocation0 [shape = 'u32[]', space=smem, size = 0x4, offset = 0x4, fixed_abs, tag = 'smem constant byte address 0x4 - core index']
  #allocation1 [shape = 'u32[72,128]{1,0:T(1,128)}', space=vmem, size = 0x9000, scoped, tag = 'internal scratch']
  %s0 = inlined_call_operand.vmem [shape: bf16[16,256], index: 0, kind: input, shape index: {}]
  %s1 = inlined_call_operand.vmem [shape: bf16[256,128], index: 1, kind: input, shape index: {}]
  %s2 = inlined_call_operand.vmem [shape: f32[1,128], index: 2, kind: input, shape index: {}]
  %s3 = inlined_call_operand.vmem [shape: bf16[16,128], index: 3, kind: output, shape index: {}]
  %s4 = sld [smem:[#allocation0]]
  $region22: #{_lambda_.19} parent=0
    _
  %s6 = ssub.s32 1, %s4
  %s7 = scalar_select 0, %s6, %s4
  // Predicated region
  $region2: #{_lambda_.19} parent=0 // pred_check
    _
  $region3: #{_lambda_.19} parent=0 // pred_check_branch
    %9 = sbr.rel (0) target = $region5
  $region4: #{_lambda_.19} parent=0 // pred_region
    _
  $region5: #{_lambda_.19} parent=0 // pred_fallthru
    _
  // Predicated region
  $region6: #{_lambda_.19} parent=0 // pred_check
    _
  $region7: #{_lambda_.19} parent=0 // pred_check_branch
    %11 = sbr.rel (0) target = $region9
  $region8: #{_lambda_.19} parent=0 // pred_region
    _
  $region9: #{_lambda_.19} parent=0 // pred_fallthru
    _
  // Predicated region
  $region10: #{_lambda_.19} parent=0 // pred_check
    _
  $region11: #{_lambda_.19} parent=0 // pred_check_branch
    %13 = sbr.rel (0) target = $region13
  $region12: #{_lambda_.19} parent=0 // pred_region
    _
  $region13: #{_lambda_.19} parent=0 // pred_fallthru
    _
  %v14 = vld [vmem:[%s0] sm:$0xff]
  %v15 = vld [vmem:[%s0 + $0x8] sm:$0xff]
  %v16 = vld [vmem:[%s1] sm:$0xf]
  %v17 = vld [vmem:[%s1 + $0x4] sm:$0xf]
  %v18 = vld [vmem:[%s1 + $0x8] sm:$0xf]
  %v19 = vld [vmem:[%s1 + $0xc] sm:$0xf]
  %v20 = vld [vmem:[%s1 + $0x10] sm:$0xf]
  %v21 = vld [vmem:[%s1 + $0x14] sm:$0xf]
  %v22 = vld [vmem:[%s1 + $0x18] sm:$0xf]
  %v23 = vld [vmem:[%s1 + $0x1c] sm:$0xf]
  %v24 = vld [vmem:[%s1 + $0x20] sm:$0xf]
  %v25 = vld [vmem:[%s1 + $0x24] sm:$0xf]
  %v26 = vld [vmem:[%s1 + $0x28] sm:$0xf]
  %v27 = vld [vmem:[%s1 + $0x2c] sm:$0xf]
  %v28 = vld [vmem:[%s1 + $0x30] sm:$0xf]
  %v29 = vld [vmem:[%s1 + $0x34] sm:$0xf]
  %v30 = vld [vmem:[%s1 + $0x38] sm:$0xf]
  %v31 = vld [vmem:[%s1 + $0x3c] sm:$0xf]
  %v32 = vld [vmem:[%s1 + $0x40] sm:$0xf]
  %v33 = vld [vmem:[%s1 + $0x44] sm:$0xf]
  %v34 = vld [vmem:[%s1 + $0x48] sm:$0xf]
  %v35 = vld [vmem:[%s1 + $0x4c] sm:$0xf]
  %v36 = vld [vmem:[%s1 + $0x50] sm:$0xf]
  %v37 = vld [vmem:[%s1 + $0x54] sm:$0xf]
  %v38 = vld [vmem:[%s1 + $0x58] sm:$0xf]
  %v39 = vld [vmem:[%s1 + $0x5c] sm:$0xf]
  %v40 = vld [vmem:[%s1 + $0x60] sm:$0xf]
  %v41 = vld [vmem:[%s1 + $0x64] sm:$0xf]
  %v42 = vld [vmem:[%s1 + $0x68] sm:$0xf]
  %v43 = vld [vmem:[%s1 + $0x6c] sm:$0xf]
  %v44 = vld [vmem:[%s1 + $0x70] sm:$0xf]
  %v45 = vld [vmem:[%s1 + $0x74] sm:$0xf]
  %v46 = vld [vmem:[%s1 + $0x78] sm:$0xf]
  %v47 = vld [vmem:[%s1 + $0x7c] sm:$0xf]
  %v48 = vld [vmem:[%s2] sm:$0x1]
  %v50 = vperm.slane %v48, 0
  %v54 = vunpack.c.l.b16 %v14
  %v55 = vunpack.c.h.b16 %v14
  %v56 = vunpack.c.l.b16 %v15
  %v57 = vunpack.c.h.b16 %v15
  %v58 = vpack.c.b16 %v56, %v54
  %v59 = vpack.c.b16 %v57, %v55
  %v94 = vunpack.c.l.b16 %v16
  %v95 = vunpack.c.l.b16 %v17
  %v96 = vunpack.c.l.b16 %v18
  %v97 = vunpack.c.l.b16 %v19
  %v98 = vunpack.c.l.b16 %v20
  %v99 = vunpack.c.l.b16 %v21
  %v100 = vunpack.c.l.b16 %v22
  %v101 = vunpack.c.l.b16 %v23
  %v102 = vunpack.c.l.b16 %v24
  %v103 = vunpack.c.l.b16 %v25
  %v104 = vunpack.c.l.b16 %v26
  %v105 = vunpack.c.l.b16 %v27
  %v106 = vunpack.c.l.b16 %v28
  %v107 = vunpack.c.l.b16 %v29
  %v108 = vunpack.c.l.b16 %v30
  %v109 = vunpack.c.l.b16 %v31
  %v110 = vunpack.c.l.b16 %v32
  %v111 = vunpack.c.l.b16 %v33
  %v112 = vunpack.c.l.b16 %v34
  %v113 = vunpack.c.l.b16 %v35
  %v114 = vunpack.c.l.b16 %v36
  %v115 = vunpack.c.l.b16 %v37
  %v116 = vunpack.c.l.b16 %v38
  %v117 = vunpack.c.l.b16 %v39
  %v118 = vunpack.c.l.b16 %v40
  %v119 = vunpack.c.l.b16 %v41
  %v120 = vunpack.c.l.b16 %v42
  %v121 = vunpack.c.l.b16 %v43
  %v122 = vunpack.c.l.b16 %v44
  %v123 = vunpack.c.l.b16 %v45
  %v124 = vunpack.c.l.b16 %v46
  %v125 = vunpack.c.l.b16 %v47
  %v126 = vpack.c.b16 %v95, %v94
  %v127 = vpack.c.b16 %v97, %v96
  %v128 = vpack.c.b16 %v99, %v98
  %v129 = vpack.c.b16 %v101, %v100
  %v130 = vpack.c.b16 %v103, %v102
  %v131 = vpack.c.b16 %v105, %v104
  %v132 = vpack.c.b16 %v107, %v106
  %v133 = vpack.c.b16 %v109, %v108
  %v134 = vpack.c.b16 %v111, %v110
  %v135 = vpack.c.b16 %v113, %v112
  %v136 = vpack.c.b16 %v115, %v114
  %v137 = vpack.c.b16 %v117, %v116
  %v138 = vpack.c.b16 %v119, %v118
  %v139 = vpack.c.b16 %v121, %v120
  %v140 = vpack.c.b16 %v123, %v122
  %v141 = vpack.c.b16 %v125, %v124
  %158 = vmatpush.bf16.msra.mxu0 %v133
  %159 = vmatpush.bf16.msra.mxu0 %v132
  %160 = vmatpush.bf16.msra.mxu0 %v131
  %161 = vmatpush.bf16.msra.mxu0 %v130
  %162 = vmatpush.bf16.msra.mxu0 %v129
  %163 = vmatpush.bf16.msra.mxu0 %v128
  %164 = vmatpush.bf16.msra.mxu0 %v127
  %165 = vmatpush.bf16.msra.mxu0 %v126
  %166 = vmatmul.bf16.gmra.mxu0 %v58
  %v167 = vpop.f32.mrf.mxu0
  %v168 = vadd.f32 %v50, %v167
  %v169 = vpop.f32.mrf.mxu0
  %v170 = vadd.f32 %v50, %v169
  %171 = vdwg.mxu0
  %172 = vmatpush.bf16.msra.mxu0 %v141
  %173 = vmatpush.bf16.msra.mxu0 %v140
  %174 = vmatpush.bf16.msra.mxu0 %v139
  %175 = vmatpush.bf16.msra.mxu0 %v138
  %176 = vmatpush.bf16.msra.mxu0 %v137
  %177 = vmatpush.bf16.msra.mxu0 %v136
  %178 = vmatpush.bf16.msra.mxu0 %v135
  %179 = vmatpush.bf16.msra.mxu0 %v134
  %180 = vmatmul.bf16.gmra.mxu0 %v59
  %v181 = vpop.f32.mrf.mxu0
  %v182 = vadd.f32 %v168, %v181
  %v183 = vpop.f32.mrf.mxu0
  %v184 = vadd.f32 %v170, %v183
  %185 = vdwg.mxu0
  %v186 = vmax.f32 %v182, 0.0
  %v187 = vmax.f32 %v184, 0.0
  %v188 = vpack.c.bf16 %v186, %v186
  %v189 = vpack.c.bf16 %v187, %v187
  %190 = vst [vmem:[%s3] sm:$0xf] %v188
  %191 = vst [vmem:[%s3 + $0x4] sm:$0xf] %v189
  // Predicated region
  $region14: #{_lambda_.19} parent=0 // pred_check
    _
  $region15: #{_lambda_.19} parent=0 // pred_check_branch
    %193 = sbr.rel (0) target = $region17
  $region16: #{_lambda_.19} parent=0 // pred_region
    _
  $region17: #{_lambda_.19} parent=0 // pred_fallthru
    _
  // Predicated region
  $region18: #{_lambda_.19} parent=0 // pred_check
    _
  $region19: #{_lambda_.19} parent=0 // pred_check_branch
    %195 = sbr.rel (0) target = $region21
  $region20: #{_lambda_.19} parent=0 // pred_region
    _
  $region21: #{_lambda_.19} parent=0 // pred_fallthru
    _

// kernel: _lambda_.18
$region0: #{_lambda_.18}
  #allocation0 [shape = 'u32[]', space=smem, size = 0x4, offset = 0x4, fixed_abs, tag = 'smem constant byte address 0x4 - core index']
  #allocation1 [shape = 'u32[72,128]{1,0:T(1,128)}', space=vmem, size = 0x9000, scoped, tag = 'internal scratch']
  %s0 = inlined_call_operand.vmem [shape: bf16[16,128], index: 0, kind: input, shape index: {}]
  %s1 = inlined_call_operand.vmem [shape: bf16[128,128], index: 1, kind: input, shape index: {}]
  %s2 = inlined_call_operand.vmem [shape: f32[1,128], index: 2, kind: input, shape index: {}]
  %s3 = inlined_call_operand.vmem [shape: bf16[16,128], index: 3, kind: output, shape index: {}]
  %s4 = sld [smem:[#allocation0]]
  $region22: #{_lambda_.18} parent=0
    _
  %s6 = ssub.s32 1, %s4
  %s7 = scalar_select 0, %s6, %s4
  // Predicated region
  $region2: #{_lambda_.18} parent=0 // pred_check
    _
  $region3: #{_lambda_.18} parent=0 // pred_check_branch
    %9 = sbr.rel (0) target = $region5
  $region4: #{_lambda_.18} parent=0 // pred_region
    _
  $region5: #{_lambda_.18} parent=0 // pred_fallthru
    _
  // Predicated region
  $region6: #{_lambda_.18} parent=0 // pred_check
    _
  $region7: #{_lambda_.18} parent=0 // pred_check_branch
    %11 = sbr.rel (0) target = $region9
  $region8: #{_lambda_.18} parent=0 // pred_region
    _
  $region9: #{_lambda_.18} parent=0 // pred_fallthru
    _
  // Predicated region
  $region10: #{_lambda_.18} parent=0 // pred_check
    _
  $region11: #{_lambda_.18} parent=0 // pred_check_branch
    %13 = sbr.rel (0) target = $region13
  $region12: #{_lambda_.18} parent=0 // pred_region
    _
  $region13: #{_lambda_.18} parent=0 // pred_fallthru
    _
  %v14 = vld [vmem:[%s0] sm:$0xf]
  %v15 = vld [vmem:[%s0 + $0x4] sm:$0xf]
  %v16 = vld [vmem:[%s1] sm:$0xf]
  %v17 = vld [vmem:[%s1 + $0x4] sm:$0xf]
  %v18 = vld [vmem:[%s1 + $0x8] sm:$0xf]
  %v19 = vld [vmem:[%s1 + $0xc] sm:$0xf]
  %v20 = vld [vmem:[%s1 + $0x10] sm:$0xf]
  %v21 = vld [vmem:[%s1 + $0x14] sm:$0xf]
  %v22 = vld [vmem:[%s1 + $0x18] sm:$0xf]
  %v23 = vld [vmem:[%s1 + $0x1c] sm:$0xf]
  %v24 = vld [vmem:[%s1 + $0x20] sm:$0xf]
  %v25 = vld [vmem:[%s1 + $0x24] sm:$0xf]
  %v26 = vld [vmem:[%s1 + $0x28] sm:$0xf]
  %v27 = vld [vmem:[%s1 + $0x2c] sm:$0xf]
  %v28 = vld [vmem:[%s1 + $0x30] sm:$0xf]
  %v29 = vld [vmem:[%s1 + $0x34] sm:$0xf]
  %v30 = vld [vmem:[%s1 + $0x38] sm:$0xf]
  %v31 = vld [vmem:[%s1 + $0x3c] sm:$0xf]
  %v32 = vld [vmem:[%s2] sm:$0x1]
  %v34 = vperm.slane %v32, 0
  %v38 = vunpack.c.l.b16 %v14
  %v39 = vunpack.c.l.b16 %v15
  %v40 = vpack.c.b16 %v39, %v38
  %v58 = vunpack.c.l.b16 %v16
  %v59 = vunpack.c.l.b16 %v17
  %v60 = vunpack.c.l.b16 %v18
  %v61 = vunpack.c.l.b16 %v19
  %v62 = vunpack.c.l.b16 %v20
  %v63 = vunpack.c.l.b16 %v21
  %v64 = vunpack.c.l.b16 %v22
  %v65 = vunpack.c.l.b16 %v23
  %v66 = vunpack.c.l.b16 %v24
  %v67 = vunpack.c.l.b16 %v25
  %v68 = vunpack.c.l.b16 %v26
  %v69 = vunpack.c.l.b16 %v27
  %v70 = vunpack.c.l.b16 %v28
  %v71 = vunpack.c.l.b16 %v29
  %v72 = vunpack.c.l.b16 %v30
  %v73 = vunpack.c.l.b16 %v31
  %v74 = vpack.c.b16 %v59, %v58
  %v75 = vpack.c.b16 %v61, %v60
  %v76 = vpack.c.b16 %v63, %v62
  %v77 = vpack.c.b16 %v65, %v64
  %v78 = vpack.c.b16 %v67, %v66
  %v79 = vpack.c.b16 %v69, %v68
  %v80 = vpack.c.b16 %v71, %v70
  %v81 = vpack.c.b16 %v73, %v72
  %90 = vmatpush.bf16.msra.mxu0 %v81
  %91 = vmatpush.bf16.msra.mxu0 %v80
  %92 = vmatpush.bf16.msra.mxu0 %v79
  %93 = vmatpush.bf16.msra.mxu0 %v78
  %94 = vmatpush.bf16.msra.mxu0 %v77
  %95 = vmatpush.bf16.msra.mxu0 %v76
  %96 = vmatpush.bf16.msra.mxu0 %v75
  %97 = vmatpush.bf16.msra.mxu0 %v74
  %98 = vmatmul.bf16.gmra.mxu0 %v40
  %v99 = vpop.f32.mrf.mxu0
  %v100 = vadd.f32 %v34, %v99
  %v101 = vpop.f32.mrf.mxu0
  %v102 = vadd.f32 %v34, %v101
  %103 = vdwg.mxu0
  %v104 = vpack.c.bf16 %v100, %v100
  %v105 = vpack.c.bf16 %v102, %v102
  %106 = vst [vmem:[%s3] sm:$0xf] %v104
  %107 = vst [vmem:[%s3 + $0x4] sm:$0xf] %v105
  // Predicated region
  $region14: #{_lambda_.18} parent=0 // pred_check
    _
  $region15: #{_lambda_.18} parent=0 // pred_check_branch
    %109 = sbr.rel (0) target = $region17
  $region16: #{_lambda_.18} parent=0 // pred_region
    _
  $region17: #{_lambda_.18} parent=0 // pred_fallthru
    _
  // Predicated region
  $region18: #{_lambda_.18} parent=0 // pred_check
    _
  $region19: #{_lambda_.18} parent=0 // pred_check_branch
    %111 = sbr.rel (0) target = $region21
  $region20: #{_lambda_.18} parent=0 // pred_region
    _
  $region21: #{_lambda_.18} parent=0 // pred_fallthru
    _

// kernel: _lambda_.20
$region0: #{_lambda_.20}
  #allocation0 [shape = 'u32[]', space=smem, size = 0x4, offset = 0x4, fixed_abs, tag = 'smem constant byte address 0x4 - core index']
  #allocation1 [shape = 'u32[72,128]{1,0:T(1,128)}', space=vmem, size = 0x9000, scoped, tag = 'internal scratch']
  %s0 = inlined_call_operand.vmem [shape: bf16[16,384], index: 0, kind: input, shape index: {}]
  %s1 = inlined_call_operand.vmem [shape: bf16[384,128], index: 1, kind: input, shape index: {}]
  %s2 = inlined_call_operand.vmem [shape: f32[1,128], index: 2, kind: input, shape index: {}]
  %s3 = inlined_call_operand.vmem [shape: bf16[16,128], index: 3, kind: input, shape index: {}]
  %s4 = inlined_call_operand.vmem [shape: bf16[16,128], index: 4, kind: output, shape index: {}]
  %s5 = sld [smem:[#allocation0]]
  $region26: #{_lambda_.20} parent=0
    _
  %s7 = ssub.s32 1, %s5
  %s8 = scalar_select 0, %s7, %s5
  // Predicated region
  $region2: #{_lambda_.20} parent=0 // pred_check
    _
  $region3: #{_lambda_.20} parent=0 // pred_check_branch
    %10 = sbr.rel (0) target = $region5
  $region4: #{_lambda_.20} parent=0 // pred_region
    _
  $region5: #{_lambda_.20} parent=0 // pred_fallthru
    _
  // Predicated region
  $region6: #{_lambda_.20} parent=0 // pred_check
    _
  $region7: #{_lambda_.20} parent=0 // pred_check_branch
    %12 = sbr.rel (0) target = $region9
  $region8: #{_lambda_.20} parent=0 // pred_region
    _
  $region9: #{_lambda_.20} parent=0 // pred_fallthru
    _
  // Predicated region
  $region10: #{_lambda_.20} parent=0 // pred_check
    _
  $region11: #{_lambda_.20} parent=0 // pred_check_branch
    %14 = sbr.rel (0) target = $region13
  $region12: #{_lambda_.20} parent=0 // pred_region
    _
  $region13: #{_lambda_.20} parent=0 // pred_fallthru
    _
  // Predicated region
  $region14: #{_lambda_.20} parent=0 // pred_check
    _
  $region15: #{_lambda_.20} parent=0 // pred_check_branch
    %16 = sbr.rel (0) target = $region17
  $region16: #{_lambda_.20} parent=0 // pred_region
    _
  $region17: #{_lambda_.20} parent=0 // pred_fallthru
    _
  %v17 = vld [vmem:[%s0] sm:$0xff]
  %v18 = vld [vmem:[%s0 + $0x8] sm:$0xf]
  %v19 = vld [vmem:[%s0 + $0xc] sm:$0xff]
  %v20 = vld [vmem:[%s0 + $0x14] sm:$0xf]
  %v21 = vld [vmem:[%s1] sm:$0xf]
  %v22 = vld [vmem:[%s1 + $0x4] sm:$0xf]
  %v23 = vld [vmem:[%s1 + $0x8] sm:$0xf]
  %v24 = vld [vmem:[%s1 + $0xc] sm:$0xf]
  %v25 = vld [vmem:[%s1 + $0x10] sm:$0xf]
  %v26 = vld [vmem:[%s1 + $0x14] sm:$0xf]
  %v27 = vld [vmem:[%s1 + $0x18] sm:$0xf]
  %v28 = vld [vmem:[%s1 + $0x1c] sm:$0xf]
  %v29 = vld [vmem:[%s1 + $0x20] sm:$0xf]
  %v30 = vld [vmem:[%s1 + $0x24] sm:$0xf]
  %v31 = vld [vmem:[%s1 + $0x28] sm:$0xf]
  %v32 = vld [vmem:[%s1 + $0x2c] sm:$0xf]
  %v33 = vld [vmem:[%s1 + $0x30] sm:$0xf]
  %v34 = vld [vmem:[%s1 + $0x34] sm:$0xf]
  %v35 = vld [vmem:[%s1 + $0x38] sm:$0xf]
  %v36 = vld [vmem:[%s1 + $0x3c] sm:$0xf]
  %v37 = vld [vmem:[%s1 + $0x40] sm:$0xf]
  %v38 = vld [vmem:[%s1 + $0x44] sm:$0xf]
  %v39 = vld [vmem:[%s1 + $0x48] sm:$0xf]
  %v40 = vld [vmem:[%s1 + $0x4c] sm:$0xf]
  %v41 = vld [vmem:[%s1 + $0x50] sm:$0xf]
  %v42 = vld [vmem:[%s1 + $0x54] sm:$0xf]
  %v43 = vld [vmem:[%s1 + $0x58] sm:$0xf]
  %v44 = vld [vmem:[%s1 + $0x5c] sm:$0xf]
  %v45 = vld [vmem:[%s1 + $0x60] sm:$0xf]
  %v46 = vld [vmem:[%s1 + $0x64] sm:$0xf]
  %v47 = vld [vmem:[%s1 + $0x68] sm:$0xf]
  %v48 = vld [vmem:[%s1 + $0x6c] sm:$0xf]
  %v49 = vld [vmem:[%s1 + $0x70] sm:$0xf]
  %v50 = vld [vmem:[%s1 + $0x74] sm:$0xf]
  %v51 = vld [vmem:[%s1 + $0x78] sm:$0xf]
  %v52 = vld [vmem:[%s1 + $0x7c] sm:$0xf]
  %v53 = vld [vmem:[%s1 + $0x80] sm:$0xf]
  %v54 = vld [vmem:[%s1 + $0x84] sm:$0xf]
  %v55 = vld [vmem:[%s1 + $0x88] sm:$0xf]
  %v56 = vld [vmem:[%s1 + $0x8c] sm:$0xf]
  %v57 = vld [vmem:[%s1 + $0x90] sm:$0xf]
  %v58 = vld [vmem:[%s1 + $0x94] sm:$0xf]
  %v59 = vld [vmem:[%s1 + $0x98] sm:$0xf]
  %v60 = vld [vmem:[%s1 + $0x9c] sm:$0xf]
  %v61 = vld [vmem:[%s1 + $0xa0] sm:$0xf]
  %v62 = vld [vmem:[%s1 + $0xa4] sm:$0xf]
  %v63 = vld [vmem:[%s1 + $0xa8] sm:$0xf]
  %v64 = vld [vmem:[%s1 + $0xac] sm:$0xf]
  %v65 = vld [vmem:[%s1 + $0xb0] sm:$0xf]
  %v66 = vld [vmem:[%s1 + $0xb4] sm:$0xf]
  %v67 = vld [vmem:[%s1 + $0xb8] sm:$0xf]
  %v68 = vld [vmem:[%s1 + $0xbc] sm:$0xf]
  %v69 = vld [vmem:[%s2] sm:$0x1]
  %v71 = vperm.slane %v69, 0
  %v77 = vunpack.c.l.b16 %v17
  %v78 = vunpack.c.h.b16 %v17
  %v79 = vunpack.c.l.b16 %v18
  %v80 = vunpack.c.l.b16 %v19
  %v81 = vunpack.c.h.b16 %v19
  %v82 = vunpack.c.l.b16 %v20
  %v83 = vpack.c.b16 %v80, %v77
  %v84 = vpack.c.b16 %v81, %v78
  %v85 = vpack.c.b16 %v82, %v79
  %v137 = vunpack.c.l.b16 %v21
  %v138 = vunpack.c.l.b16 %v22
  %v139 = vunpack.c.l.b16 %v23
  %v140 = vunpack.c.l.b16 %v24
  %v141 = vunpack.c.l.b16 %v25
  %v142 = vunpack.c.l.b16 %v26
  %v143 = vunpack.c.l.b16 %v27
  %v144 = vunpack.c.l.b16 %v28
  %v145 = vunpack.c.l.b16 %v29
  %v146 = vunpack.c.l.b16 %v30
  %v147 = vunpack.c.l.b16 %v31
  %v148 = vunpack.c.l.b16 %v32
  %v149 = vunpack.c.l.b16 %v33
  %v150 = vunpack.c.l.b16 %v34
  %v151 = vunpack.c.l.b16 %v35
  %v152 = vunpack.c.l.b16 %v36
  %v153 = vunpack.c.l.b16 %v37
  %v154 = vunpack.c.l.b16 %v38
  %v155 = vunpack.c.l.b16 %v39
  %v156 = vunpack.c.l.b16 %v40
  %v157 = vunpack.c.l.b16 %v41
  %v158 = vunpack.c.l.b16 %v42
  %v159 = vunpack.c.l.b16 %v43
  %v160 = vunpack.c.l.b16 %v44
  %v161 = vunpack.c.l.b16 %v45
  %v162 = vunpack.c.l.b16 %v46
  %v163 = vunpack.c.l.b16 %v47
  %v164 = vunpack.c.l.b16 %v48
  %v165 = vunpack.c.l.b16 %v49
  %v166 = vunpack.c.l.b16 %v50
  %v167 = vunpack.c.l.b16 %v51
  %v168 = vunpack.c.l.b16 %v52
  %v169 = vunpack.c.l.b16 %v53
  %v170 = vunpack.c.l.b16 %v54
  %v171 = vunpack.c.l.b16 %v55
  %v172 = vunpack.c.l.b16 %v56
  %v173 = vunpack.c.l.b16 %v57
  %v174 = vunpack.c.l.b16 %v58
  %v175 = vunpack.c.l.b16 %v59
  %v176 = vunpack.c.l.b16 %v60
  %v177 = vunpack.c.l.b16 %v61
  %v178 = vunpack.c.l.b16 %v62
  %v179 = vunpack.c.l.b16 %v63
  %v180 = vunpack.c.l.b16 %v64
  %v181 = vunpack.c.l.b16 %v65
  %v182 = vunpack.c.l.b16 %v66
  %v183 = vunpack.c.l.b16 %v67
  %v184 = vunpack.c.l.b16 %v68
  %v185 = vpack.c.b16 %v138, %v137
  %v186 = vpack.c.b16 %v140, %v139
  %v187 = vpack.c.b16 %v142, %v141
  %v188 = vpack.c.b16 %v144, %v143
  %v189 = vpack.c.b16 %v146, %v145
  %v190 = vpack.c.b16 %v148, %v147
  %v191 = vpack.c.b16 %v150, %v149
  %v192 = vpack.c.b16 %v152, %v151
  %v193 = vpack.c.b16 %v154, %v153
  %v194 = vpack.c.b16 %v156, %v155
  %v195 = vpack.c.b16 %v158, %v157
  %v196 = vpack.c.b16 %v160, %v159
  %v197 = vpack.c.b16 %v162, %v161
  %v198 = vpack.c.b16 %v164, %v163
  %v199 = vpack.c.b16 %v166, %v165
  %v200 = vpack.c.b16 %v168, %v167
  %v201 = vpack.c.b16 %v170, %v169
  %v202 = vpack.c.b16 %v172, %v171
  %v203 = vpack.c.b16 %v174, %v173
  %v204 = vpack.c.b16 %v176, %v175
  %v205 = vpack.c.b16 %v178, %v177
  %v206 = vpack.c.b16 %v180, %v179
  %v207 = vpack.c.b16 %v182, %v181
  %v208 = vpack.c.b16 %v184, %v183
  %233 = vmatpush.bf16.msra.mxu0 %v192
  %234 = vmatpush.bf16.msra.mxu0 %v191
  %235 = vmatpush.bf16.msra.mxu0 %v190
  %236 = vmatpush.bf16.msra.mxu0 %v189
  %237 = vmatpush.bf16.msra.mxu0 %v188
  %238 = vmatpush.bf16.msra.mxu0 %v187
  %239 = vmatpush.bf16.msra.mxu0 %v186
  %240 = vmatpush.bf16.msra.mxu0 %v185
  %241 = vmatmul.bf16.gmra.mxu0 %v83
  %v242 = vpop.f32.mrf.mxu0
  %v243 = vadd.f32 %v71, %v242
  %v244 = vpop.f32.mrf.mxu0
  %v245 = vadd.f32 %v71, %v244
  %246 = vdwg.mxu0
  %247 = vmatpush.bf16.msra.mxu0 %v200
  %248 = vmatpush.bf16.msra.mxu0 %v199
  %249 = vmatpush.bf16.msra.mxu0 %v198
  %250 = vmatpush.bf16.msra.mxu0 %v197
  %251 = vmatpush.bf16.msra.mxu0 %v196
  %252 = vmatpush.bf16.msra.mxu0 %v195
  %253 = vmatpush.bf16.msra.mxu0 %v194
  %254 = vmatpush.bf16.msra.mxu0 %v193
  %255 = vmatmul.bf16.gmra.mxu0 %v84
  %v256 = vpop.f32.mrf.mxu0
  %v257 = vadd.f32 %v243, %v256
  %v258 = vpop.f32.mrf.mxu0
  %v259 = vadd.f32 %v245, %v258
  %260 = vdwg.mxu0
  %261 = vmatpush.bf16.msra.mxu0 %v208
  %262 = vmatpush.bf16.msra.mxu0 %v207
  %263 = vmatpush.bf16.msra.mxu0 %v206
  %264 = vmatpush.bf16.msra.mxu0 %v205
  %265 = vmatpush.bf16.msra.mxu0 %v204
  %266 = vmatpush.bf16.msra.mxu0 %v203
  %267 = vmatpush.bf16.msra.mxu0 %v202
  %268 = vmatpush.bf16.msra.mxu0 %v201
  %269 = vmatmul.bf16.gmra.mxu0 %v85
  %v270 = vpop.f32.mrf.mxu0
  %v271 = vadd.f32 %v257, %v270
  %v272 = vpop.f32.mrf.mxu0
  %v273 = vadd.f32 %v259, %v272
  %274 = vdwg.mxu0
  %v275 = vld [vmem:[%s3] sm:$0xf]
  %v276 = vld [vmem:[%s3 + $0x4] sm:$0xf]
  %v277 = vunpack.c.l.bf16 %v275
  %v278 = vunpack.c.l.bf16 %v276
  %v279 = vadd.f32 %v271, %v277
  %v280 = vadd.f32 %v273, %v278
  %v281 = vmax.f32 %v279, 0.0
  %v282 = vmax.f32 %v280, 0.0
  %v283 = vpack.c.bf16 %v281, %v281
  %v284 = vpack.c.bf16 %v282, %v282
  %285 = vst [vmem:[%s4] sm:$0xf] %v283
  %286 = vst [vmem:[%s4 + $0x4] sm:$0xf] %v284
  // Predicated region
  $region18: #{_lambda_.20} parent=0 // pred_check
    _
  $region19: #{_lambda_.20} parent=0 // pred_check_branch
    %288 = sbr.rel (0) target = $region21
  $region20: #{_lambda_.20} parent=0 // pred_region
    _
  $region21: #{_lambda_.20} parent=0 // pred_fallthru
    _
  // Predicated region
  $region22: #{_lambda_.20} parent=0 // pred_check
    _
  $region23: #{_lambda_.20} parent=0 // pred_check_branch
    %290 = sbr.rel (0) target = $region25
  $region24: #{_lambda_.20} parent=0 // pred_region
    _
  $region25: #{_lambda_.20} parent=0 // pred_fallthru
    _

// kernel: _lambda_.22
$region0: #{_lambda_.22}
  #allocation0 [shape = 'u32[]', space=smem, size = 0x4, offset = 0x4, fixed_abs, tag = 'smem constant byte address 0x4 - core index']
  #allocation1 [shape = 'u32[72,128]{1,0:T(1,128)}', space=vmem, size = 0x9000, scoped, tag = 'internal scratch']
  %s0 = inlined_call_operand.vmem [shape: bf16[16,384], index: 0, kind: input, shape index: {}]
  %s1 = inlined_call_operand.vmem [shape: bf16[384,128], index: 1, kind: input, shape index: {}]
  %s2 = inlined_call_operand.vmem [shape: f32[1,128], index: 2, kind: input, shape index: {}]
  %s3 = inlined_call_operand.vmem [shape: bf16[16,128], index: 3, kind: output, shape index: {}]
  %s4 = sld [smem:[#allocation0]]
  $region22: #{_lambda_.22} parent=0
    _
  %s6 = ssub.s32 1, %s4
  %s7 = scalar_select 0, %s6, %s4
  // Predicated region
  $region2: #{_lambda_.22} parent=0 // pred_check
    _
  $region3: #{_lambda_.22} parent=0 // pred_check_branch
    %9 = sbr.rel (0) target = $region5
  $region4: #{_lambda_.22} parent=0 // pred_region
    _
  $region5: #{_lambda_.22} parent=0 // pred_fallthru
    _
  // Predicated region
  $region6: #{_lambda_.22} parent=0 // pred_check
    _
  $region7: #{_lambda_.22} parent=0 // pred_check_branch
    %11 = sbr.rel (0) target = $region9
  $region8: #{_lambda_.22} parent=0 // pred_region
    _
  $region9: #{_lambda_.22} parent=0 // pred_fallthru
    _
  // Predicated region
  $region10: #{_lambda_.22} parent=0 // pred_check
    _
  $region11: #{_lambda_.22} parent=0 // pred_check_branch
    %13 = sbr.rel (0) target = $region13
  $region12: #{_lambda_.22} parent=0 // pred_region
    _
  $region13: #{_lambda_.22} parent=0 // pred_fallthru
    _
  %v14 = vld [vmem:[%s0] sm:$0xff]
  %v15 = vld [vmem:[%s0 + $0x8] sm:$0xf]
  %v16 = vld [vmem:[%s0 + $0xc] sm:$0xff]
  %v17 = vld [vmem:[%s0 + $0x14] sm:$0xf]
  %v18 = vld [vmem:[%s1] sm:$0xf]
  %v19 = vld [vmem:[%s1 + $0x4] sm:$0xf]
  %v20 = vld [vmem:[%s1 + $0x8] sm:$0xf]
  %v21 = vld [vmem:[%s1 + $0xc] sm:$0xf]
  %v22 = vld [vmem:[%s1 + $0x10] sm:$0xf]
  %v23 = vld [vmem:[%s1 + $0x14] sm:$0xf]
  %v24 = vld [vmem:[%s1 + $0x18] sm:$0xf]
  %v25 = vld [vmem:[%s1 + $0x1c] sm:$0xf]
  %v26 = vld [vmem:[%s1 + $0x20] sm:$0xf]
  %v27 = vld [vmem:[%s1 + $0x24] sm:$0xf]
  %v28 = vld [vmem:[%s1 + $0x28] sm:$0xf]
  %v29 = vld [vmem:[%s1 + $0x2c] sm:$0xf]
  %v30 = vld [vmem:[%s1 + $0x30] sm:$0xf]
  %v31 = vld [vmem:[%s1 + $0x34] sm:$0xf]
  %v32 = vld [vmem:[%s1 + $0x38] sm:$0xf]
  %v33 = vld [vmem:[%s1 + $0x3c] sm:$0xf]
  %v34 = vld [vmem:[%s1 + $0x40] sm:$0xf]
  %v35 = vld [vmem:[%s1 + $0x44] sm:$0xf]
  %v36 = vld [vmem:[%s1 + $0x48] sm:$0xf]
  %v37 = vld [vmem:[%s1 + $0x4c] sm:$0xf]
  %v38 = vld [vmem:[%s1 + $0x50] sm:$0xf]
  %v39 = vld [vmem:[%s1 + $0x54] sm:$0xf]
  %v40 = vld [vmem:[%s1 + $0x58] sm:$0xf]
  %v41 = vld [vmem:[%s1 + $0x5c] sm:$0xf]
  %v42 = vld [vmem:[%s1 + $0x60] sm:$0xf]
  %v43 = vld [vmem:[%s1 + $0x64] sm:$0xf]
  %v44 = vld [vmem:[%s1 + $0x68] sm:$0xf]
  %v45 = vld [vmem:[%s1 + $0x6c] sm:$0xf]
  %v46 = vld [vmem:[%s1 + $0x70] sm:$0xf]
  %v47 = vld [vmem:[%s1 + $0x74] sm:$0xf]
  %v48 = vld [vmem:[%s1 + $0x78] sm:$0xf]
  %v49 = vld [vmem:[%s1 + $0x7c] sm:$0xf]
  %v50 = vld [vmem:[%s1 + $0x80] sm:$0xf]
  %v51 = vld [vmem:[%s1 + $0x84] sm:$0xf]
  %v52 = vld [vmem:[%s1 + $0x88] sm:$0xf]
  %v53 = vld [vmem:[%s1 + $0x8c] sm:$0xf]
  %v54 = vld [vmem:[%s1 + $0x90] sm:$0xf]
  %v55 = vld [vmem:[%s1 + $0x94] sm:$0xf]
  %v56 = vld [vmem:[%s1 + $0x98] sm:$0xf]
  %v57 = vld [vmem:[%s1 + $0x9c] sm:$0xf]
  %v58 = vld [vmem:[%s1 + $0xa0] sm:$0xf]
  %v59 = vld [vmem:[%s1 + $0xa4] sm:$0xf]
  %v60 = vld [vmem:[%s1 + $0xa8] sm:$0xf]
  %v61 = vld [vmem:[%s1 + $0xac] sm:$0xf]
  %v62 = vld [vmem:[%s1 + $0xb0] sm:$0xf]
  %v63 = vld [vmem:[%s1 + $0xb4] sm:$0xf]
  %v64 = vld [vmem:[%s1 + $0xb8] sm:$0xf]
  %v65 = vld [vmem:[%s1 + $0xbc] sm:$0xf]
  %v66 = vld [vmem:[%s2] sm:$0x1]
  %v68 = vperm.slane %v66, 0
  %v74 = vunpack.c.l.b16 %v14
  %v75 = vunpack.c.h.b16 %v14
  %v76 = vunpack.c.l.b16 %v15
  %v77 = vunpack.c.l.b16 %v16
  %v78 = vunpack.c.h.b16 %v16
  %v79 = vunpack.c.l.b16 %v17
  %v80 = vpack.c.b16 %v77, %v74
  %v81 = vpack.c.b16 %v78, %v75
  %v82 = vpack.c.b16 %v79, %v76
  %v134 = vunpack.c.l.b16 %v18
  %v135 = vunpack.c.l.b16 %v19
  %v136 = vunpack.c.l.b16 %v20
  %v137 = vunpack.c.l.b16 %v21
  %v138 = vunpack.c.l.b16 %v22
  %v139 = vunpack.c.l.b16 %v23
  %v140 = vunpack.c.l.b16 %v24
  %v141 = vunpack.c.l.b16 %v25
  %v142 = vunpack.c.l.b16 %v26
  %v143 = vunpack.c.l.b16 %v27
  %v144 = vunpack.c.l.b16 %v28
  %v145 = vunpack.c.l.b16 %v29
  %v146 = vunpack.c.l.b16 %v30
  %v147 = vunpack.c.l.b16 %v31
  %v148 = vunpack.c.l.b16 %v32
  %v149 = vunpack.c.l.b16 %v33
  %v150 = vunpack.c.l.b16 %v34
  %v151 = vunpack.c.l.b16 %v35
  %v152 = vunpack.c.l.b16 %v36
  %v153 = vunpack.c.l.b16 %v37
  %v154 = vunpack.c.l.b16 %v38
  %v155 = vunpack.c.l.b16 %v39
  %v156 = vunpack.c.l.b16 %v40
  %v157 = vunpack.c.l.b16 %v41
  %v158 = vunpack.c.l.b16 %v42
  %v159 = vunpack.c.l.b16 %v43
  %v160 = vunpack.c.l.b16 %v44
  %v161 = vunpack.c.l.b16 %v45
  %v162 = vunpack.c.l.b16 %v46
  %v163 = vunpack.c.l.b16 %v47
  %v164 = vunpack.c.l.b16 %v48
  %v165 = vunpack.c.l.b16 %v49
  %v166 = vunpack.c.l.b16 %v50
  %v167 = vunpack.c.l.b16 %v51
  %v168 = vunpack.c.l.b16 %v52
  %v169 = vunpack.c.l.b16 %v53
  %v170 = vunpack.c.l.b16 %v54
  %v171 = vunpack.c.l.b16 %v55
  %v172 = vunpack.c.l.b16 %v56
  %v173 = vunpack.c.l.b16 %v57
  %v174 = vunpack.c.l.b16 %v58
  %v175 = vunpack.c.l.b16 %v59
  %v176 = vunpack.c.l.b16 %v60
  %v177 = vunpack.c.l.b16 %v61
  %v178 = vunpack.c.l.b16 %v62
  %v179 = vunpack.c.l.b16 %v63
  %v180 = vunpack.c.l.b16 %v64
  %v181 = vunpack.c.l.b16 %v65
  %v182 = vpack.c.b16 %v135, %v134
  %v183 = vpack.c.b16 %v137, %v136
  %v184 = vpack.c.b16 %v139, %v138
  %v185 = vpack.c.b16 %v141, %v140
  %v186 = vpack.c.b16 %v143, %v142
  %v187 = vpack.c.b16 %v145, %v144
  %v188 = vpack.c.b16 %v147, %v146
  %v189 = vpack.c.b16 %v149, %v148
  %v190 = vpack.c.b16 %v151, %v150
  %v191 = vpack.c.b16 %v153, %v152
  %v192 = vpack.c.b16 %v155, %v154
  %v193 = vpack.c.b16 %v157, %v156
  %v194 = vpack.c.b16 %v159, %v158
  %v195 = vpack.c.b16 %v161, %v160
  %v196 = vpack.c.b16 %v163, %v162
  %v197 = vpack.c.b16 %v165, %v164
  %v198 = vpack.c.b16 %v167, %v166
  %v199 = vpack.c.b16 %v169, %v168
  %v200 = vpack.c.b16 %v171, %v170
  %v201 = vpack.c.b16 %v173, %v172
  %v202 = vpack.c.b16 %v175, %v174
  %v203 = vpack.c.b16 %v177, %v176
  %v204 = vpack.c.b16 %v179, %v178
  %v205 = vpack.c.b16 %v181, %v180
  %230 = vmatpush.bf16.msra.mxu0 %v189
  %231 = vmatpush.bf16.msra.mxu0 %v188
  %232 = vmatpush.bf16.msra.mxu0 %v187
  %233 = vmatpush.bf16.msra.mxu0 %v186
  %234 = vmatpush.bf16.msra.mxu0 %v185
  %235 = vmatpush.bf16.msra.mxu0 %v184
  %236 = vmatpush.bf16.msra.mxu0 %v183
  %237 = vmatpush.bf16.msra.mxu0 %v182
  %238 = vmatmul.bf16.gmra.mxu0 %v80
  %v239 = vpop.f32.mrf.mxu0
  %v240 = vadd.f32 %v68, %v239
  %v241 = vpop.f32.mrf.mxu0
  %v242 = vadd.f32 %v68, %v241
  %243 = vdwg.mxu0
  %244 = vmatpush.bf16.msra.mxu0 %v197
  %245 = vmatpush.bf16.msra.mxu0 %v196
  %246 = vmatpush.bf16.msra.mxu0 %v195
  %247 = vmatpush.bf16.msra.mxu0 %v194
  %248 = vmatpush.bf16.msra.mxu0 %v193
  %249 = vmatpush.bf16.msra.mxu0 %v192
  %250 = vmatpush.bf16.msra.mxu0 %v191
  %251 = vmatpush.bf16.msra.mxu0 %v190
  %252 = vmatmul.bf16.gmra.mxu0 %v81
  %v253 = vpop.f32.mrf.mxu0
  %v254 = vadd.f32 %v240, %v253
  %v255 = vpop.f32.mrf.mxu0
  %v256 = vadd.f32 %v242, %v255
  %257 = vdwg.mxu0
  %258 = vmatpush.bf16.msra.mxu0 %v205
  %259 = vmatpush.bf16.msra.mxu0 %v204
  %260 = vmatpush.bf16.msra.mxu0 %v203
  %261 = vmatpush.bf16.msra.mxu0 %v202
  %262 = vmatpush.bf16.msra.mxu0 %v201
  %263 = vmatpush.bf16.msra.mxu0 %v200
  %264 = vmatpush.bf16.msra.mxu0 %v199
  %265 = vmatpush.bf16.msra.mxu0 %v198
  %266 = vmatmul.bf16.gmra.mxu0 %v82
  %v267 = vpop.f32.mrf.mxu0
  %v268 = vadd.f32 %v254, %v267
  %v269 = vpop.f32.mrf.mxu0
  %v270 = vadd.f32 %v256, %v269
  %271 = vdwg.mxu0
  %v272 = vmax.f32 %v268, 0.0
  %v273 = vmax.f32 %v270, 0.0
  %v274 = vpack.c.bf16 %v272, %v272
  %v275 = vpack.c.bf16 %v273, %v273
  %276 = vst [vmem:[%s3] sm:$0xf] %v274
  %277 = vst [vmem:[%s3 + $0x4] sm:$0xf] %v275
  // Predicated region
  $region14: #{_lambda_.22} parent=0 // pred_check
    _
  $region15: #{_lambda_.22} parent=0 // pred_check_branch
    %279 = sbr.rel (0) target = $region17
  $region16: #{_lambda_.22} parent=0 // pred_region
    _
  $region17: #{_lambda_.22} parent=0 // pred_fallthru
    _
  // Predicated region
  $region18: #{_lambda_.22} parent=0 // pred_check
    _
  $region19: #{_lambda_.22} parent=0 // pred_check_branch
    %281 = sbr.rel (0) target = $region21
  $region20: #{_lambda_.22} parent=0 // pred_region
    _
  $region21: #{_lambda_.22} parent=0 // pred_fallthru
    _

// kernel: _lambda_.23
$region0: #{_lambda_.23}
  #allocation0 [shape = 'u32[]', space=smem, size = 0x4, offset = 0x4, fixed_abs, tag = 'smem constant byte address 0x4 - core index']
  #allocation1 [shape = 'u32[72,128]{1,0:T(1,128)}', space=vmem, size = 0x9000, scoped, tag = 'internal scratch']
  %s0 = inlined_call_operand.vmem [shape: bf16[16,640], index: 0, kind: input, shape index: {}]
  %s1 = inlined_call_operand.vmem [shape: bf16[640,128], index: 1, kind: input, shape index: {}]
  %s2 = inlined_call_operand.vmem [shape: f32[1,128], index: 2, kind: input, shape index: {}]
  %s3 = inlined_call_operand.vmem [shape: bf16[16,128], index: 3, kind: input, shape index: {}]
  %s4 = inlined_call_operand.vmem [shape: bf16[16,128], index: 4, kind: output, shape index: {}]
  %s5 = sld [smem:[#allocation0]]
  $region26: #{_lambda_.23} parent=0
    _
  %s7 = ssub.s32 1, %s5
  %s8 = scalar_select 0, %s7, %s5
  // Predicated region
  $region2: #{_lambda_.23} parent=0 // pred_check
    _
  $region3: #{_lambda_.23} parent=0 // pred_check_branch
    %10 = sbr.rel (0) target = $region5
  $region4: #{_lambda_.23} parent=0 // pred_region
    _
  $region5: #{_lambda_.23} parent=0 // pred_fallthru
    _
  // Predicated region
  $region6: #{_lambda_.23} parent=0 // pred_check
    _
  $region7: #{_lambda_.23} parent=0 // pred_check_branch
    %12 = sbr.rel (0) target = $region9
  $region8: #{_lambda_.23} parent=0 // pred_region
    _
  $region9: #{_lambda_.23} parent=0 // pred_fallthru
    _
  // Predicated region
  $region10: #{_lambda_.23} parent=0 // pred_check
    _
  $region11: #{_lambda_.23} parent=0 // pred_check_branch
    %14 = sbr.rel (0) target = $region13
  $region12: #{_lambda_.23} parent=0 // pred_region
    _
  $region13: #{_lambda_.23} parent=0 // pred_fallthru
    _
  // Predicated region
  $region14: #{_lambda_.23} parent=0 // pred_check
    _
  $region15: #{_lambda_.23} parent=0 // pred_check_branch
    %16 = sbr.rel (0) target = $region17
  $region16: #{_lambda_.23} parent=0 // pred_region
    _
  $region17: #{_lambda_.23} parent=0 // pred_fallthru
    _
  %v17 = vld [vmem:[%s0] sm:$0xff]
  %v18 = vld [vmem:[%s0 + $0x8] sm:$0xff]
  %v19 = vld [vmem:[%s0 + $0x10] sm:$0xf]
  %v20 = vld [vmem:[%s0 + $0x14] sm:$0xff]
  %v21 = vld [vmem:[%s0 + $0x1c] sm:$0xff]
  %v22 = vld [vmem:[%s0 + $0x24] sm:$0xf]
  %v23 = vld [vmem:[%s1] sm:$0xf]
  %v24 = vld [vmem:[%s1 + $0x4] sm:$0xf]
  %v25 = vld [vmem:[%s1 + $0x8] sm:$0xf]
  %v26 = vld [vmem:[%s1 + $0xc] sm:$0xf]
  %v27 = vld [vmem:[%s1 + $0x10] sm:$0xf]
  %v28 = vld [vmem:[%s1 + $0x14] sm:$0xf]
  %v29 = vld [vmem:[%s1 + $0x18] sm:$0xf]
  %v30 = vld [vmem:[%s1 + $0x1c] sm:$0xf]
  %v31 = vld [vmem:[%s1 + $0x20] sm:$0xf]
  %v32 = vld [vmem:[%s1 + $0x24] sm:$0xf]
  %v33 = vld [vmem:[%s1 + $0x28] sm:$0xf]
  %v34 = vld [vmem:[%s1 + $0x2c] sm:$0xf]
  %v35 = vld [vmem:[%s1 + $0x30] sm:$0xf]
  %v36 = vld [vmem:[%s1 + $0x34] sm:$0xf]
  %v37 = vld [vmem:[%s1 + $0x38] sm:$0xf]
  %v38 = vld [vmem:[%s1 + $0x3c] sm:$0xf]
  %v39 = vld [vmem:[%s1 + $0x40] sm:$0xf]
  %v40 = vld [vmem:[%s1 + $0x44] sm:$0xf]
  %v41 = vld [vmem:[%s1 + $0x48] sm:$0xf]
  %v42 = vld [vmem:[%s1 + $0x4c] sm:$0xf]
  %v43 = vld [vmem:[%s1 + $0x50] sm:$0xf]
  %v44 = vld [vmem:[%s1 + $0x54] sm:$0xf]
  %v45 = vld [vmem:[%s1 + $0x58] sm:$0xf]
  %v46 = vld [vmem:[%s1 + $0x5c] sm:$0xf]
  %v47 = vld [vmem:[%s1 + $0x60] sm:$0xf]
  %v48 = vld [vmem:[%s1 + $0x64] sm:$0xf]
  %v49 = vld [vmem:[%s1 + $0x68] sm:$0xf]
  %v50 = vld [vmem:[%s1 + $0x6c] sm:$0xf]
  %v51 = vld [vmem:[%s1 + $0x70] sm:$0xf]
  %v52 = vld [vmem:[%s1 + $0x74] sm:$0xf]
  %v53 = vld [vmem:[%s1 + $0x78] sm:$0xf]
  %v54 = vld [vmem:[%s1 + $0x7c] sm:$0xf]
  %v55 = vld [vmem:[%s1 + $0x80] sm:$0xf]
  %v56 = vld [vmem:[%s1 + $0x84] sm:$0xf]
  %v57 = vld [vmem:[%s1 + $0x88] sm:$0xf]
  %v58 = vld [vmem:[%s1 + $0x8c] sm:$0xf]
  %v59 = vld [vmem:[%s1 + $0x90] sm:$0xf]
  %v60 = vld [vmem:[%s1 + $0x94] sm:$0xf]
  %v61 = vld [vmem:[%s1 + $0x98] sm:$0xf]
  %v62 = vld [vmem:[%s1 + $0x9c] sm:$0xf]
  %v63 = vld [vmem:[%s1 + $0xa0] sm:$0xf]
  %v64 = vld [vmem:[%s1 + $0xa4] sm:$0xf]
  %v65 = vld [vmem:[%s1 + $0xa8] sm:$0xf]
  %v66 = vld [vmem:[%s1 + $0xac] sm:$0xf]
  %v67 = vld [vmem:[%s1 + $0xb0] sm:$0xf]
  %v68 = vld [vmem:[%s1 + $0xb4] sm:$0xf]
  %v69 = vld [vmem:[%s1 + $0xb8] sm:$0xf]
  %v70 = vld [vmem:[%s1 + $0xbc] sm:$0xf]
  %v71 = vld [vmem:[%s1 + $0xc0] sm:$0xf]
  %v72 = vld [vmem:[%s1 + $0xc4] sm:$0xf]
  %v73 = vld [vmem:[%s1 + $0xc8] sm:$0xf]
  %v74 = vld [vmem:[%s1 + $0xcc] sm:$0xf]
  %v75 = vld [vmem:[%s1 + $0xd0] sm:$0xf]
  %v76 = vld [vmem:[%s1 + $0xd4] sm:$0xf]
  %v77 = vld [vmem:[%s1 + $0xd8] sm:$0xf]
  %v78 = vld [vmem:[%s1 + $0xdc] sm:$0xf]
  %v79 = vld [vmem:[%s1 + $0xe0] sm:$0xf]
  %v80 = vld [vmem:[%s1 + $0xe4] sm:$0xf]
  %v81 = vld [vmem:[%s1 + $0xe8] sm:$0xf]
  %v82 = vld [vmem:[%s1 + $0xec] sm:$0xf]
  %v83 = vld [vmem:[%s1 + $0xf0] sm:$0xf]
  %v84 = vld [vmem:[%s1 + $0xf4] sm:$0xf]
  %v85 = vld [vmem:[%s1 + $0xf8] sm:$0xf]
  %v86 = vld [vmem:[%s1 + $0xfc] sm:$0xf]
  %v87 = vld [vmem:[%s1 + $0x100] sm:$0xf]
  %v88 = vld [vmem:[%s1 + $0x104] sm:$0xf]
  %v89 = vld [vmem:[%s1 + $0x108] sm:$0xf]
  %v90 = vld [vmem:[%s1 + $0x10c] sm:$0xf]
  %v91 = vld [vmem:[%s1 + $0x110] sm:$0xf]
  %v92 = vld [vmem:[%s1 + $0x114] sm:$0xf]
  %v93 = vld [vmem:[%s1 + $0x118] sm:$0xf]
  %v94 = vld [vmem:[%s1 + $0x11c] sm:$0xf]
  %v95 = vld [vmem:[%s1 + $0x120] sm:$0xf]
  %v96 = vld [vmem:[%s1 + $0x124] sm:$0xf]
  %v97 = vld [vmem:[%s1 + $0x128] sm:$0xf]
  %v98 = vld [vmem:[%s1 + $0x12c] sm:$0xf]
  %v99 = vld [vmem:[%s1 + $0x130] sm:$0xf]
  %v100 = vld [vmem:[%s1 + $0x134] sm:$0xf]
  %v101 = vld [vmem:[%s1 + $0x138] sm:$0xf]
  %v102 = vld [vmem:[%s1 + $0x13c] sm:$0xf]
  %v103 = vld [vmem:[%s2] sm:$0x1]
  %v105 = vperm.slane %v103, 0
  %v113 = vunpack.c.l.b16 %v17
  %v114 = vunpack.c.h.b16 %v17
  %v115 = vunpack.c.l.b16 %v18
  %v116 = vunpack.c.h.b16 %v18
  %v117 = vunpack.c.l.b16 %v19
  %v118 = vunpack.c.l.b16 %v20
  %v119 = vunpack.c.h.b16 %v20
  %v120 = vunpack.c.l.b16 %v21
  %v121 = vunpack.c.h.b16 %v21
  %v122 = vunpack.c.l.b16 %v22
  %v123 = vpack.c.b16 %v118, %v113
  %v124 = vpack.c.b16 %v119, %v114
  %v125 = vpack.c.b16 %v120, %v115
  %v126 = vpack.c.b16 %v121, %v116
  %v127 = vpack.c.b16 %v122, %v117
  %v213 = vunpack.c.l.b16 %v23
  %v214 = vunpack.c.l.b16 %v24
  %v215 = vunpack.c.l.b16 %v25
  %v216 = vunpack.c.l.b16 %v26
  %v217 = vunpack.c.l.b16 %v27
  %v218 = vunpack.c.l.b16 %v28
  %v219 = vunpack.c.l.b16 %v29
  %v220 = vunpack.c.l.b16 %v30
  %v221 = vunpack.c.l.b16 %v31
  %v222 = vunpack.c.l.b16 %v32
  %v223 = vunpack.c.l.b16 %v33
  %v224 = vunpack.c.l.b16 %v34
  %v225 = vunpack.c.l.b16 %v35
  %v226 = vunpack.c.l.b16 %v36
  %v227 = vunpack.c.l.b16 %v37
  %v228 = vunpack.c.l.b16 %v38
  %v229 = vunpack.c.l.b16 %v39
  %v230 = vunpack.c.l.b16 %v40
  %v231 = vunpack.c.l.b16 %v41
  %v232 = vunpack.c.l.b16 %v42
  %v233 = vunpack.c.l.b16 %v43
  %v234 = vunpack.c.l.b16 %v44
  %v235 = vunpack.c.l.b16 %v45
  %v236 = vunpack.c.l.b16 %v46
  %v237 = vunpack.c.l.b16 %v47
  %v238 = vunpack.c.l.b16 %v48
  %v239 = vunpack.c.l.b16 %v49
  %v240 = vunpack.c.l.b16 %v50
  %v241 = vunpack.c.l.b16 %v51
  %v242 = vunpack.c.l.b16 %v52
  %v243 = vunpack.c.l.b16 %v53
  %v244 = vunpack.c.l.b16 %v54
  %v245 = vunpack.c.l.b16 %v55
  %v246 = vunpack.c.l.b16 %v56
  %v247 = vunpack.c.l.b16 %v57
  %v248 = vunpack.c.l.b16 %v58
  %v249 = vunpack.c.l.b16 %v59
  %v250 = vunpack.c.l.b16 %v60
  %v251 = vunpack.c.l.b16 %v61
  %v252 = vunpack.c.l.b16 %v62
  %v253 = vunpack.c.l.b16 %v63
  %v254 = vunpack.c.l.b16 %v64
  %v255 = vunpack.c.l.b16 %v65
  %v256 = vunpack.c.l.b16 %v66
  %v257 = vunpack.c.l.b16 %v67
  %v258 = vunpack.c.l.b16 %v68
  %v259 = vunpack.c.l.b16 %v69
  %v260 = vunpack.c.l.b16 %v70
  %v261 = vunpack.c.l.b16 %v71
  %v262 = vunpack.c.l.b16 %v72
  %v263 = vunpack.c.l.b16 %v73
  %v264 = vunpack.c.l.b16 %v74
  %v265 = vunpack.c.l.b16 %v75
  %v266 = vunpack.c.l.b16 %v76
  %v267 = vunpack.c.l.b16 %v77
  %v268 = vunpack.c.l.b16 %v78
  %v269 = vunpack.c.l.b16 %v79
  %v270 = vunpack.c.l.b16 %v80
  %v271 = vunpack.c.l.b16 %v81
  %v272 = vunpack.c.l.b16 %v82
  %v273 = vunpack.c.l.b16 %v83
  %v274 = vunpack.c.l.b16 %v84
  %v275 = vunpack.c.l.b16 %v85
  %v276 = vunpack.c.l.b16 %v86
  %v277 = vunpack.c.l.b16 %v87
  %v278 = vunpack.c.l.b16 %v88
  %v279 = vunpack.c.l.b16 %v89
  %v280 = vunpack.c.l.b16 %v90
  %v281 = vunpack.c.l.b16 %v91
  %v282 = vunpack.c.l.b16 %v92
  %v283 = vunpack.c.l.b16 %v93
  %v284 = vunpack.c.l.b16 %v94
  %v285 = vunpack.c.l.b16 %v95
  %v286 = vunpack.c.l.b16 %v96
  %v287 = vunpack.c.l.b16 %v97
  %v288 = vunpack.c.l.b16 %v98
  %v289 = vunpack.c.l.b16 %v99
  %v290 = vunpack.c.l.b16 %v100
  %v291 = vunpack.c.l.b16 %v101
  %v292 = vunpack.c.l.b16 %v102
  %v293 = vpack.c.b16 %v214, %v213
  %v294 = vpack.c.b16 %v216, %v215
  %v295 = vpack.c.b16 %v218, %v217
  %v296 = vpack.c.b16 %v220, %v219
  %v297 = vpack.c.b16 %v222, %v221
  %v298 = vpack.c.b16 %v224, %v223
  %v299 = vpack.c.b16 %v226, %v225
  %v300 = vpack.c.b16 %v228, %v227
  %v301 = vpack.c.b16 %v230, %v229
  %v302 = vpack.c.b16 %v232, %v231
  %v303 = vpack.c.b16 %v234, %v233
  %v304 = vpack.c.b16 %v236, %v235
  %v305 = vpack.c.b16 %v238, %v237
  %v306 = vpack.c.b16 %v240, %v239
  %v307 = vpack.c.b16 %v242, %v241
  %v308 = vpack.c.b16 %v244, %v243
  %v309 = vpack.c.b16 %v246, %v245
  %v310 = vpack.c.b16 %v248, %v247
  %v311 = vpack.c.b16 %v250, %v249
  %v312 = vpack.c.b16 %v252, %v251
  %v313 = vpack.c.b16 %v254, %v253
  %v314 = vpack.c.b16 %v256, %v255
  %v315 = vpack.c.b16 %v258, %v257
  %v316 = vpack.c.b16 %v260, %v259
  %v317 = vpack.c.b16 %v262, %v261
  %v318 = vpack.c.b16 %v264, %v263
  %v319 = vpack.c.b16 %v266, %v265
  %v320 = vpack.c.b16 %v268, %v267
  %v321 = vpack.c.b16 %v270, %v269
  %v322 = vpack.c.b16 %v272, %v271
  %v323 = vpack.c.b16 %v274, %v273
  %v324 = vpack.c.b16 %v276, %v275
  %v325 = vpack.c.b16 %v278, %v277
  %v326 = vpack.c.b16 %v280, %v279
  %v327 = vpack.c.b16 %v282, %v281
  %v328 = vpack.c.b16 %v284, %v283
  %v329 = vpack.c.b16 %v286, %v285
  %v330 = vpack.c.b16 %v288, %v287
  %v331 = vpack.c.b16 %v290, %v289
  %v332 = vpack.c.b16 %v292, %v291
  %373 = vmatpush.bf16.msra.mxu0 %v300
  %374 = vmatpush.bf16.msra.mxu0 %v299
  %375 = vmatpush.bf16.msra.mxu0 %v298
  %376 = vmatpush.bf16.msra.mxu0 %v297
  %377 = vmatpush.bf16.msra.mxu0 %v296
  %378 = vmatpush.bf16.msra.mxu0 %v295
  %379 = vmatpush.bf16.msra.mxu0 %v294
  %380 = vmatpush.bf16.msra.mxu0 %v293
  %381 = vmatmul.bf16.gmra.mxu0 %v123
  %v382 = vpop.f32.mrf.mxu0
  %v383 = vadd.f32 %v105, %v382
  %v384 = vpop.f32.mrf.mxu0
  %v385 = vadd.f32 %v105, %v384
  %386 = vdwg.mxu0
  %387 = vmatpush.bf16.msra.mxu0 %v308
  %388 = vmatpush.bf16.msra.mxu0 %v307
  %389 = vmatpush.bf16.msra.mxu0 %v306
  %390 = vmatpush.bf16.msra.mxu0 %v305
  %391 = vmatpush.bf16.msra.mxu0 %v304
  %392 = vmatpush.bf16.msra.mxu0 %v303
  %393 = vmatpush.bf16.msra.mxu0 %v302
  %394 = vmatpush.bf16.msra.mxu0 %v301
  %395 = vmatmul.bf16.gmra.mxu0 %v124
  %v396 = vpop.f32.mrf.mxu0
  %v397 = vadd.f32 %v383, %v396
  %v398 = vpop.f32.mrf.mxu0
  %v399 = vadd.f32 %v385, %v398
  %400 = vdwg.mxu0
  %401 = vmatpush.bf16.msra.mxu0 %v316
  %402 = vmatpush.bf16.msra.mxu0 %v315
  %403 = vmatpush.bf16.msra.mxu0 %v314
  %404 = vmatpush.bf16.msra.mxu0 %v313
  %405 = vmatpush.bf16.msra.mxu0 %v312
  %406 = vmatpush.bf16.msra.mxu0 %v311
  %407 = vmatpush.bf16.msra.mxu0 %v310
  %408 = vmatpush.bf16.msra.mxu0 %v309
  %409 = vmatmul.bf16.gmra.mxu0 %v125
  %v410 = vpop.f32.mrf.mxu0
  %v411 = vadd.f32 %v397, %v410
  %v412 = vpop.f32.mrf.mxu0
  %v413 = vadd.f32 %v399, %v412
  %414 = vdwg.mxu0
  %415 = vmatpush.bf16.msra.mxu0 %v324
  %416 = vmatpush.bf16.msra.mxu0 %v323
  %417 = vmatpush.bf16.msra.mxu0 %v322
  %418 = vmatpush.bf16.msra.mxu0 %v321
  %419 = vmatpush.bf16.msra.mxu0 %v320
  %420 = vmatpush.bf16.msra.mxu0 %v319
  %421 = vmatpush.bf16.msra.mxu0 %v318
  %422 = vmatpush.bf16.msra.mxu0 %v317
  %423 = vmatmul.bf16.gmra.mxu0 %v126
  %v424 = vpop.f32.mrf.mxu0
  %v425 = vadd.f32 %v411, %v424
  %v426 = vpop.f32.mrf.mxu0
  %v427 = vadd.f32 %v413, %v426
  %428 = vdwg.mxu0
  %429 = vmatpush.bf16.msra.mxu0 %v332
  %430 = vmatpush.bf16.msra.mxu0 %v331
  %431 = vmatpush.bf16.msra.mxu0 %v330
  %432 = vmatpush.bf16.msra.mxu0 %v329
  %433 = vmatpush.bf16.msra.mxu0 %v328
  %434 = vmatpush.bf16.msra.mxu0 %v327
  %435 = vmatpush.bf16.msra.mxu0 %v326
  %436 = vmatpush.bf16.msra.mxu0 %v325
  %437 = vmatmul.bf16.gmra.mxu0 %v127
  %v438 = vpop.f32.mrf.mxu0
  %v439 = vadd.f32 %v425, %v438
  %v440 = vpop.f32.mrf.mxu0
  %v441 = vadd.f32 %v427, %v440
  %442 = vdwg.mxu0
  %v443 = vld [vmem:[%s3] sm:$0xf]
  %v444 = vld [vmem:[%s3 + $0x4] sm:$0xf]
  %v445 = vunpack.c.l.bf16 %v443
  %v446 = vunpack.c.l.bf16 %v444
  %v447 = vadd.f32 %v439, %v445
  %v448 = vadd.f32 %v441, %v446
  %v449 = vmax.f32 %v447, 0.0
  %v450 = vmax.f32 %v448, 0.0
  %v451 = vpack.c.bf16 %v449, %v449
  %v452 = vpack.c.bf16 %v450, %v450
  %453 = vst [vmem:[%s4] sm:$0xf] %v451
  %454 = vst [vmem:[%s4 + $0x4] sm:$0xf] %v452
  // Predicated region
  $region18: #{_lambda_.23} parent=0 // pred_check
    _
  $region19: #{_lambda_.23} parent=0 // pred_check_branch
    %456 = sbr.rel (0) target = $region21
  $region20: #{_lambda_.23} parent=0 // pred_region
    _
  $region21: #{_lambda_.23} parent=0 // pred_fallthru
    _
  // Predicated region
  $region22: #{_lambda_.23} parent=0 // pred_check
    _
  $region23: #{_lambda_.23} parent=0 // pred_check_branch
    %458 = sbr.rel (0) target = $region25
  $region24: #{_lambda_.23} parent=0 // pred_region
    _
  $region25: #{_lambda_.23} parent=0 // pred_fallthru
    _

</llo_original>
